<compile_context>
chip_gen: v7x
topology: tpu7x:2x2x1
jax: 0.10.0
libtpu: 0.0.40
codegen_flags: <defaults>
</compile_context>

<pallas_src>
import functools
import math

import jax
import jax.numpy as jnp
from jax.experimental import pallas as pl
from jax.experimental.pallas import tpu as pltpu

_LANE = 128


def _round_up(x, m):
    return (x + m - 1) // m * m


def _nbytes(a):
    return a.size * a.dtype.itemsize


def _col_starts(stride, m_len):
    # Flat-row offset of column tap dj inside the conv1 "phase" input slab.
    return tuple((dj % stride) * m_len + dj // stride for dj in range(3))


# ------------------------------ Pallas kernels ------------------------------
#
# Layouts (built in XLA, all bf16):
#   A slab (conv1 input, BN1+ReLU already applied): (H_A, LA, Cin_p); per image row,
#     phase p / image n / slot c at flat position p*M_len + n*CW + c holds input column
#     s*c + p - (2s+1)  (zero margins outside [0, W_in)).  H_A has a zero row on top
#     (row r = input row r-1) and zero rows at the bottom.
#   M slab (conv1 output / conv2 input): (H_pad, LM, Cout_p); slot c holds mid column
#     c - 2 (margins masked to zero by conv1).
#   Y slab (conv2 output): (H_pad, M_len, Cout_p); slot c holds out column c - 1.
# With these, every conv tap is a static contiguous row window -> one MXU matmul.


def _conv1_kernel(a_ref, w_ref, b2_ref, mask_ref, m_ref, *,
                  stride, r_blk, lm, m_len, cin_p):
    """3x3 stride-s conv1 + (folded-BN2) bias + ReLU + margin mask."""
    h0 = pl.program_id(0) * r_blk
    bias = b2_ref[...]            # (1, Cout_p) f32
    mask = mask_ref[...]          # (LM, 1)    f32
    starts = _col_starts(stride, m_len)
    for l in range(r_blk):                           # static unroll over the row block
        acc = None
        for di in range(3):                          # row taps
            row = a_ref[stride * (h0 + l) + di]      # (LA, Cin_p) bf16
            for dj in range(3):                      # column taps (static offsets)
                st = starts[dj]
                a_sl = row[st:st + lm, :]
                k = di * 3 + dj
                w_sl = w_ref[k * cin_p:(k + 1) * cin_p, :]
                d = jnp.dot(a_sl, w_sl, preferred_element_type=jnp.float32)
                acc = d if acc is None else acc + d
        y = jnp.maximum(acc + bias, 0.0) * mask
        m_ref[l] = y.astype(m_ref.dtype)


def _conv2_accum(acc, m_ref, w_ref, h, *, m_len, cout_p, h_out, h_m):
    """Accumulate the 9 taps of conv2 (3x3, stride 1) for output image row h."""
    for di in range(3):
        ridx = h + di - 1
        valid = jnp.logical_and(ridx >= 0, ridx < h_out)   # zero H padding (no DMA waste)
        row = m_ref[jnp.clip(ridx, 0, h_m - 1)]            # (LM, Cout_p) bf16
        row = jnp.where(valid, row, jnp.zeros_like(row))
        for dj in range(3):
            a_sl = row[dj:dj + m_len, :]
            k = di * 3 + dj
            w_sl = w_ref[k * cout_p:(k + 1) * cout_p, :]
            acc = acc + jnp.dot(a_sl, w_sl, preferred_element_type=jnp.float32)
    return acc


def _conv2_eq_kernel(m_ref, w_ref, res_ref, y_ref, *,
                     r_blk, m_len, cout_p, h_out, h_m):
    """conv2 with the identity residual fused (acc init = residual)."""
    h0 = pl.program_id(0) * r_blk
    for l in range(r_blk):
        acc = res_ref[l].astype(jnp.float32)
        acc = _conv2_accum(acc, m_ref, w_ref, h0 + l, m_len=m_len,
                           cout_p=cout_p, h_out=h_out, h_m=h_m)
        y_ref[l] = acc.astype(y_ref.dtype)


def _conv2_sc_kernel(m_ref, w_ref, a_ref, ws_ref, y_ref, *,
                     r_blk, m_len, cout_p, h_out, h_m):
    """conv2 with the 1x1 stride-s shortcut matmul fused (acc init = a_sc @ w_sc)."""
    h0 = pl.program_id(0) * r_blk
    ws = ws_ref[...]                                  # (Cin_p, Cout_p) bf16, resident
    for l in range(r_blk):
        acc = jnp.dot(a_ref[l], ws, preferred_element_type=jnp.float32)
        acc = _conv2_accum(acc, m_ref, w_ref, h0 + l, m_len=m_len,
                           cout_p=cout_p, h_out=h_out, h_m=h_m)
        y_ref[l] = acc.astype(y_ref.dtype)


# ------------------------------ layout helpers (plain JAX, bf16) ------------------------------


def _phase_layout(x_nhwc, stride, cw, m_len, la, h_a):
    """(N, H, W, C) -> (H_A, LA, C) conv1-input 'phase' layout (zero margins/borders)."""
    n, h, w, c = x_nhwc.shape
    a0 = 2 * stride + 1
    xt = jnp.transpose(x_nhwc, (1, 0, 2, 3))          # (H, N, W, C)
    phases = []
    for p in range(stride):
        x0 = (p - a0) % stride                        # first input column of this phase
        cols = xt[:, :, x0::stride, :]
        c0 = (x0 + a0 - p) // stride                  # chunk slot of that column
        ph = jnp.pad(cols, ((0, 0), (0, 0), (c0, cw - c0 - cols.shape[2]), (0, 0)))
        ph = ph.reshape(h, n * cw, c)
        ph = jnp.pad(ph, ((0, 0), (0, m_len - n * cw), (0, 0)))
        phases.append(ph)
    a = phases[0] if stride == 1 else jnp.concatenate(phases, axis=1)
    # one zero row on top (conv padding), zero rows below, flat slack up to LA
    return jnp.pad(a, ((1, h_a - h - 1), (0, la - stride * m_len), (0, 0)))


def _out_layout(x_nhwc, cw, m_len, h_pad):
    """(N, H, W, C) -> (H_pad, M_len, C) output-style layout (slot c holds column c-1)."""
    n, h, w, c = x_nhwc.shape
    xt = jnp.transpose(x_nhwc, (1, 0, 2, 3))
    xt = jnp.pad(xt, ((0, h_pad - h), (0, 0), (1, cw - 1 - w), (0, 0)))
    return jnp.pad(xt.reshape(h_pad, n * cw, c), ((0, 0), (0, m_len - n * cw), (0, 0)))


# ------------------------------ forward ------------------------------


def basic_block_forward(x_nchw, params, stride, eps=1e-5, row_block=4):
    """Eval-mode forward of BasicBlock.  x_nchw: (N, Cin, H, W) float32."""
    n, cin, h_in, w_in = x_nchw.shape
    cout = params["conv1_w"].shape[0]
    equal = params["shortcut_w"] is None
    s = int(stride)
    assert h_in % s == 0 and w_in % s == 0
    if equal:
        assert s == 1 and cin == cout          # WideResNet identity-path invariant
    h_out, w_out = h_in // s, w_in // s

    cin_p = _round_up(cin, _LANE)
    cout_p = _round_up(cout, _LANE)

    cw = w_out + 4                             # chunk width per image (with margins)
    m_len = _round_up(n * cw, 8)               # conv2 matmul-M / Y-slab row length
    lm = m_len + 8                             # conv1 matmul-M / M-slab row length
    la = s * m_len + 16                        # A-slab row length (phase blocks + slack)
    r_blk = max(1, min(int(row_block), h_out))
    nb = pl.cdiv(h_out, r_blk)
    h_pad = r_blk * nb
    h_a = max(h_in + 2, s * (h_pad - 1) + 3)

    f32, bf16 = jnp.float32, jnp.bfloat16

    # ---- fold BN parameters (f32) ----
    g1, be1, mu1, v1 = params["bn1"]
    sc1 = g1 / jnp.sqrt(v1 + eps)
    bi1 = be1 - mu1 * sc1
    g2, be2, mu2, v2 = params["bn2"]
    sc2 = g2 / jnp.sqrt(v2 + eps)
    bi2 = be2 - mu2 * sc2
    bi2_p = jnp.pad(bi2, (0, cout_p - cout)).reshape(1, cout_p).astype(f32)

    # ---- weights: fold BN2 scale into conv1, pack taps (k = 3*di + dj), bf16 ----
    w1 = params["conv1_w"].astype(f32) * sc2[:, None, None, None]
    w1 = jnp.transpose(w1, (2, 3, 1, 0))                               # (3,3,Cin,Cout)
    w1 = jnp.pad(w1, ((0, 0), (0, 0), (0, cin_p - cin), (0, cout_p - cout)))
    w1 = w1.reshape(9 * cin_p, cout_p).astype(bf16)

    w2 = jnp.transpose(params["conv2_w"].astype(f32), (2, 3, 1, 0))
    w2 = jnp.pad(w2, ((0, 0), (0, 0), (0, cout_p - cout), (0, cout_p - cout)))
    w2 = w2.reshape(9 * cout_p, cout_p).astype(bf16)

    # ---- BN1 + ReLU fused into the (bf16) layout transform -> conv1 input slab ----
    x_nhwc = jnp.transpose(x_nchw.astype(f32), (0, 2, 3, 1))           # (N,H,W,Cin)
    a_nhwc = jnp.maximum(x_nhwc * sc1[None, None, None, :]
                         + bi1[None, None, None, :], 0.0)
    a_nhwc = jnp.pad(a_nhwc, ((0, 0), (0, 0), (0, 0), (0, cin_p - cin))).astype(bf16)
    a_lay = _phase_layout(a_nhwc, s, cw, m_len, la, h_a)               # (H_A, LA, Cin_p)

    # output-slot validity mask (zero on layout margins / row padding)
    pos = jnp.arange(lm)
    col = pos % cw
    mask_m = jnp.logical_and(pos < n * cw,
                             jnp.logical_and(col >= 2, col < 2 + w_out))
    mask_m = mask_m.astype(f32).reshape(lm, 1)

    # ---- kernel 1: conv1 (3x3, stride s) + BN2 bias + ReLU ----
    out_blk1 = r_blk * lm * cout_p * 2
    vmem1 = int(2 * (_nbytes(a_lay) + _nbytes(w1) + _nbytes(bi2_p) + _nbytes(mask_m))
                + 2 * out_blk1 + (16 << 20))
    mid = pl.pallas_call(
        functools.partial(_conv1_kernel, stride=s, r_blk=r_blk, lm=lm,
                          m_len=m_len, cin_p=cin_p),
        out_shape=jax.ShapeDtypeStruct((h_pad, lm, cout_p), bf16),
        grid=(nb,),
        in_specs=[
            pl.BlockSpec((h_a, la, cin_p), lambda b: (0, 0, 0)),        # resident
            pl.BlockSpec((9 * cin_p, cout_p), lambda b: (0, 0)),        # resident
            pl.BlockSpec((1, cout_p), lambda b: (0, 0)),
            pl.BlockSpec((lm, 1), lambda b: (0, 0)),
        ],
        out_specs=pl.BlockSpec((r_blk, lm, cout_p), lambda b: (b, 0, 0)),
        compiler_params=pltpu.CompilerParams(
            dimension_semantics=("parallel",), vmem_limit_bytes=vmem1),
    )(a_lay, w1, bi2_p, mask_m)

    # ---- kernel 2: conv2 (3x3, stride 1) + fused residual ----
    if equal:
        x_bf = jnp.pad(x_nhwc, ((0, 0), (0, 0), (0, 0),
                                (0, cout_p - cout))).astype(bf16)
        res_lay = _out_layout(x_bf, cw, m_len, h_pad)                  # (H_pad, M_len, Cout_p)
        blk = r_blk * m_len * cout_p * 2
        vmem2 = int(2 * (_nbytes(mid) + _nbytes(w2)) + 4 * blk + (16 << 20))
        y = pl.pallas_call(
            functools.partial(_conv2_eq_kernel, r_blk=r_blk, m_len=m_len,
                              cout_p=cout_p, h_out=h_out, h_m=h_pad),
            out_shape=jax.ShapeDtypeStruct((h_pad, m_len, cout_p), bf16),
            grid=(nb,),
            in_specs=[
                pl.BlockSpec((h_pad, lm, cout_p), lambda b: (0, 0, 0)),    # resident
                pl.BlockSpec((9 * cout_p, cout_p), lambda b: (0, 0)),      # resident
                pl.BlockSpec((r_blk, m_len, cout_p), lambda b: (b, 0, 0)),
            ],
            out_specs=pl.BlockSpec((r_blk, m_len, cout_p), lambda b: (b, 0, 0)),
            compiler_params=pltpu.CompilerParams(
                dimension_semantics=("parallel",), vmem_limit_bytes=vmem2),
        )(mid, w2, res_lay)
    else:
        ws = params["shortcut_w"].astype(f32).reshape(cout, cin).T      # (Cin, Cout)
        ws = jnp.pad(ws, ((0, cin_p - cin), (0, cout_p - cout))).astype(bf16)
        a0 = 2 * s + 1
        p_sc = a0 % s
        start_sc = p_sc * m_len + (a0 - p_sc) // s - 1
        # pre-sliced, strided shortcut input: row h holds relu(bn1(x))[:, s*h, s*j, :]
        a_sc = a_lay[1::s][:h_pad, start_sc:start_sc + m_len, :]        # (H_pad, M_len, Cin_p)
        blk = r_blk * m_len * max(cin_p, cout_p) * 2
        vmem2 = int(2 * (_nbytes(mid) + _nbytes(w2) + _nbytes(ws)) + 4 * blk + (16 << 20))
        y = pl.pallas_call(
            functools.partial(_conv2_sc_kernel, r_blk=r_blk, m_len=m_len,
                              cout_p=cout_p, h_out=h_out, h_m=h_pad),
            out_shape=jax.ShapeDtypeStruct((h_pad, m_len, cout_p), bf16),
            grid=(nb,),
            in_specs=[
                pl.BlockSpec((h_pad, lm, cout_p), lambda b: (0, 0, 0)),    # resident
                pl.BlockSpec((9 * cout_p, cout_p), lambda b: (0, 0)),      # resident
                pl.BlockSpec((r_blk, m_len, cin_p), lambda b: (b, 0, 0)),
                pl.BlockSpec((cin_p, cout_p), lambda b: (0, 0)),           # resident
            ],
            out_specs=pl.BlockSpec((r_blk, m_len, cout_p), lambda b: (b, 0, 0)),
            compiler_params=pltpu.CompilerParams(
                dimension_semantics=("parallel",), vmem_limit_bytes=vmem2),
        )(mid, w2, a_sc, ws)

    # ---- un-layout: crop valid rows/slots/channels back to NCHW ----
    y = y[:h_out, :n * cw, :].reshape(h_out, n, cw, cout_p)
    y = y[:, :, 1:1 + w_out, :cout]
    return jnp.transpose(y, (1, 3, 0, 2)).astype(f32)


# ------------------------- pure-JAX reference check --------------------------


def _ref_forward(x, params, stride):
    eps = 1e-5

    def bn_relu(y, gamma, beta, mean, var):
        inv = gamma / jnp.sqrt(var + eps)
        return jnp.maximum(
            y * inv[None, :, None, None] + (beta - mean * inv)[None, :, None, None],
            0.0,
        )

    def conv(y, wgt, s, p):
        return jax.lax.conv_general_dilated(
            y, wgt, (s, s), [(p, p), (p, p)],
            dimension_numbers=("NCHW", "OIHW", "NCHW"),
        )

    equal = params["shortcut_w"] is None
    a = bn_relu(x, *params["bn1"])
    hh = conv(a, params["conv1_w"], stride, 1)
    hh = bn_relu(hh, *params["bn2"])
    hh = conv(hh, params["conv2_w"], 1, 1)
    res = x if equal else conv(a, params["shortcut_w"], stride, 0)
    return hh + res


# ----------------------------------- main ------------------------------------


if __name__ == "__main__":
    key = jax.random.PRNGKey(0)

    def bn_params(c):
        gamma = 1.0 + 0.1 * jnp.arange(c, dtype=jnp.float32)
        beta = 0.01 * jnp.arange(c, dtype=jnp.float32)
        mean = 0.05 * jnp.arange(c, dtype=jnp.float32)
        var = 1.0 + 0.02 * jnp.arange(c, dtype=jnp.float32)
        return gamma, beta, mean, var

    def make_case(k, n, cin, cout, hsz, with_shortcut):
        k_x, k1, k2, k3 = jax.random.split(k, 4)
        x = jax.random.normal(k_x, (n, cin, hsz, hsz), jnp.float32)
        params = {
            "bn1": bn_params(cin),
            "conv1_w": jax.random.normal(k1, (cout, cin, 3, 3), jnp.float32)
            * (1.0 / math.sqrt(9 * cin)),
            "bn2": bn_params(cout),
            "conv2_w": jax.random.normal(k2, (cout, cout, 3, 3), jnp.float32)
            * (1.0 / math.sqrt(9 * cout)),
            "shortcut_w": (jax.random.normal(k3, (cout, cin, 1, 1), jnp.float32)
                           * (1.0 / math.sqrt(cin))) if with_shortcut else None,
        }
        return x, params

    ka, kb = jax.random.split(key)
    cases = [
        ("downsample", 2) + make_case(ka, 2, 4, 8, 16, True),    # Cin!=Cout, stride 2
        ("identity", 1) + make_case(kb, 2, 8, 8, 16, False),     # Cin==Cout, stride 1
    ]

    for name, stride, x, params in cases:
        out = jax.block_until_ready(basic_block_forward(x, params, stride))
        n_, _, h_, _ = x.shape
        cout_ = params["conv1_w"].shape[0]
        assert out.shape == (n_, cout_, h_ // stride, h_ // stride), (name, out.shape)
        ref = _ref_forward(x, params, stride)
        err = float(jnp.max(jnp.abs(out - ref)))
        scale = float(jnp.max(jnp.abs(ref))) + 1e-6
        assert err / scale < 4e-2, f"{name}: mismatch abs={err} rel={err / scale}"

    print("KERNEL_OK")
</pallas_src>

<mosaic_0001>
module attributes {stable_mosaic.version = 11 : i64} {
  func.func @_conv1_kernel(%arg0: i32, %arg1: memref<18x64x128xbf16, #tpu.memory_space<vmem>>, %arg2: memref<1152x128xbf16, #tpu.memory_space<vmem>>, %arg3: memref<1x128xf32, #tpu.memory_space<vmem>>, %arg4: memref<32x1xf32, #tpu.memory_space<vmem>>, %arg5: memref<4x32x128xbf16, #tpu.memory_space<vmem>>) attributes {dimension_semantics = [#tpu.dimension_semantics<parallel>], iteration_bounds = array<i64: 2>, scalar_prefetch = 0 : i64, scratch_operands = 0 : i64, tpu.core_type = #tpu.core_type<tc>, window_params = [{pipeline_mode = #tpu.pipeline_mode<synchronous>, transform_indices = @transform_0, window_bounds = array<i64: 18, 64, 128>}, {pipeline_mode = #tpu.pipeline_mode<synchronous>, transform_indices = @transform_1, window_bounds = array<i64: 1152, 128>}, {pipeline_mode = #tpu.pipeline_mode<synchronous>, transform_indices = @transform_2, window_bounds = array<i64: 1, 128>}, {pipeline_mode = #tpu.pipeline_mode<synchronous>, transform_indices = @transform_3, window_bounds = array<i64: 32, 1>}, {transform_indices = @transform_4, window_bounds = array<i64: 4, 32, 128>}]} {
    %c4_i32 = arith.constant 4 : i32
    %0 = arith.muli %arg0, %c4_i32 : i32
    %c0 = arith.constant 0 : index
    %c0_0 = arith.constant 0 : index
    %1 = vector.load %arg3[%c0, %c0_0] : memref<1x128xf32, #tpu.memory_space<vmem>>, vector<1x128xf32>
    %c0_1 = arith.constant 0 : index
    %c0_2 = arith.constant 0 : index
    %2 = vector.load %arg4[%c0_1, %c0_2] : memref<32x1xf32, #tpu.memory_space<vmem>>, vector<32x1xf32>
    %c0_i32 = arith.constant 0 : i32
    %3 = arith.addi %0, %c0_i32 : i32
    %c2_i32 = arith.constant 2 : i32
    %4 = arith.muli %c2_i32, %3 : i32
    %c0_i32_3 = arith.constant 0 : i32
    %5 = arith.addi %4, %c0_i32_3 : i32
    %6 = arith.index_cast %5 : i32 to index
    %c0_4 = arith.constant 0 : index
    %c0_5 = arith.constant 0 : index
    %7 = vector.load %arg1[%6, %c0_4, %c0_5] : memref<18x64x128xbf16, #tpu.memory_space<vmem>>, vector<1x64x128xbf16>
    %8 = vector.shape_cast %7 : vector<1x64x128xbf16> to vector<64x128xbf16>
    %9 = vector.extract_strided_slice %8 {offsets = [0, 0], sizes = [32, 128], strides = [1, 1]} : vector<64x128xbf16> to vector<32x128xbf16>
    %c0_6 = arith.constant 0 : index
    %c0_7 = arith.constant 0 : index
    %10 = vector.load %arg2[%c0_6, %c0_7] : memref<1152x128xbf16, #tpu.memory_space<vmem>>, vector<128x128xbf16>
    %cst = arith.constant dense<0.000000e+00> : vector<32x128xf32>
    %11 = tpu.matmul %9, %10, %cst {dimension_numbers = #tpu.dot_dimension_numbers<[1], [0], [0], [1], [0, 0, 1, 1], [], []>} : vector<32x128xbf16>, vector<128x128xbf16>, vector<32x128xf32> -> vector<32x128xf32>
    %12 = vector.extract_strided_slice %8 {offsets = [24, 0], sizes = [32, 128], strides = [1, 1]} : vector<64x128xbf16> to vector<32x128xbf16>
    %c128 = arith.constant 128 : index
    %c0_8 = arith.constant 0 : index
    %13 = vector.load %arg2[%c128, %c0_8] : memref<1152x128xbf16, #tpu.memory_space<vmem>>, vector<128x128xbf16>
    %cst_9 = arith.constant dense<0.000000e+00> : vector<32x128xf32>
    %14 = tpu.matmul %12, %13, %cst_9 {dimension_numbers = #tpu.dot_dimension_numbers<[1], [0], [0], [1], [0, 0, 1, 1], [], []>} : vector<32x128xbf16>, vector<128x128xbf16>, vector<32x128xf32> -> vector<32x128xf32>
    %15 = arith.addf %11, %14 : vector<32x128xf32>
    %16 = vector.extract_strided_slice %8 {offsets = [1, 0], sizes = [32, 128], strides = [1, 1]} : vector<64x128xbf16> to vector<32x128xbf16>
    %c256 = arith.constant 256 : index
    %c0_10 = arith.constant 0 : index
    %17 = vector.load %arg2[%c256, %c0_10] : memref<1152x128xbf16, #tpu.memory_space<vmem>>, vector<128x128xbf16>
    %cst_11 = arith.constant dense<0.000000e+00> : vector<32x128xf32>
    %18 = tpu.matmul %16, %17, %cst_11 {dimension_numbers = #tpu.dot_dimension_numbers<[1], [0], [0], [1], [0, 0, 1, 1], [], []>} : vector<32x128xbf16>, vector<128x128xbf16>, vector<32x128xf32> -> vector<32x128xf32>
    %19 = arith.addf %15, %18 : vector<32x128xf32>
    %c0_i32_12 = arith.constant 0 : i32
    %20 = arith.addi %0, %c0_i32_12 : i32
    %c2_i32_13 = arith.constant 2 : i32
    %21 = arith.muli %c2_i32_13, %20 : i32
    %c1_i32 = arith.constant 1 : i32
    %22 = arith.addi %21, %c1_i32 : i32
    %23 = arith.index_cast %22 : i32 to index
    %c0_14 = arith.constant 0 : index
    %c0_15 = arith.constant 0 : index
    %24 = vector.load %arg1[%23, %c0_14, %c0_15] : memref<18x64x128xbf16, #tpu.memory_space<vmem>>, vector<1x64x128xbf16>
    %25 = vector.shape_cast %24 : vector<1x64x128xbf16> to vector<64x128xbf16>
    %26 = vector.extract_strided_slice %25 {offsets = [0, 0], sizes = [32, 128], strides = [1, 1]} : vector<64x128xbf16> to vector<32x128xbf16>
    %c384 = arith.constant 384 : index
    %c0_16 = arith.constant 0 : index
    %27 = vector.load %arg2[%c384, %c0_16] : memref<1152x128xbf16, #tpu.memory_space<vmem>>, vector<128x128xbf16>
    %cst_17 = arith.constant dense<0.000000e+00> : vector<32x128xf32>
    %28 = tpu.matmul %26, %27, %cst_17 {dimension_numbers = #tpu.dot_dimension_numbers<[1], [0], [0], [1], [0, 0, 1, 1], [], []>} : vector<32x128xbf16>, vector<128x128xbf16>, vector<32x128xf32> -> vector<32x128xf32>
    %29 = arith.addf %19, %28 : vector<32x128xf32>
    %30 = vector.extract_strided_slice %25 {offsets = [24, 0], sizes = [32, 128], strides = [1, 1]} : vector<64x128xbf16> to vector<32x128xbf16>
    %c512 = arith.constant 512 : index
    %c0_18 = arith.constant 0 : index
    %31 = vector.load %arg2[%c512, %c0_18] : memref<1152x128xbf16, #tpu.memory_space<vmem>>, vector<128x128xbf16>
    %cst_19 = arith.constant dense<0.000000e+00> : vector<32x128xf32>
    %32 = tpu.matmul %30, %31, %cst_19 {dimension_numbers = #tpu.dot_dimension_numbers<[1], [0], [0], [1], [0, 0, 1, 1], [], []>} : vector<32x128xbf16>, vector<128x128xbf16>, vector<32x128xf32> -> vector<32x128xf32>
    %33 = arith.addf %29, %32 : vector<32x128xf32>
    %34 = vector.extract_strided_slice %25 {offsets = [1, 0], sizes = [32, 128], strides = [1, 1]} : vector<64x128xbf16> to vector<32x128xbf16>
    %c640 = arith.constant 640 : index
    %c0_20 = arith.constant 0 : index
    %35 = vector.load %arg2[%c640, %c0_20] : memref<1152x128xbf16, #tpu.memory_space<vmem>>, vector<128x128xbf16>
    %cst_21 = arith.constant dense<0.000000e+00> : vector<32x128xf32>
    %36 = tpu.matmul %34, %35, %cst_21 {dimension_numbers = #tpu.dot_dimension_numbers<[1], [0], [0], [1], [0, 0, 1, 1], [], []>} : vector<32x128xbf16>, vector<128x128xbf16>, vector<32x128xf32> -> vector<32x128xf32>
    %37 = arith.addf %33, %36 : vector<32x128xf32>
    %c0_i32_22 = arith.constant 0 : i32
    %38 = arith.addi %0, %c0_i32_22 : i32
    %c2_i32_23 = arith.constant 2 : i32
    %39 = arith.muli %c2_i32_23, %38 : i32
    %c2_i32_24 = arith.constant 2 : i32
    %40 = arith.addi %39, %c2_i32_24 : i32
    %41 = arith.index_cast %40 : i32 to index
    %c0_25 = arith.constant 0 : index
    %c0_26 = arith.constant 0 : index
    %42 = vector.load %arg1[%41, %c0_25, %c0_26] : memref<18x64x128xbf16, #tpu.memory_space<vmem>>, vector<1x64x128xbf16>
    %43 = vector.shape_cast %42 : vector<1x64x128xbf16> to vector<64x128xbf16>
    %44 = vector.extract_strided_slice %43 {offsets = [0, 0], sizes = [32, 128], strides = [1, 1]} : vector<64x128xbf16> to vector<32x128xbf16>
    %c768 = arith.constant 768 : index
    %c0_27 = arith.constant 0 : index
    %45 = vector.load %arg2[%c768, %c0_27] : memref<1152x128xbf16, #tpu.memory_space<vmem>>, vector<128x128xbf16>
    %cst_28 = arith.constant dense<0.000000e+00> : vector<32x128xf32>
    %46 = tpu.matmul %44, %45, %cst_28 {dimension_numbers = #tpu.dot_dimension_numbers<[1], [0], [0], [1], [0, 0, 1, 1], [], []>} : vector<32x128xbf16>, vector<128x128xbf16>, vector<32x128xf32> -> vector<32x128xf32>
    %47 = arith.addf %37, %46 : vector<32x128xf32>
    %48 = vector.extract_strided_slice %43 {offsets = [24, 0], sizes = [32, 128], strides = [1, 1]} : vector<64x128xbf16> to vector<32x128xbf16>
    %c896 = arith.constant 896 : index
    %c0_29 = arith.constant 0 : index
    %49 = vector.load %arg2[%c896, %c0_29] : memref<1152x128xbf16, #tpu.memory_space<vmem>>, vector<128x128xbf16>
    %cst_30 = arith.constant dense<0.000000e+00> : vector<32x128xf32>
    %50 = tpu.matmul %48, %49, %cst_30 {dimension_numbers = #tpu.dot_dimension_numbers<[1], [0], [0], [1], [0, 0, 1, 1], [], []>} : vector<32x128xbf16>, vector<128x128xbf16>, vector<32x128xf32> -> vector<32x128xf32>
    %51 = arith.addf %47, %50 : vector<32x128xf32>
    %52 = vector.extract_strided_slice %43 {offsets = [1, 0], sizes = [32, 128], strides = [1, 1]} : vector<64x128xbf16> to vector<32x128xbf16>
    %c1024 = arith.constant 1024 : index
    %c0_31 = arith.constant 0 : index
    %53 = vector.load %arg2[%c1024, %c0_31] : memref<1152x128xbf16, #tpu.memory_space<vmem>>, vector<128x128xbf16>
    %cst_32 = arith.constant dense<0.000000e+00> : vector<32x128xf32>
    %54 = tpu.matmul %52, %53, %cst_32 {dimension_numbers = #tpu.dot_dimension_numbers<[1], [0], [0], [1], [0, 0, 1, 1], [], []>} : vector<32x128xbf16>, vector<128x128xbf16>, vector<32x128xf32> -> vector<32x128xf32>
    %55 = arith.addf %51, %54 : vector<32x128xf32>
    %56 = vector.broadcast %1 : vector<1x128xf32> to vector<32x128xf32>
    %57 = arith.addf %55, %56 : vector<32x128xf32>
    %cst_33 = arith.constant 0.000000e+00 : f32
    %58 = vector.broadcast %cst_33 : f32 to vector<32x128xf32>
    %59 = arith.maximumf %57, %58 : vector<32x128xf32>
    %60 = vector.broadcast %2 : vector<32x1xf32> to vector<32x128xf32>
    %61 = arith.mulf %59, %60 : vector<32x128xf32>
    %62 = arith.truncf %61 : vector<32x128xf32> to vector<32x128xbf16>
    %c0_34 = arith.constant 0 : index
    %c0_35 = arith.constant 0 : index
    %c0_36 = arith.constant 0 : index
    %63 = vector.load %arg5[%c0_34, %c0_35, %c0_36] : memref<4x32x128xbf16, #tpu.memory_space<vmem>>, vector<1x32x128xbf16>
    %64 = vector.shape_cast %63 : vector<1x32x128xbf16> to vector<32x128xbf16>
    %65 = vector.shape_cast %62 : vector<32x128xbf16> to vector<1x32x128xbf16>
    tpu.vector_store %arg5[%c0_34, %c0_35, %c0_36], %65 {strides = array<i32>} : memref<4x32x128xbf16, #tpu.memory_space<vmem>>, vector<1x32x128xbf16>,
    %c1_i32_37 = arith.constant 1 : i32
    %66 = arith.addi %0, %c1_i32_37 : i32
    %c2_i32_38 = arith.constant 2 : i32
    %67 = arith.muli %c2_i32_38, %66 : i32
    %c0_i32_39 = arith.constant 0 : i32
    %68 = arith.addi %67, %c0_i32_39 : i32
    %69 = arith.index_cast %68 : i32 to index
    %c0_40 = arith.constant 0 : index
    %c0_41 = arith.constant 0 : index
    %70 = vector.load %arg1[%69, %c0_40, %c0_41] : memref<18x64x128xbf16, #tpu.memory_space<vmem>>, vector<1x64x128xbf16>
    %71 = vector.shape_cast %70 : vector<1x64x128xbf16> to vector<64x128xbf16>
    %72 = vector.extract_strided_slice %71 {offsets = [0, 0], sizes = [32, 128], strides = [1, 1]} : vector<64x128xbf16> to vector<32x128xbf16>
    %c0_42 = arith.constant 0 : index
    %c0_43 = arith.constant 0 : index
    %73 = vector.load %arg2[%c0_42, %c0_43] : memref<1152x128xbf16, #tpu.memory_space<vmem>>, vector<128x128xbf16>
    %cst_44 = arith.constant dense<0.000000e+00> : vector<32x128xf32>
    %74 = tpu.matmul %72, %73, %cst_44 {dimension_numbers = #tpu.dot_dimension_numbers<[1], [0], [0], [1], [0, 0, 1, 1], [], []>} : vector<32x128xbf16>, vector<128x128xbf16>, vector<32x128xf32> -> vector<32x128xf32>
    %75 = vector.extract_strided_slice %71 {offsets = [24, 0], sizes = [32, 128], strides = [1, 1]} : vector<64x128xbf16> to vector<32x128xbf16>
    %c128_45 = arith.constant 128 : index
    %c0_46 = arith.constant 0 : index
    %76 = vector.load %arg2[%c128_45, %c0_46] : memref<1152x128xbf16, #tpu.memory_space<vmem>>, vector<128x128xbf16>
    %cst_47 = arith.constant dense<0.000000e+00> : vector<32x128xf32>
    %77 = tpu.matmul %75, %76, %cst_47 {dimension_numbers = #tpu.dot_dimension_numbers<[1], [0], [0], [1], [0, 0, 1, 1], [], []>} : vector<32x128xbf16>, vector<128x128xbf16>, vector<32x128xf32> -> vector<32x128xf32>
    %78 = arith.addf %74, %77 : vector<32x128xf32>
    %79 = vector.extract_strided_slice %71 {offsets = [1, 0], sizes = [32, 128], strides = [1, 1]} : vector<64x128xbf16> to vector<32x128xbf16>
    %c256_48 = arith.constant 256 : index
    %c0_49 = arith.constant 0 : index
    %80 = vector.load %arg2[%c256_48, %c0_49] : memref<1152x128xbf16, #tpu.memory_space<vmem>>, vector<128x128xbf16>
    %cst_50 = arith.constant dense<0.000000e+00> : vector<32x128xf32>
    %81 = tpu.matmul %79, %80, %cst_50 {dimension_numbers = #tpu.dot_dimension_numbers<[1], [0], [0], [1], [0, 0, 1, 1], [], []>} : vector<32x128xbf16>, vector<128x128xbf16>, vector<32x128xf32> -> vector<32x128xf32>
    %82 = arith.addf %78, %81 : vector<32x128xf32>
    %c1_i32_51 = arith.constant 1 : i32
    %83 = arith.addi %0, %c1_i32_51 : i32
    %c2_i32_52 = arith.constant 2 : i32
    %84 = arith.muli %c2_i32_52, %83 : i32
    %c1_i32_53 = arith.constant 1 : i32
    %85 = arith.addi %84, %c1_i32_53 : i32
    %86 = arith.index_cast %85 : i32 to index
    %c0_54 = arith.constant 0 : index
    %c0_55 = arith.constant 0 : index
    %87 = vector.load %arg1[%86, %c0_54, %c0_55] : memref<18x64x128xbf16, #tpu.memory_space<vmem>>, vector<1x64x128xbf16>
    %88 = vector.shape_cast %87 : vector<1x64x128xbf16> to vector<64x128xbf16>
    %89 = vector.extract_strided_slice %88 {offsets = [0, 0], sizes = [32, 128], strides = [1, 1]} : vector<64x128xbf16> to vector<32x128xbf16>
    %c384_56 = arith.constant 384 : index
    %c0_57 = arith.constant 0 : index
    %90 = vector.load %arg2[%c384_56, %c0_57] : memref<1152x128xbf16, #tpu.memory_space<vmem>>, vector<128x128xbf16>
    %cst_58 = arith.constant dense<0.000000e+00> : vector<32x128xf32>
    %91 = tpu.matmul %89, %90, %cst_58 {dimension_numbers = #tpu.dot_dimension_numbers<[1], [0], [0], [1], [0, 0, 1, 1], [], []>} : vector<32x128xbf16>, vector<128x128xbf16>, vector<32x128xf32> -> vector<32x128xf32>
    %92 = arith.addf %82, %91 : vector<32x128xf32>
    %93 = vector.extract_strided_slice %88 {offsets = [24, 0], sizes = [32, 128], strides = [1, 1]} : vector<64x128xbf16> to vector<32x128xbf16>
    %c512_59 = arith.constant 512 : index
    %c0_60 = arith.constant 0 : index
    %94 = vector.load %arg2[%c512_59, %c0_60] : memref<1152x128xbf16, #tpu.memory_space<vmem>>, vector<128x128xbf16>
    %cst_61 = arith.constant dense<0.000000e+00> : vector<32x128xf32>
    %95 = tpu.matmul %93, %94, %cst_61 {dimension_numbers = #tpu.dot_dimension_numbers<[1], [0], [0], [1], [0, 0, 1, 1], [], []>} : vector<32x128xbf16>, vector<128x128xbf16>, vector<32x128xf32> -> vector<32x128xf32>
    %96 = arith.addf %92, %95 : vector<32x128xf32>
    %97 = vector.extract_strided_slice %88 {offsets = [1, 0], sizes = [32, 128], strides = [1, 1]} : vector<64x128xbf16> to vector<32x128xbf16>
    %c640_62 = arith.constant 640 : index
    %c0_63 = arith.constant 0 : index
    %98 = vector.load %arg2[%c640_62, %c0_63] : memref<1152x128xbf16, #tpu.memory_space<vmem>>, vector<128x128xbf16>
    %cst_64 = arith.constant dense<0.000000e+00> : vector<32x128xf32>
    %99 = tpu.matmul %97, %98, %cst_64 {dimension_numbers = #tpu.dot_dimension_numbers<[1], [0], [0], [1], [0, 0, 1, 1], [], []>} : vector<32x128xbf16>, vector<128x128xbf16>, vector<32x128xf32> -> vector<32x128xf32>
    %100 = arith.addf %96, %99 : vector<32x128xf32>
    %c1_i32_65 = arith.constant 1 : i32
    %101 = arith.addi %0, %c1_i32_65 : i32
    %c2_i32_66 = arith.constant 2 : i32
    %102 = arith.muli %c2_i32_66, %101 : i32
    %c2_i32_67 = arith.constant 2 : i32
    %103 = arith.addi %102, %c2_i32_67 : i32
    %104 = arith.index_cast %103 : i32 to index
    %c0_68 = arith.constant 0 : index
    %c0_69 = arith.constant 0 : index
    %105 = vector.load %arg1[%104, %c0_68, %c0_69] : memref<18x64x128xbf16, #tpu.memory_space<vmem>>, vector<1x64x128xbf16>
    %106 = vector.shape_cast %105 : vector<1x64x128xbf16> to vector<64x128xbf16>
    %107 = vector.extract_strided_slice %106 {offsets = [0, 0], sizes = [32, 128], strides = [1, 1]} : vector<64x128xbf16> to vector<32x128xbf16>
    %c768_70 = arith.constant 768 : index
    %c0_71 = arith.constant 0 : index
    %108 = vector.load %arg2[%c768_70, %c0_71] : memref<1152x128xbf16, #tpu.memory_space<vmem>>, vector<128x128xbf16>
    %cst_72 = arith.constant dense<0.000000e+00> : vector<32x128xf32>
    %109 = tpu.matmul %107, %108, %cst_72 {dimension_numbers = #tpu.dot_dimension_numbers<[1], [0], [0], [1], [0, 0, 1, 1], [], []>} : vector<32x128xbf16>, vector<128x128xbf16>, vector<32x128xf32> -> vector<32x128xf32>
    %110 = arith.addf %100, %109 : vector<32x128xf32>
    %111 = vector.extract_strided_slice %106 {offsets = [24, 0], sizes = [32, 128], strides = [1, 1]} : vector<64x128xbf16> to vector<32x128xbf16>
    %c896_73 = arith.constant 896 : index
    %c0_74 = arith.constant 0 : index
    %112 = vector.load %arg2[%c896_73, %c0_74] : memref<1152x128xbf16, #tpu.memory_space<vmem>>, vector<128x128xbf16>
    %cst_75 = arith.constant dense<0.000000e+00> : vector<32x128xf32>
    %113 = tpu.matmul %111, %112, %cst_75 {dimension_numbers = #tpu.dot_dimension_numbers<[1], [0], [0], [1], [0, 0, 1, 1], [], []>} : vector<32x128xbf16>, vector<128x128xbf16>, vector<32x128xf32> -> vector<32x128xf32>
    %114 = arith.addf %110, %113 : vector<32x128xf32>
    %115 = vector.extract_strided_slice %106 {offsets = [1, 0], sizes = [32, 128], strides = [1, 1]} : vector<64x128xbf16> to vector<32x128xbf16>
    %c1024_76 = arith.constant 1024 : index
    %c0_77 = arith.constant 0 : index
    %116 = vector.load %arg2[%c1024_76, %c0_77] : memref<1152x128xbf16, #tpu.memory_space<vmem>>, vector<128x128xbf16>
    %cst_78 = arith.constant dense<0.000000e+00> : vector<32x128xf32>
    %117 = tpu.matmul %115, %116, %cst_78 {dimension_numbers = #tpu.dot_dimension_numbers<[1], [0], [0], [1], [0, 0, 1, 1], [], []>} : vector<32x128xbf16>, vector<128x128xbf16>, vector<32x128xf32> -> vector<32x128xf32>
    %118 = arith.addf %114, %117 : vector<32x128xf32>
    %119 = vector.broadcast %1 : vector<1x128xf32> to vector<32x128xf32>
    %120 = arith.addf %118, %119 : vector<32x128xf32>
    %cst_79 = arith.constant 0.000000e+00 : f32
    %121 = vector.broadcast %cst_79 : f32 to vector<32x128xf32>
    %122 = arith.maximumf %120, %121 : vector<32x128xf32>
    %123 = vector.broadcast %2 : vector<32x1xf32> to vector<32x128xf32>
    %124 = arith.mulf %122, %123 : vector<32x128xf32>
    %125 = arith.truncf %124 : vector<32x128xf32> to vector<32x128xbf16>
    %c1 = arith.constant 1 : index
    %c0_80 = arith.constant 0 : index
    %c0_81 = arith.constant 0 : index
    %126 = vector.load %arg5[%c1, %c0_80, %c0_81] : memref<4x32x128xbf16, #tpu.memory_space<vmem>>, vector<1x32x128xbf16>
    %127 = vector.shape_cast %126 : vector<1x32x128xbf16> to vector<32x128xbf16>
    %128 = vector.shape_cast %125 : vector<32x128xbf16> to vector<1x32x128xbf16>
    tpu.vector_store %arg5[%c1, %c0_80, %c0_81], %128 {strides = array<i32>} : memref<4x32x128xbf16, #tpu.memory_space<vmem>>, vector<1x32x128xbf16>,
    %c2_i32_82 = arith.constant 2 : i32
    %129 = arith.addi %0, %c2_i32_82 : i32
    %c2_i32_83 = arith.constant 2 : i32
    %130 = arith.muli %c2_i32_83, %129 : i32
    %c0_i32_84 = arith.constant 0 : i32
    %131 = arith.addi %130, %c0_i32_84 : i32
    %132 = arith.index_cast %131 : i32 to index
    %c0_85 = arith.constant 0 : index
    %c0_86 = arith.constant 0 : index
    %133 = vector.load %arg1[%132, %c0_85, %c0_86] : memref<18x64x128xbf16, #tpu.memory_space<vmem>>, vector<1x64x128xbf16>
    %134 = vector.shape_cast %133 : vector<1x64x128xbf16> to vector<64x128xbf16>
    %135 = vector.extract_strided_slice %134 {offsets = [0, 0], sizes = [32, 128], strides = [1, 1]} : vector<64x128xbf16> to vector<32x128xbf16>
    %c0_87 = arith.constant 0 : index
    %c0_88 = arith.constant 0 : index
    %136 = vector.load %arg2[%c0_87, %c0_88] : memref<1152x128xbf16, #tpu.memory_space<vmem>>, vector<128x128xbf16>
    %cst_89 = arith.constant dense<0.000000e+00> : vector<32x128xf32>
    %137 = tpu.matmul %135, %136, %cst_89 {dimension_numbers = #tpu.dot_dimension_numbers<[1], [0], [0], [1], [0, 0, 1, 1], [], []>} : vector<32x128xbf16>, vector<128x128xbf16>, vector<32x128xf32> -> vector<32x128xf32>
    %138 = vector.extract_strided_slice %134 {offsets = [24, 0], sizes = [32, 128], strides = [1, 1]} : vector<64x128xbf16> to vector<32x128xbf16>
    %c128_90 = arith.constant 128 : index
    %c0_91 = arith.constant 0 : index
    %139 = vector.load %arg2[%c128_90, %c0_91] : memref<1152x128xbf16, #tpu.memory_space<vmem>>, vector<128x128xbf16>
    %cst_92 = arith.constant dense<0.000000e+00> : vector<32x128xf32>
    %140 = tpu.matmul %138, %139, %cst_92 {dimension_numbers = #tpu.dot_dimension_numbers<[1], [0], [0], [1], [0, 0, 1, 1], [], []>} : vector<32x128xbf16>, vector<128x128xbf16>, vector<32x128xf32> -> vector<32x128xf32>
    %141 = arith.addf %137, %140 : vector<32x128xf32>
    %142 = vector.extract_strided_slice %134 {offsets = [1, 0], sizes = [32, 128], strides = [1, 1]} : vector<64x128xbf16> to vector<32x128xbf16>
    %c256_93 = arith.constant 256 : index
    %c0_94 = arith.constant 0 : index
    %143 = vector.load %arg2[%c256_93, %c0_94] : memref<1152x128xbf16, #tpu.memory_space<vmem>>, vector<128x128xbf16>
    %cst_95 = arith.constant dense<0.000000e+00> : vector<32x128xf32>
    %144 = tpu.matmul %142, %143, %cst_95 {dimension_numbers = #tpu.dot_dimension_numbers<[1], [0], [0], [1], [0, 0, 1, 1], [], []>} : vector<32x128xbf16>, vector<128x128xbf16>, vector<32x128xf32> -> vector<32x128xf32>
    %145 = arith.addf %141, %144 : vector<32x128xf32>
    %c2_i32_96 = arith.constant 2 : i32
    %146 = arith.addi %0, %c2_i32_96 : i32
    %c2_i32_97 = arith.constant 2 : i32
    %147 = arith.muli %c2_i32_97, %146 : i32
    %c1_i32_98 = arith.constant 1 : i32
    %148 = arith.addi %147, %c1_i32_98 : i32
    %149 = arith.index_cast %148 : i32 to index
    %c0_99 = arith.constant 0 : index
    %c0_100 = arith.constant 0 : index
    %150 = vector.load %arg1[%149, %c0_99, %c0_100] : memref<18x64x128xbf16, #tpu.memory_space<vmem>>, vector<1x64x128xbf16>
    %151 = vector.shape_cast %150 : vector<1x64x128xbf16> to vector<64x128xbf16>
    %152 = vector.extract_strided_slice %151 {offsets = [0, 0], sizes = [32, 128], strides = [1, 1]} : vector<64x128xbf16> to vector<32x128xbf16>
    %c384_101 = arith.constant 384 : index
    %c0_102 = arith.constant 0 : index
    %153 = vector.load %arg2[%c384_101, %c0_102] : memref<1152x128xbf16, #tpu.memory_space<vmem>>, vector<128x128xbf16>
    %cst_103 = arith.constant dense<0.000000e+00> : vector<32x128xf32>
    %154 = tpu.matmul %152, %153, %cst_103 {dimension_numbers = #tpu.dot_dimension_numbers<[1], [0], [0], [1], [0, 0, 1, 1], [], []>} : vector<32x128xbf16>, vector<128x128xbf16>, vector<32x128xf32> -> vector<32x128xf32>
    %155 = arith.addf %145, %154 : vector<32x128xf32>
    %156 = vector.extract_strided_slice %151 {offsets = [24, 0], sizes = [32, 128], strides = [1, 1]} : vector<64x128xbf16> to vector<32x128xbf16>
    %c512_104 = arith.constant 512 : index
    %c0_105 = arith.constant 0 : index
    %157 = vector.load %arg2[%c512_104, %c0_105] : memref<1152x128xbf16, #tpu.memory_space<vmem>>, vector<128x128xbf16>
    %cst_106 = arith.constant dense<0.000000e+00> : vector<32x128xf32>
    %158 = tpu.matmul %156, %157, %cst_106 {dimension_numbers = #tpu.dot_dimension_numbers<[1], [0], [0], [1], [0, 0, 1, 1], [], []>} : vector<32x128xbf16>, vector<128x128xbf16>, vector<32x128xf32> -> vector<32x128xf32>
    %159 = arith.addf %155, %158 : vector<32x128xf32>
    %160 = vector.extract_strided_slice %151 {offsets = [1, 0], sizes = [32, 128], strides = [1, 1]} : vector<64x128xbf16> to vector<32x128xbf16>
    %c640_107 = arith.constant 640 : index
    %c0_108 = arith.constant 0 : index
    %161 = vector.load %arg2[%c640_107, %c0_108] : memref<1152x128xbf16, #tpu.memory_space<vmem>>, vector<128x128xbf16>
    %cst_109 = arith.constant dense<0.000000e+00> : vector<32x128xf32>
    %162 = tpu.matmul %160, %161, %cst_109 {dimension_numbers = #tpu.dot_dimension_numbers<[1], [0], [0], [1], [0, 0, 1, 1], [], []>} : vector<32x128xbf16>, vector<128x128xbf16>, vector<32x128xf32> -> vector<32x128xf32>
    %163 = arith.addf %159, %162 : vector<32x128xf32>
    %c2_i32_110 = arith.constant 2 : i32
    %164 = arith.addi %0, %c2_i32_110 : i32
    %c2_i32_111 = arith.constant 2 : i32
    %165 = arith.muli %c2_i32_111, %164 : i32
    %c2_i32_112 = arith.constant 2 : i32
    %166 = arith.addi %165, %c2_i32_112 : i32
    %167 = arith.index_cast %166 : i32 to index
    %c0_113 = arith.constant 0 : index
    %c0_114 = arith.constant 0 : index
    %168 = vector.load %arg1[%167, %c0_113, %c0_114] : memref<18x64x128xbf16, #tpu.memory_space<vmem>>, vector<1x64x128xbf16>
    %169 = vector.shape_cast %168 : vector<1x64x128xbf16> to vector<64x128xbf16>
    %170 = vector.extract_strided_slice %169 {offsets = [0, 0], sizes = [32, 128], strides = [1, 1]} : vector<64x128xbf16> to vector<32x128xbf16>
    %c768_115 = arith.constant 768 : index
    %c0_116 = arith.constant 0 : index
    %171 = vector.load %arg2[%c768_115, %c0_116] : memref<1152x128xbf16, #tpu.memory_space<vmem>>, vector<128x128xbf16>
    %cst_117 = arith.constant dense<0.000000e+00> : vector<32x128xf32>
    %172 = tpu.matmul %170, %171, %cst_117 {dimension_numbers = #tpu.dot_dimension_numbers<[1], [0], [0], [1], [0, 0, 1, 1], [], []>} : vector<32x128xbf16>, vector<128x128xbf16>, vector<32x128xf32> -> vector<32x128xf32>
    %173 = arith.addf %163, %172 : vector<32x128xf32>
    %174 = vector.extract_strided_slice %169 {offsets = [24, 0], sizes = [32, 128], strides = [1, 1]} : vector<64x128xbf16> to vector<32x128xbf16>
    %c896_118 = arith.constant 896 : index
    %c0_119 = arith.constant 0 : index
    %175 = vector.load %arg2[%c896_118, %c0_119] : memref<1152x128xbf16, #tpu.memory_space<vmem>>, vector<128x128xbf16>
    %cst_120 = arith.constant dense<0.000000e+00> : vector<32x128xf32>
    %176 = tpu.matmul %174, %175, %cst_120 {dimension_numbers = #tpu.dot_dimension_numbers<[1], [0], [0], [1], [0, 0, 1, 1], [], []>} : vector<32x128xbf16>, vector<128x128xbf16>, vector<32x128xf32> -> vector<32x128xf32>
    %177 = arith.addf %173, %176 : vector<32x128xf32>
    %178 = vector.extract_strided_slice %169 {offsets = [1, 0], sizes = [32, 128], strides = [1, 1]} : vector<64x128xbf16> to vector<32x128xbf16>
    %c1024_121 = arith.constant 1024 : index
    %c0_122 = arith.constant 0 : index
    %179 = vector.load %arg2[%c1024_121, %c0_122] : memref<1152x128xbf16, #tpu.memory_space<vmem>>, vector<128x128xbf16>
    %cst_123 = arith.constant dense<0.000000e+00> : vector<32x128xf32>
    %180 = tpu.matmul %178, %179, %cst_123 {dimension_numbers = #tpu.dot_dimension_numbers<[1], [0], [0], [1], [0, 0, 1, 1], [], []>} : vector<32x128xbf16>, vector<128x128xbf16>, vector<32x128xf32> -> vector<32x128xf32>
    %181 = arith.addf %177, %180 : vector<32x128xf32>
    %182 = vector.broadcast %1 : vector<1x128xf32> to vector<32x128xf32>
    %183 = arith.addf %181, %182 : vector<32x128xf32>
    %cst_124 = arith.constant 0.000000e+00 : f32
    %184 = vector.broadcast %cst_124 : f32 to vector<32x128xf32>
    %185 = arith.maximumf %183, %184 : vector<32x128xf32>
    %186 = vector.broadcast %2 : vector<32x1xf32> to vector<32x128xf32>
    %187 = arith.mulf %185, %186 : vector<32x128xf32>
    %188 = arith.truncf %187 : vector<32x128xf32> to vector<32x128xbf16>
    %c2 = arith.constant 2 : index
    %c0_125 = arith.constant 0 : index
    %c0_126 = arith.constant 0 : index
    %189 = vector.load %arg5[%c2, %c0_125, %c0_126] : memref<4x32x128xbf16, #tpu.memory_space<vmem>>, vector<1x32x128xbf16>
    %190 = vector.shape_cast %189 : vector<1x32x128xbf16> to vector<32x128xbf16>
    %191 = vector.shape_cast %188 : vector<32x128xbf16> to vector<1x32x128xbf16>
    tpu.vector_store %arg5[%c2, %c0_125, %c0_126], %191 {strides = array<i32>} : memref<4x32x128xbf16, #tpu.memory_space<vmem>>, vector<1x32x128xbf16>,
    %c3_i32 = arith.constant 3 : i32
    %192 = arith.addi %0, %c3_i32 : i32
    %c2_i32_127 = arith.constant 2 : i32
    %193 = arith.muli %c2_i32_127, %192 : i32
    %c0_i32_128 = arith.constant 0 : i32
    %194 = arith.addi %193, %c0_i32_128 : i32
    %195 = arith.index_cast %194 : i32 to index
    %c0_129 = arith.constant 0 : index
    %c0_130 = arith.constant 0 : index
    %196 = vector.load %arg1[%195, %c0_129, %c0_130] : memref<18x64x128xbf16, #tpu.memory_space<vmem>>, vector<1x64x128xbf16>
    %197 = vector.shape_cast %196 : vector<1x64x128xbf16> to vector<64x128xbf16>
    %198 = vector.extract_strided_slice %197 {offsets = [0, 0], sizes = [32, 128], strides = [1, 1]} : vector<64x128xbf16> to vector<32x128xbf16>
    %c0_131 = arith.constant 0 : index
    %c0_132 = arith.constant 0 : index
    %199 = vector.load %arg2[%c0_131, %c0_132] : memref<1152x128xbf16, #tpu.memory_space<vmem>>, vector<128x128xbf16>
    %cst_133 = arith.constant dense<0.000000e+00> : vector<32x128xf32>
    %200 = tpu.matmul %198, %199, %cst_133 {dimension_numbers = #tpu.dot_dimension_numbers<[1], [0], [0], [1], [0, 0, 1, 1], [], []>} : vector<32x128xbf16>, vector<128x128xbf16>, vector<32x128xf32> -> vector<32x128xf32>
    %201 = vector.extract_strided_slice %197 {offsets = [24, 0], sizes = [32, 128], strides = [1, 1]} : vector<64x128xbf16> to vector<32x128xbf16>
    %c128_134 = arith.constant 128 : index
    %c0_135 = arith.constant 0 : index
    %202 = vector.load %arg2[%c128_134, %c0_135] : memref<1152x128xbf16, #tpu.memory_space<vmem>>, vector<128x128xbf16>
    %cst_136 = arith.constant dense<0.000000e+00> : vector<32x128xf32>
    %203 = tpu.matmul %201, %202, %cst_136 {dimension_numbers = #tpu.dot_dimension_numbers<[1], [0], [0], [1], [0, 0, 1, 1], [], []>} : vector<32x128xbf16>, vector<128x128xbf16>, vector<32x128xf32> -> vector<32x128xf32>
    %204 = arith.addf %200, %203 : vector<32x128xf32>
    %205 = vector.extract_strided_slice %197 {offsets = [1, 0], sizes = [32, 128], strides = [1, 1]} : vector<64x128xbf16> to vector<32x128xbf16>
    %c256_137 = arith.constant 256 : index
    %c0_138 = arith.constant 0 : index
    %206 = vector.load %arg2[%c256_137, %c0_138] : memref<1152x128xbf16, #tpu.memory_space<vmem>>, vector<128x128xbf16>
    %cst_139 = arith.constant dense<0.000000e+00> : vector<32x128xf32>
    %207 = tpu.matmul %205, %206, %cst_139 {dimension_numbers = #tpu.dot_dimension_numbers<[1], [0], [0], [1], [0, 0, 1, 1], [], []>} : vector<32x128xbf16>, vector<128x128xbf16>, vector<32x128xf32> -> vector<32x128xf32>
    %208 = arith.addf %204, %207 : vector<32x128xf32>
    %c3_i32_140 = arith.constant 3 : i32
    %209 = arith.addi %0, %c3_i32_140 : i32
    %c2_i32_141 = arith.constant 2 : i32
    %210 = arith.muli %c2_i32_141, %209 : i32
    %c1_i32_142 = arith.constant 1 : i32
    %211 = arith.addi %210, %c1_i32_142 : i32
    %212 = arith.index_cast %211 : i32 to index
    %c0_143 = arith.constant 0 : index
    %c0_144 = arith.constant 0 : index
    %213 = vector.load %arg1[%212, %c0_143, %c0_144] : memref<18x64x128xbf16, #tpu.memory_space<vmem>>, vector<1x64x128xbf16>
    %214 = vector.shape_cast %213 : vector<1x64x128xbf16> to vector<64x128xbf16>
    %215 = vector.extract_strided_slice %214 {offsets = [0, 0], sizes = [32, 128], strides = [1, 1]} : vector<64x128xbf16> to vector<32x128xbf16>
    %c384_145 = arith.constant 384 : index
    %c0_146 = arith.constant 0 : index
    %216 = vector.load %arg2[%c384_145, %c0_146] : memref<1152x128xbf16, #tpu.memory_space<vmem>>, vector<128x128xbf16>
    %cst_147 = arith.constant dense<0.000000e+00> : vector<32x128xf32>
    %217 = tpu.matmul %215, %216, %cst_147 {dimension_numbers = #tpu.dot_dimension_numbers<[1], [0], [0], [1], [0, 0, 1, 1], [], []>} : vector<32x128xbf16>, vector<128x128xbf16>, vector<32x128xf32> -> vector<32x128xf32>
    %218 = arith.addf %208, %217 : vector<32x128xf32>
    %219 = vector.extract_strided_slice %214 {offsets = [24, 0], sizes = [32, 128], strides = [1, 1]} : vector<64x128xbf16> to vector<32x128xbf16>
    %c512_148 = arith.constant 512 : index
    %c0_149 = arith.constant 0 : index
    %220 = vector.load %arg2[%c512_148, %c0_149] : memref<1152x128xbf16, #tpu.memory_space<vmem>>, vector<128x128xbf16>
    %cst_150 = arith.constant dense<0.000000e+00> : vector<32x128xf32>
    %221 = tpu.matmul %219, %220, %cst_150 {dimension_numbers = #tpu.dot_dimension_numbers<[1], [0], [0], [1], [0, 0, 1, 1], [], []>} : vector<32x128xbf16>, vector<128x128xbf16>, vector<32x128xf32> -> vector<32x128xf32>
    %222 = arith.addf %218, %221 : vector<32x128xf32>
    %223 = vector.extract_strided_slice %214 {offsets = [1, 0], sizes = [32, 128], strides = [1, 1]} : vector<64x128xbf16> to vector<32x128xbf16>
    %c640_151 = arith.constant 640 : index
    %c0_152 = arith.constant 0 : index
    %224 = vector.load %arg2[%c640_151, %c0_152] : memref<1152x128xbf16, #tpu.memory_space<vmem>>, vector<128x128xbf16>
    %cst_153 = arith.constant dense<0.000000e+00> : vector<32x128xf32>
    %225 = tpu.matmul %223, %224, %cst_153 {dimension_numbers = #tpu.dot_dimension_numbers<[1], [0], [0], [1], [0, 0, 1, 1], [], []>} : vector<32x128xbf16>, vector<128x128xbf16>, vector<32x128xf32> -> vector<32x128xf32>
    %226 = arith.addf %222, %225 : vector<32x128xf32>
    %c3_i32_154 = arith.constant 3 : i32
    %227 = arith.addi %0, %c3_i32_154 : i32
    %c2_i32_155 = arith.constant 2 : i32
    %228 = arith.muli %c2_i32_155, %227 : i32
    %c2_i32_156 = arith.constant 2 : i32
    %229 = arith.addi %228, %c2_i32_156 : i32
    %230 = arith.index_cast %229 : i32 to index
    %c0_157 = arith.constant 0 : index
    %c0_158 = arith.constant 0 : index
    %231 = vector.load %arg1[%230, %c0_157, %c0_158] : memref<18x64x128xbf16, #tpu.memory_space<vmem>>, vector<1x64x128xbf16>
    %232 = vector.shape_cast %231 : vector<1x64x128xbf16> to vector<64x128xbf16>
    %233 = vector.extract_strided_slice %232 {offsets = [0, 0], sizes = [32, 128], strides = [1, 1]} : vector<64x128xbf16> to vector<32x128xbf16>
    %c768_159 = arith.constant 768 : index
    %c0_160 = arith.constant 0 : index
    %234 = vector.load %arg2[%c768_159, %c0_160] : memref<1152x128xbf16, #tpu.memory_space<vmem>>, vector<128x128xbf16>
    %cst_161 = arith.constant dense<0.000000e+00> : vector<32x128xf32>
    %235 = tpu.matmul %233, %234, %cst_161 {dimension_numbers = #tpu.dot_dimension_numbers<[1], [0], [0], [1], [0, 0, 1, 1], [], []>} : vector<32x128xbf16>, vector<128x128xbf16>, vector<32x128xf32> -> vector<32x128xf32>
    %236 = arith.addf %226, %235 : vector<32x128xf32>
    %237 = vector.extract_strided_slice %232 {offsets = [24, 0], sizes = [32, 128], strides = [1, 1]} : vector<64x128xbf16> to vector<32x128xbf16>
    %c896_162 = arith.constant 896 : index
    %c0_163 = arith.constant 0 : index
    %238 = vector.load %arg2[%c896_162, %c0_163] : memref<1152x128xbf16, #tpu.memory_space<vmem>>, vector<128x128xbf16>
    %cst_164 = arith.constant dense<0.000000e+00> : vector<32x128xf32>
    %239 = tpu.matmul %237, %238, %cst_164 {dimension_numbers = #tpu.dot_dimension_numbers<[1], [0], [0], [1], [0, 0, 1, 1], [], []>} : vector<32x128xbf16>, vector<128x128xbf16>, vector<32x128xf32> -> vector<32x128xf32>
    %240 = arith.addf %236, %239 : vector<32x128xf32>
    %241 = vector.extract_strided_slice %232 {offsets = [1, 0], sizes = [32, 128], strides = [1, 1]} : vector<64x128xbf16> to vector<32x128xbf16>
    %c1024_165 = arith.constant 1024 : index
    %c0_166 = arith.constant 0 : index
    %242 = vector.load %arg2[%c1024_165, %c0_166] : memref<1152x128xbf16, #tpu.memory_space<vmem>>, vector<128x128xbf16>
    %cst_167 = arith.constant dense<0.000000e+00> : vector<32x128xf32>
    %243 = tpu.matmul %241, %242, %cst_167 {dimension_numbers = #tpu.dot_dimension_numbers<[1], [0], [0], [1], [0, 0, 1, 1], [], []>} : vector<32x128xbf16>, vector<128x128xbf16>, vector<32x128xf32> -> vector<32x128xf32>
    %244 = arith.addf %240, %243 : vector<32x128xf32>
    %245 = vector.broadcast %1 : vector<1x128xf32> to vector<32x128xf32>
    %246 = arith.addf %244, %245 : vector<32x128xf32>
    %cst_168 = arith.constant 0.000000e+00 : f32
    %247 = vector.broadcast %cst_168 : f32 to vector<32x128xf32>
    %248 = arith.maximumf %246, %247 : vector<32x128xf32>
    %249 = vector.broadcast %2 : vector<32x1xf32> to vector<32x128xf32>
    %250 = arith.mulf %248, %249 : vector<32x128xf32>
    %251 = arith.truncf %250 : vector<32x128xf32> to vector<32x128xbf16>
    %c3 = arith.constant 3 : index
    %c0_169 = arith.constant 0 : index
    %c0_170 = arith.constant 0 : index
    %252 = vector.load %arg5[%c3, %c0_169, %c0_170] : memref<4x32x128xbf16, #tpu.memory_space<vmem>>, vector<1x32x128xbf16>
    %253 = vector.shape_cast %252 : vector<1x32x128xbf16> to vector<32x128xbf16>
    %254 = vector.shape_cast %251 : vector<32x128xbf16> to vector<1x32x128xbf16>
    tpu.vector_store %arg5[%c3, %c0_169, %c0_170], %254 {strides = array<i32>} : memref<4x32x128xbf16, #tpu.memory_space<vmem>>, vector<1x32x128xbf16>,
    return
  }
  func.func @transform_0(%arg0: i32) -> (i32, i32, i32) {
    %c0_i32 = arith.constant 0 : i32
    %c0_i32_0 = arith.constant 0 : i32
    %c0_i32_1 = arith.constant 0 : i32
    %c0_i32_2 = arith.constant 0 : i32
    return %c0_i32, %c0_i32_0, %c0_i32_1 : i32, i32, i32
  }
  func.func @transform_1(%arg0: i32) -> (i32, i32) {
    %c0_i32 = arith.constant 0 : i32
    %c0_i32_0 = arith.constant 0 : i32
    %c0_i32_1 = arith.constant 0 : i32
    return %c0_i32, %c0_i32_0 : i32, i32
  }
  func.func @transform_2(%arg0: i32) -> (i32, i32) {
    %c0_i32 = arith.constant 0 : i32
    %c0_i32_0 = arith.constant 0 : i32
    %c0_i32_1 = arith.constant 0 : i32
    return %c0_i32, %c0_i32_0 : i32, i32
  }
  func.func @transform_3(%arg0: i32) -> (i32, i32) {
    %c0_i32 = arith.constant 0 : i32
    %c0_i32_0 = arith.constant 0 : i32
    %c0_i32_1 = arith.constant 0 : i32
    return %c0_i32, %c0_i32_0 : i32, i32
  }
  func.func @transform_4(%arg0: i32) -> (i32, i32, i32) {
    %c0_i32 = arith.constant 0 : i32
    %c0_i32_0 = arith.constant 0 : i32
    %c0_i32_1 = arith.constant 0 : i32
    return %arg0, %c0_i32, %c0_i32_0 : i32, i32, i32
  }
}

</mosaic_0001>

<llo_original>
// kernel: tpu_custom_call.1
$region0: #{tpu_custom_call.1}
  #allocation0 [shape = 'u32[]', space=smem, size = 0x4, offset = 0x4, fixed_abs, tag = 'smem constant byte address 0x4 - core index']
  #allocation1 [shape = 'u32[144,128]{1,0:T(1,128)}', space=vmem, size = 0x12000, scoped, tag = 'internal scratch']
  %s0 = inlined_call_operand.hbm [shape: bf16[18,64,128], index: 0, kind: input, shape index: {}]
  %s1 = inlined_call_operand.hbm [shape: bf16[1152,128], index: 1, kind: input, shape index: {}]
  %s2 = inlined_call_operand.vmem [shape: f32[1,128], index: 2, kind: input, shape index: {}]
  %s3 = inlined_call_operand.vmem [shape: f32[32,1], index: 3, kind: input, shape index: {}]
  %s4 = inlined_call_operand.hbm [shape: bf16[8,32,128], index: 4, kind: output, shape index: {}]
  %s5 = sld [smem:[#allocation0]]
  $region57: #{tpu_custom_call.1} parent=0
    _
  %s7 = ssub.s32 1, %s5
  %s8 = scalar_select 0, %s7, %s5
  $region1: #{tpu_custom_call.1} parent=0
    #allocation2 [shape = 'u8[294912]{0}', space=vmem, size = 0x48000, scoped, tag = 'input window, operand 0, single buffered']
    #allocation3 [shape = 's32[2]{0}', space=sflag, size = 0x8, scoped, tag = 'scoped memory for tpu_custom_call.1']
    #allocation4 [shape = 's32[2]{0}', space=sflag, size = 0x8, scoped, tag = 'scoped memory for tpu_custom_call.1']
    #allocation5 [shape = 'u8[294912]{0}', space=vmem, size = 0x48000, scoped, tag = 'input window, operand 1, single buffered']
    #allocation6 [shape = 's32[1]{0}', space=sflag, size = 0x4, scoped, tag = 'scoped memory for tpu_custom_call.1']
    #allocation7 [shape = 'u8[65536]{0}', space=vmem, size = 0x10000, scoped, tag = 'output window, operand 0']
    %9 = vsyncpa [#allocation3], 0
    %10 = vsyncpa [#allocation6], 0
    %11 = vsyncpa [#allocation4], 0
    %s12 = scalar_lea.sflag [#allocation4], 1
    %13 = vsyncpa %s12, 0
    loop: start=0, step=1, limit=4
    $region2: #{tpu_custom_call.1} parent=1 // loop_pre_header
      _
    $region3: #{tpu_custom_call.1} parent=1 // loop_header
      %s15 = sphi 0, %s19
      %p16 = scmp.ge.s32.totalorder %s15, 4
      %s23 = sphi 0, %s23
      %s25 = sphi 0, %s23
      %s26 = sphi 0, %s25
      %s40 = sphi 0, %s26
      %s44 = sphi 0, %s44
      %s46 = sphi 0, %s44
      %s47 = sphi 0, %s46
      %s61 = sphi 0, %s47
      %s65 = sphi 0, %s65
      %s67 = sphi 0, %s65
      %s68 = sphi 0, %s67
      %s82 = sphi 0, %s68
      %s86 = sphi 0, %s86
      %s88 = sphi 0, %s86
      %s89 = sphi 0, %s88
      %s103 = sphi 0, %s89
      %s109 = sphi 0, %s111
      %s112 = sphi 0, %s109
      %s113 = sphi 0, %s112
      %s129 = sphi 0, %s113
    $region4: #{tpu_custom_call.1} parent=1 // loop_header_branch
      %18 = sbr.rel (%p16) target = $region8
    $region5: #{tpu_custom_call.1} parent=1 // loop_body
      %s20 = ssub.s32 %s15, 1
      %s21 = ssub.s32 %s15, 2
      %s22 = sadd.s32 %s15, 1
      %s24 = sadd.s32 %s23, 1
      %p27 = scmp.eq.s32.totalorder %s15, 1
      %p28 = scmp.ne.s32.totalorder %s23, %s25
      %p29 = scmp.eq.s32.totalorder %s15, 0
      %p30 = por %p28, %p29
      %p31 = scmp.ne.s32.totalorder %s23, %s25
      %p32 = scmp.eq.s32.totalorder %s20, 1
      %p33 = por %p31, %p32
      %p34 = scmp.ne.s32.totalorder %s25, %s26
      %p35 = scmp.eq.s32.totalorder %s20, 0
      %p36 = por %p34, %p35
      %p37 = scmp.ne.s32.totalorder %s25, %s26
      %p38 = scmp.eq.s32.totalorder %s21, 1
      %p39 = por %p37, %p38
      %p41 = scmp.ne.s32.totalorder %s26, %s40
      %p42 = scmp.eq.s32.totalorder %s21, 0
      %p43 = por %p41, %p42
      %s45 = sadd.s32 %s44, 1
      %p48 = scmp.eq.s32.totalorder %s15, 1
      %p49 = scmp.ne.s32.totalorder %s44, %s46
      %p50 = scmp.eq.s32.totalorder %s15, 0
      %p51 = por %p49, %p50
      %p52 = scmp.ne.s32.totalorder %s44, %s46
      %p53 = scmp.eq.s32.totalorder %s20, 1
      %p54 = por %p52, %p53
      %p55 = scmp.ne.s32.totalorder %s46, %s47
      %p56 = scmp.eq.s32.totalorder %s20, 0
      %p57 = por %p55, %p56
      %p58 = scmp.ne.s32.totalorder %s46, %s47
      %p59 = scmp.eq.s32.totalorder %s21, 1
      %p60 = por %p58, %p59
      %p62 = scmp.ne.s32.totalorder %s47, %s61
      %p63 = scmp.eq.s32.totalorder %s21, 0
      %p64 = por %p62, %p63
      %s66 = sadd.s32 %s65, 1
      %p69 = scmp.eq.s32.totalorder %s15, 1
      %p70 = scmp.ne.s32.totalorder %s65, %s67
      %p71 = scmp.eq.s32.totalorder %s15, 0
      %p72 = por %p70, %p71
      %p73 = scmp.ne.s32.totalorder %s65, %s67
      %p74 = scmp.eq.s32.totalorder %s20, 1
      %p75 = por %p73, %p74
      %p76 = scmp.ne.s32.totalorder %s67, %s68
      %p77 = scmp.eq.s32.totalorder %s20, 0
      %p78 = por %p76, %p77
      %p79 = scmp.ne.s32.totalorder %s67, %s68
      %p80 = scmp.eq.s32.totalorder %s21, 1
      %p81 = por %p79, %p80
      %p83 = scmp.ne.s32.totalorder %s68, %s82
      %p84 = scmp.eq.s32.totalorder %s21, 0
      %p85 = por %p83, %p84
      %s87 = sadd.s32 %s86, 1
      %p90 = scmp.eq.s32.totalorder %s15, 1
      %p91 = scmp.ne.s32.totalorder %s86, %s88
      %p92 = scmp.eq.s32.totalorder %s15, 0
      %p93 = por %p91, %p92
      %p94 = scmp.ne.s32.totalorder %s86, %s88
      %p95 = scmp.eq.s32.totalorder %s20, 1
      %p96 = por %p94, %p95
      %p97 = scmp.ne.s32.totalorder %s88, %s89
      %p98 = scmp.eq.s32.totalorder %s20, 0
      %p99 = por %p97, %p98
      %p100 = scmp.ne.s32.totalorder %s88, %s89
      %p101 = scmp.eq.s32.totalorder %s21, 1
      %p102 = por %p100, %p101
      %p104 = scmp.ne.s32.totalorder %s89, %s103
      %p105 = scmp.eq.s32.totalorder %s21, 0
      %p106 = por %p104, %p105
      %s107 = ssub.s32 %s15, %s22
      %p108 = scmp.eq.s32.totalorder %s107, 0
      %s110 = sadd.s32 %s109, 1
      %s111 = scalar_select %p108, %s109, %s110
      %p114 = pneg %p108
      %p115 = scmp.eq.s32.totalorder %s15, 1
      %p116 = por %p114, %p115
      %p117 = scmp.ne.s32.totalorder %s109, %s112
      %p118 = scmp.eq.s32.totalorder %s15, 0
      %p119 = por %p117, %p118
      %p120 = scmp.ne.s32.totalorder %s109, %s112
      %p121 = scmp.eq.s32.totalorder %s20, 1
      %p122 = por %p120, %p121
      %p123 = scmp.ne.s32.totalorder %s112, %s113
      %p124 = scmp.eq.s32.totalorder %s20, 0
      %p125 = por %p123, %p124
      %p126 = scmp.ne.s32.totalorder %s112, %s113
      %p127 = scmp.eq.s32.totalorder %s21, 1
      %p128 = por %p126, %p127
      %p130 = scmp.ne.s32.totalorder %s113, %s129
      %p131 = scmp.eq.s32.totalorder %s21, 0
      %p132 = por %p130, %p131
      %p133 = scmp.le.s32.totalorder 1, %s15
      %p134 = scmp.lt.s32.totalorder %s15, 3
      %p135 = pnand %p133, %p134
      %p136 = pneg %p135
      // Predicated region
      $region9: #{tpu_custom_call.1} parent=5 // pred_check
        _
      $region10: #{tpu_custom_call.1} parent=5 // pred_check_branch
        %138 = sbr.rel (%p135) target = $region12
      $region11: #{tpu_custom_call.1} parent=5 // pred_region
        %s139 = ssub.s32 %s15, 1
        // Predicated region
        $region13: #{tpu_custom_call.1} parent=11 // pred_check
          %p140 = pneg %p36
        $region14: #{tpu_custom_call.1} parent=11 // pred_check_branch
          %142 = sbr.rel (%p140) target = $region16
        $region15: #{tpu_custom_call.1} parent=11 // pred_region
          %s144 = ssub.s32 9216, 9216
          %145 = vsyncadd [#allocation3], %s144
          %s146 = sshll.u32 [#allocation2], 4
          %s147 = int_to_ptr.vmem [resolvable:$true] %s146
          %152 = dma.hbm_to_vmem [thread:$0]  %s0, 9216, %s147, [#allocation3], 64, 64, 4
        $region16: #{tpu_custom_call.1} parent=11 // pred_fallthru
          _
        // Predicated region
        $region17: #{tpu_custom_call.1} parent=11 // pred_check
          %p153 = pneg %p57
        $region18: #{tpu_custom_call.1} parent=11 // pred_check_branch
          %155 = sbr.rel (%p153) target = $region20
        $region19: #{tpu_custom_call.1} parent=11 // pred_region
          %s157 = ssub.s32 9216, 9216
          %158 = vsyncadd [#allocation6], %s157
          %s159 = sshll.u32 [#allocation5], 4
          %s160 = int_to_ptr.vmem [resolvable:$true] %s159
          %165 = dma.hbm_to_vmem [thread:$0]  %s1, 9216, %s160, [#allocation6], 64, 64, 4
        $region20: #{tpu_custom_call.1} parent=11 // pred_fallthru
          _
        // Predicated region
        $region21: #{tpu_custom_call.1} parent=11 // pred_check
          %p166 = pneg %p78
        $region22: #{tpu_custom_call.1} parent=11 // pred_check_branch
          %168 = sbr.rel (%p166) target = $region24
        $region23: #{tpu_custom_call.1} parent=11 // pred_region
          _
        $region24: #{tpu_custom_call.1} parent=11 // pred_fallthru
          _
        // Predicated region
        $region25: #{tpu_custom_call.1} parent=11 // pred_check
          %p169 = pneg %p99
        $region26: #{tpu_custom_call.1} parent=11 // pred_check_branch
          %171 = sbr.rel (%p169) target = $region28
        $region27: #{tpu_custom_call.1} parent=11 // pred_region
          _
        $region28: #{tpu_custom_call.1} parent=11 // pred_fallthru
          _
      $region12: #{tpu_custom_call.1} parent=5 // pred_fallthru
        _
      %p172 = scmp.lt.s32.totalorder %s15, 2
      // Predicated region
      $region29: #{tpu_custom_call.1} parent=5 // pred_check
        %p173 = pneg %p172
      $region30: #{tpu_custom_call.1} parent=5 // pred_check_branch
        %175 = sbr.rel (%p173) target = $region32
      $region31: #{tpu_custom_call.1} parent=5 // pred_region
        _
      $region32: #{tpu_custom_call.1} parent=5 // pred_fallthru
        _
      %p176 = scmp.le.s32.totalorder 1, %s15
      %p177 = scmp.lt.s32.totalorder %s15, 3
      %p178 = pnand %p176, %p177
      %p179 = pneg %p178
      // Predicated region
      $region33: #{tpu_custom_call.1} parent=5 // pred_check
        _
      $region34: #{tpu_custom_call.1} parent=5 // pred_check_branch
        %181 = sbr.rel (%p178) target = $region36
      $region35: #{tpu_custom_call.1} parent=5 // pred_region
        %s182 = ssub.s32 %s15, 1
        // Predicated region
        $region37: #{tpu_custom_call.1} parent=35 // pred_check
          %p183 = pneg %p36
        $region38: #{tpu_custom_call.1} parent=35 // pred_check_branch
          %185 = sbr.rel (%p183) target = $region40
        $region39: #{tpu_custom_call.1} parent=35 // pred_region
          %186 = dma.done [#allocation3], 9216
        $region40: #{tpu_custom_call.1} parent=35 // pred_fallthru
          _
        // Predicated region
        $region41: #{tpu_custom_call.1} parent=35 // pred_check
          %p187 = pneg %p57
        $region42: #{tpu_custom_call.1} parent=35 // pred_check_branch
          %189 = sbr.rel (%p187) target = $region44
        $region43: #{tpu_custom_call.1} parent=35 // pred_region
          %190 = dma.done [#allocation6], 9216
        $region44: #{tpu_custom_call.1} parent=35 // pred_fallthru
          _
        %p191 = pneg %p36
        %p192 = pneg %p33
        %p193 = pneg %p57
        %p194 = pneg %p54
        %p195 = pneg %p78
        %p196 = pneg %p75
        %p197 = pneg %p99
        %p198 = pneg %p96
        %p199 = pneg %p125
        %p200 = pneg %p122
        %s201 = sand.u32 %s112, 1
        %s202 = scalar_lea.sflag [#allocation4], %s201
        %s203 = sand.u32 %s112, 1
        %s204 = smul.addr %s203, 64
        %s205 = scalar_lea.vmem [#allocation7], %s204
        %s206 = smul.u32 4, %s20
        %s208 = smul.u32 %s20, 4
        %v209 = vld [vmem:[%s2] sm:$0x1]
        %v210 = vld [vmem:[%s3] sm:$0xff]
        %v211 = vld [vmem:[%s3 + $0x8] sm:$0xff]
        %v212 = vld [vmem:[%s3 + $0x10] sm:$0xff]
        %v213 = vld [vmem:[%s3 + $0x18] sm:$0xff]
        %s214 = smul.u32 %s20, 8
        %s215 = smul.u32 %s214, 8
        %s216 = smul.addr %s215, 4
        %s217 = scalar_lea.vmem [#allocation2], %s216
        %v218 = vld [vmem:[%s217] sm:$0xf]
        %v219 = vld [vmem:[%s217 + $0x4] sm:$0xf]
        %v220 = vld [vmem:[%s217 + $0x8] sm:$0xf]
        %v221 = vld [vmem:[%s217 + $0xc] sm:$0xf]
        %v222 = vld [vmem:[%s217 + $0x10] sm:$0xf]
        %v223 = vld [vmem:[%s217 + $0x14] sm:$0xf]
        %v224 = vld [vmem:[%s217 + $0x18] sm:$0xf]
        %v225 = vld [vmem:[#allocation5] sm:$0xf]
        %v226 = vld [vmem:[#allocation5 + $0x4] sm:$0xf]
        %v227 = vld [vmem:[#allocation5 + $0x8] sm:$0xf]
        %v228 = vld [vmem:[#allocation5 + $0xc] sm:$0xf]
        %v229 = vld [vmem:[#allocation5 + $0x10] sm:$0xf]
        %v230 = vld [vmem:[#allocation5 + $0x14] sm:$0xf]
        %v231 = vld [vmem:[#allocation5 + $0x18] sm:$0xf]
        %v232 = vld [vmem:[#allocation5 + $0x1c] sm:$0xf]
        %v233 = vld [vmem:[#allocation5 + $0x20] sm:$0xf]
        %v234 = vld [vmem:[#allocation5 + $0x24] sm:$0xf]
        %v235 = vld [vmem:[#allocation5 + $0x28] sm:$0xf]
        %v236 = vld [vmem:[#allocation5 + $0x2c] sm:$0xf]
        %v237 = vld [vmem:[#allocation5 + $0x30] sm:$0xf]
        %v238 = vld [vmem:[#allocation5 + $0x34] sm:$0xf]
        %v239 = vld [vmem:[#allocation5 + $0x38] sm:$0xf]
        %v240 = vld [vmem:[#allocation5 + $0x3c] sm:$0xf]
        %v241 = vld [vmem:[#allocation5 + $0x40] sm:$0xf]
        %v242 = vld [vmem:[#allocation5 + $0x44] sm:$0xf]
        %v243 = vld [vmem:[#allocation5 + $0x48] sm:$0xf]
        %v244 = vld [vmem:[#allocation5 + $0x4c] sm:$0xf]
        %v245 = vld [vmem:[#allocation5 + $0x50] sm:$0xf]
        %v246 = vld [vmem:[#allocation5 + $0x54] sm:$0xf]
        %v247 = vld [vmem:[#allocation5 + $0x58] sm:$0xf]
        %v248 = vld [vmem:[#allocation5 + $0x5c] sm:$0xf]
        %v249 = vld [vmem:[#allocation5 + $0x60] sm:$0xf]
        %v250 = vld [vmem:[#allocation5 + $0x64] sm:$0xf]
        %v251 = vld [vmem:[#allocation5 + $0x68] sm:$0xf]
        %v252 = vld [vmem:[#allocation5 + $0x6c] sm:$0xf]
        %v253 = vld [vmem:[#allocation5 + $0x70] sm:$0xf]
        %v254 = vld [vmem:[#allocation5 + $0x74] sm:$0xf]
        %v255 = vld [vmem:[#allocation5 + $0x78] sm:$0xf]
        %v256 = vld [vmem:[#allocation5 + $0x7c] sm:$0xf]
        %v261 = vunpack.c.l.b16 %v221
        %v262 = vunpack.c.l.b16 %v222
        %v263 = vunpack.c.l.b16 %v223
        %v264 = vunpack.c.l.b16 %v224
        %v265 = vpack.c.b16 %v262, %v261
        %v266 = vpack.c.b16 %v264, %v263
        %v285 = vunpack.c.l.b16 %v241
        %v286 = vunpack.c.l.b16 %v242
        %v287 = vunpack.c.l.b16 %v243
        %v288 = vunpack.c.l.b16 %v244
        %v289 = vunpack.c.l.b16 %v245
        %v290 = vunpack.c.l.b16 %v246
        %v291 = vunpack.c.l.b16 %v247
        %v292 = vunpack.c.l.b16 %v248
        %v293 = vunpack.c.l.b16 %v249
        %v294 = vunpack.c.l.b16 %v250
        %v295 = vunpack.c.l.b16 %v251
        %v296 = vunpack.c.l.b16 %v252
        %v297 = vunpack.c.l.b16 %v253
        %v298 = vunpack.c.l.b16 %v254
        %v299 = vunpack.c.l.b16 %v255
        %v300 = vunpack.c.l.b16 %v256
        %v301 = vpack.c.b16 %v286, %v285
        %v302 = vpack.c.b16 %v288, %v287
        %v303 = vpack.c.b16 %v290, %v289
        %v304 = vpack.c.b16 %v292, %v291
        %v305 = vpack.c.b16 %v294, %v293
        %v306 = vpack.c.b16 %v296, %v295
        %v307 = vpack.c.b16 %v298, %v297
        %v308 = vpack.c.b16 %v300, %v299
        %317 = vmatprep.subr.bf16.mxu0 0
        %318 = vmatpush1.bf16.msra.mxu0 %v301
        %319 = vmatprep.subr.bf16.mxu0 0
        %320 = vmatpush1.bf16.msra.mxu0 %v302
        %321 = vmatprep.subr.bf16.mxu0 0
        %322 = vmatpush1.bf16.msra.mxu0 %v303
        %323 = vmatprep.subr.bf16.mxu0 0
        %324 = vmatpush1.bf16.msra.mxu0 %v304
        %325 = vmatprep.subr.bf16.mxu0 0
        %326 = vmatpush1.bf16.msra.mxu0 %v305
        %327 = vmatprep.subr.bf16.mxu0 0
        %328 = vmatpush1.bf16.msra.mxu0 %v306
        %329 = vmatprep.subr.bf16.mxu0 0
        %330 = vmatpush1.bf16.msra.mxu0 %v307
        %331 = vmatprep.subr.bf16.mxu0 0
        %332 = vmatpush1.bf16.msra.mxu0 %v308
        %333 = vmatprep.subr.bf16.mxu0 0
        %334 = vmatpush1.bf16.msra.mxu0 0
        %335 = vmatprep.subr.bf16.mxu0 0
        %336 = vmatpush1.bf16.msra.mxu0 0
        %337 = vmatprep.subr.bf16.mxu0 0
        %338 = vmatpush1.bf16.msra.mxu0 0
        %339 = vmatprep.subr.bf16.mxu0 0
        %340 = vmatpush1.bf16.msra.mxu0 0
        %341 = vmatprep.subr.bf16.mxu0 0
        %342 = vmatpush1.bf16.msra.mxu0 0
        %343 = vmatprep.subr.bf16.mxu0 0
        %344 = vmatpush1.bf16.msra.mxu0 0
        %345 = vmatprep.subr.bf16.mxu0 0
        %346 = vmatpush1.bf16.msra.mxu0 0
        %347 = vmatprep.subr.bf16.mxu0 0
        %348 = vmatpush1.bf16.msra.mxu0 0
        %349 = vmatprep.mubr.bf16.mxu0 0
        %350 = vmatmul.mubr.bf16.gmra.mrb[0].mxu0 %v265
        %v351 = vpop.f32.mrb[0].mxu0
        %v352 = vadd.f32 0.0, %v351
        %v353 = vpop.f32.mrb[0].mxu0
        %v354 = vpop.f32.mrb[0].mxu0
        %v355 = vadd.f32 0.0, %v354
        %v356 = vpop.f32.mrb[0].mxu0
        %357 = vmatprep.mubr.bf16.mxu0 0
        %358 = vmatmul.mubr.bf16.gmra.mrb[0].mxu0 %v266
        %v359 = vpop.f32.mrb[0].mxu0
        %v360 = vadd.f32 0.0, %v359
        %v361 = vpop.f32.mrb[0].mxu0
        %v362 = vpop.f32.mrb[0].mxu0
        %v363 = vadd.f32 0.0, %v362
        %v364 = vpop.f32.mrb[0].mxu0
        %365 = vdwg.mxu0
        %v369 = vunpack.c.l.b16 %v218
        %v370 = vunpack.c.l.b16 %v219
        %v371 = vunpack.c.l.b16 %v220
        %v372 = vpack.c.b16 %v370, %v369
        %v373 = vpack.c.b16 %v261, %v371
        %v392 = vunpack.c.l.b16 %v225
        %v393 = vunpack.c.l.b16 %v226
        %v394 = vunpack.c.l.b16 %v227
        %v395 = vunpack.c.l.b16 %v228
        %v396 = vunpack.c.l.b16 %v229
        %v397 = vunpack.c.l.b16 %v230
        %v398 = vunpack.c.l.b16 %v231
        %v399 = vunpack.c.l.b16 %v232
        %v400 = vunpack.c.l.b16 %v233
        %v401 = vunpack.c.l.b16 %v234
        %v402 = vunpack.c.l.b16 %v235
        %v403 = vunpack.c.l.b16 %v236
        %v404 = vunpack.c.l.b16 %v237
        %v405 = vunpack.c.l.b16 %v238
        %v406 = vunpack.c.l.b16 %v239
        %v407 = vunpack.c.l.b16 %v240
        %v408 = vpack.c.b16 %v393, %v392
        %v409 = vpack.c.b16 %v395, %v394
        %v410 = vpack.c.b16 %v397, %v396
        %v411 = vpack.c.b16 %v399, %v398
        %v412 = vpack.c.b16 %v401, %v400
        %v413 = vpack.c.b16 %v403, %v402
        %v414 = vpack.c.b16 %v405, %v404
        %v415 = vpack.c.b16 %v407, %v406
        %424 = vmatprep.subr.bf16.mxu0 0
        %425 = vmatpush1.bf16.msra.mxu0 %v408
        %426 = vmatprep.subr.bf16.mxu0 0
        %427 = vmatpush1.bf16.msra.mxu0 %v409
        %428 = vmatprep.subr.bf16.mxu0 0
        %429 = vmatpush1.bf16.msra.mxu0 %v410
        %430 = vmatprep.subr.bf16.mxu0 0
        %431 = vmatpush1.bf16.msra.mxu0 %v411
        %432 = vmatprep.subr.bf16.mxu0 0
        %433 = vmatpush1.bf16.msra.mxu0 %v412
        %434 = vmatprep.subr.bf16.mxu0 0
        %435 = vmatpush1.bf16.msra.mxu0 %v413
        %436 = vmatprep.subr.bf16.mxu0 0
        %437 = vmatpush1.bf16.msra.mxu0 %v414
        %438 = vmatprep.subr.bf16.mxu0 0
        %439 = vmatpush1.bf16.msra.mxu0 %v415
        %440 = vmatprep.subr.bf16.mxu0 0
        %441 = vmatpush1.bf16.msra.mxu0 0
        %442 = vmatprep.subr.bf16.mxu0 0
        %443 = vmatpush1.bf16.msra.mxu0 0
        %444 = vmatprep.subr.bf16.mxu0 0
        %445 = vmatpush1.bf16.msra.mxu0 0
        %446 = vmatprep.subr.bf16.mxu0 0
        %447 = vmatpush1.bf16.msra.mxu0 0
        %448 = vmatprep.subr.bf16.mxu0 0
        %449 = vmatpush1.bf16.msra.mxu0 0
        %450 = vmatprep.subr.bf16.mxu0 0
        %451 = vmatpush1.bf16.msra.mxu0 0
        %452 = vmatprep.subr.bf16.mxu0 0
        %453 = vmatpush1.bf16.msra.mxu0 0
        %454 = vmatprep.subr.bf16.mxu0 0
        %455 = vmatpush1.bf16.msra.mxu0 0
        %456 = vmatprep.mubr.bf16.mxu0 0
        %457 = vmatmul.mubr.bf16.gmra.mrb[0].mxu0 %v372
        %v458 = vpop.f32.mrb[0].mxu0
        %v459 = vadd.f32 %v352, %v458
        %v460 = vpop.f32.mrb[0].mxu0
        %v461 = vpop.f32.mrb[0].mxu0
        %v462 = vadd.f32 %v355, %v461
        %v463 = vpop.f32.mrb[0].mxu0
        %464 = vmatprep.mubr.bf16.mxu0 0
        %465 = vmatmul.mubr.bf16.gmra.mrb[0].mxu0 %v373
        %v466 = vpop.f32.mrb[0].mxu0
        %v467 = vadd.f32 %v360, %v466
        %v468 = vpop.f32.mrb[0].mxu0
        %v469 = vpop.f32.mrb[0].mxu0
        %v470 = vadd.f32 %v363, %v469
        %v471 = vpop.f32.mrb[0].mxu0
        %472 = vdwg.mxu0
        %v473 = vld [vmem:[#allocation5 + $0x80] sm:$0xf]
        %v474 = vld [vmem:[#allocation5 + $0x84] sm:$0xf]
        %v475 = vld [vmem:[#allocation5 + $0x88] sm:$0xf]
        %v476 = vld [vmem:[#allocation5 + $0x8c] sm:$0xf]
        %v477 = vld [vmem:[#allocation5 + $0x90] sm:$0xf]
        %v478 = vld [vmem:[#allocation5 + $0x94] sm:$0xf]
        %v479 = vld [vmem:[#allocation5 + $0x98] sm:$0xf]
        %v480 = vld [vmem:[#allocation5 + $0x9c] sm:$0xf]
        %v481 = vld [vmem:[#allocation5 + $0xa0] sm:$0xf]
        %v482 = vld [vmem:[#allocation5 + $0xa4] sm:$0xf]
        %v483 = vld [vmem:[#allocation5 + $0xa8] sm:$0xf]
        %v484 = vld [vmem:[#allocation5 + $0xac] sm:$0xf]
        %v485 = vld [vmem:[#allocation5 + $0xb0] sm:$0xf]
        %v486 = vld [vmem:[#allocation5 + $0xb4] sm:$0xf]
        %v487 = vld [vmem:[#allocation5 + $0xb8] sm:$0xf]
        %v488 = vld [vmem:[#allocation5 + $0xbc] sm:$0xf]
        %v489 = vpack.c.b16 %v262, %v262
        %vm490 = vsmask.f32 7424
        %v492 = vshrl.u32 %v372, 16
        %v494 = vshll.u32 %v372, 16
        %v496 = vrot.slane %v494, 1
        %v497 = vor.u32 %v492, %v496
        %v499 = vshll.u32 %v373, 16
        %v501 = vrot.slane %v499, 1
        %v502 = vsel %vm490, %v497, %v501
        %v503 = vshrl.u32 %v373, 16
        %v505 = vor.u32 %v503, %v501
        %v507 = vshll.u32 %v489, 16
        %v509 = vrot.slane %v507, 1
        %v510 = vsel %vm490, %v505, %v509
        %v529 = vunpack.c.l.b16 %v473
        %v530 = vunpack.c.l.b16 %v474
        %v531 = vunpack.c.l.b16 %v475
        %v532 = vunpack.c.l.b16 %v476
        %v533 = vunpack.c.l.b16 %v477
        %v534 = vunpack.c.l.b16 %v478
        %v535 = vunpack.c.l.b16 %v479
        %v536 = vunpack.c.l.b16 %v480
        %v537 = vunpack.c.l.b16 %v481
        %v538 = vunpack.c.l.b16 %v482
        %v539 = vunpack.c.l.b16 %v483
        %v540 = vunpack.c.l.b16 %v484
        %v541 = vunpack.c.l.b16 %v485
        %v542 = vunpack.c.l.b16 %v486
        %v543 = vunpack.c.l.b16 %v487
        %v544 = vunpack.c.l.b16 %v488
        %v545 = vpack.c.b16 %v530, %v529
        %v546 = vpack.c.b16 %v532, %v531
        %v547 = vpack.c.b16 %v534, %v533
        %v548 = vpack.c.b16 %v536, %v535
        %v549 = vpack.c.b16 %v538, %v537
        %v550 = vpack.c.b16 %v540, %v539
        %v551 = vpack.c.b16 %v542, %v541
        %v552 = vpack.c.b16 %v544, %v543
        %561 = vmatprep.subr.bf16.mxu0 0
        %562 = vmatpush1.bf16.msra.mxu0 %v545
        %563 = vmatprep.subr.bf16.mxu0 0
        %564 = vmatpush1.bf16.msra.mxu0 %v546
        %565 = vmatprep.subr.bf16.mxu0 0
        %566 = vmatpush1.bf16.msra.mxu0 %v547
        %567 = vmatprep.subr.bf16.mxu0 0
        %568 = vmatpush1.bf16.msra.mxu0 %v548
        %569 = vmatprep.subr.bf16.mxu0 0
        %570 = vmatpush1.bf16.msra.mxu0 %v549
        %571 = vmatprep.subr.bf16.mxu0 0
        %572 = vmatpush1.bf16.msra.mxu0 %v550
        %573 = vmatprep.subr.bf16.mxu0 0
        %574 = vmatpush1.bf16.msra.mxu0 %v551
        %575 = vmatprep.subr.bf16.mxu0 0
        %576 = vmatpush1.bf16.msra.mxu0 %v552
        %577 = vmatprep.subr.bf16.mxu0 0
        %578 = vmatpush1.bf16.msra.mxu0 0
        %579 = vmatprep.subr.bf16.mxu0 0
        %580 = vmatpush1.bf16.msra.mxu0 0
        %581 = vmatprep.subr.bf16.mxu0 0
        %582 = vmatpush1.bf16.msra.mxu0 0
        %583 = vmatprep.subr.bf16.mxu0 0
        %584 = vmatpush1.bf16.msra.mxu0 0
        %585 = vmatprep.subr.bf16.mxu0 0
        %586 = vmatpush1.bf16.msra.mxu0 0
        %587 = vmatprep.subr.bf16.mxu0 0
        %588 = vmatpush1.bf16.msra.mxu0 0
        %589 = vmatprep.subr.bf16.mxu0 0
        %590 = vmatpush1.bf16.msra.mxu0 0
        %591 = vmatprep.subr.bf16.mxu0 0
        %592 = vmatpush1.bf16.msra.mxu0 0
        %593 = vmatprep.mubr.bf16.mxu0 0
        %594 = vmatmul.mubr.bf16.gmra.mrb[0].mxu0 %v502
        %v595 = vpop.f32.mrb[0].mxu0
        %v596 = vadd.f32 0.0, %v595
        %v597 = vpop.f32.mrb[0].mxu0
        %v598 = vpop.f32.mrb[0].mxu0
        %v599 = vadd.f32 0.0, %v598
        %v600 = vpop.f32.mrb[0].mxu0
        %601 = vmatprep.mubr.bf16.mxu0 0
        %602 = vmatmul.mubr.bf16.gmra.mrb[0].mxu0 %v510
        %v603 = vpop.f32.mrb[0].mxu0
        %v604 = vadd.f32 0.0, %v603
        %v605 = vpop.f32.mrb[0].mxu0
        %v606 = vpop.f32.mrb[0].mxu0
        %v607 = vadd.f32 0.0, %v606
        %v608 = vpop.f32.mrb[0].mxu0
        %609 = vdwg.mxu0
        %v610 = vadd.f32 %v459, %v596
        %v611 = vadd.f32 %v462, %v599
        %v612 = vadd.f32 %v467, %v604
        %v613 = vadd.f32 %v470, %v607
        %s614 = sadd.s32 %s214, 1
        %s615 = smul.u32 %s614, 8
        %s616 = smul.addr %s615, 4
        %s617 = scalar_lea.vmem [#allocation2], %s616
        %v618 = vld [vmem:[%s617] sm:$0xf]
        %v619 = vld [vmem:[%s617 + $0x4] sm:$0xf]
        %v620 = vld [vmem:[%s617 + $0x8] sm:$0xf]
        %v621 = vld [vmem:[%s617 + $0xc] sm:$0xf]
        %v622 = vld [vmem:[%s617 + $0x10] sm:$0xf]
        %v623 = vld [vmem:[%s617 + $0x14] sm:$0xf]
        %v624 = vld [vmem:[%s617 + $0x18] sm:$0xf]
        %v625 = vld [vmem:[#allocation5 + $0xc0] sm:$0xf]
        %v626 = vld [vmem:[#allocation5 + $0xc4] sm:$0xf]
        %v627 = vld [vmem:[#allocation5 + $0xc8] sm:$0xf]
        %v628 = vld [vmem:[#allocation5 + $0xcc] sm:$0xf]
        %v629 = vld [vmem:[#allocation5 + $0xd0] sm:$0xf]
        %v630 = vld [vmem:[#allocation5 + $0xd4] sm:$0xf]
        %v631 = vld [vmem:[#allocation5 + $0xd8] sm:$0xf]
        %v632 = vld [vmem:[#allocation5 + $0xdc] sm:$0xf]
        %v633 = vld [vmem:[#allocation5 + $0xe0] sm:$0xf]
        %v634 = vld [vmem:[#allocation5 + $0xe4] sm:$0xf]
        %v635 = vld [vmem:[#allocation5 + $0xe8] sm:$0xf]
        %v636 = vld [vmem:[#allocation5 + $0xec] sm:$0xf]
        %v637 = vld [vmem:[#allocation5 + $0xf0] sm:$0xf]
        %v638 = vld [vmem:[#allocation5 + $0xf4] sm:$0xf]
        %v639 = vld [vmem:[#allocation5 + $0xf8] sm:$0xf]
        %v640 = vld [vmem:[#allocation5 + $0xfc] sm:$0xf]
        %v645 = vunpack.c.l.b16 %v618
        %v646 = vunpack.c.l.b16 %v619
        %v647 = vunpack.c.l.b16 %v620
        %v648 = vunpack.c.l.b16 %v621
        %v649 = vpack.c.b16 %v646, %v645
        %v650 = vpack.c.b16 %v648, %v647
        %v669 = vunpack.c.l.b16 %v625
        %v670 = vunpack.c.l.b16 %v626
        %v671 = vunpack.c.l.b16 %v627
        %v672 = vunpack.c.l.b16 %v628
        %v673 = vunpack.c.l.b16 %v629
        %v674 = vunpack.c.l.b16 %v630
        %v675 = vunpack.c.l.b16 %v631
        %v676 = vunpack.c.l.b16 %v632
        %v677 = vunpack.c.l.b16 %v633
        %v678 = vunpack.c.l.b16 %v634
        %v679 = vunpack.c.l.b16 %v635
        %v680 = vunpack.c.l.b16 %v636
        %v681 = vunpack.c.l.b16 %v637
        %v682 = vunpack.c.l.b16 %v638
        %v683 = vunpack.c.l.b16 %v639
        %v684 = vunpack.c.l.b16 %v640
        %v685 = vpack.c.b16 %v670, %v669
        %v686 = vpack.c.b16 %v672, %v671
        %v687 = vpack.c.b16 %v674, %v673
        %v688 = vpack.c.b16 %v676, %v675
        %v689 = vpack.c.b16 %v678, %v677
        %v690 = vpack.c.b16 %v680, %v679
        %v691 = vpack.c.b16 %v682, %v681
        %v692 = vpack.c.b16 %v684, %v683
        %701 = vmatprep.subr.bf16.mxu0 0
        %702 = vmatpush1.bf16.msra.mxu0 %v685
        %703 = vmatprep.subr.bf16.mxu0 0
        %704 = vmatpush1.bf16.msra.mxu0 %v686
        %705 = vmatprep.subr.bf16.mxu0 0
        %706 = vmatpush1.bf16.msra.mxu0 %v687
        %707 = vmatprep.subr.bf16.mxu0 0
        %708 = vmatpush1.bf16.msra.mxu0 %v688
        %709 = vmatprep.subr.bf16.mxu0 0
        %710 = vmatpush1.bf16.msra.mxu0 %v689
        %711 = vmatprep.subr.bf16.mxu0 0
        %712 = vmatpush1.bf16.msra.mxu0 %v690
        %713 = vmatprep.subr.bf16.mxu0 0
        %714 = vmatpush1.bf16.msra.mxu0 %v691
        %715 = vmatprep.subr.bf16.mxu0 0
        %716 = vmatpush1.bf16.msra.mxu0 %v692
        %717 = vmatprep.subr.bf16.mxu0 0
        %718 = vmatpush1.bf16.msra.mxu0 0
        %719 = vmatprep.subr.bf16.mxu0 0
        %720 = vmatpush1.bf16.msra.mxu0 0
        %721 = vmatprep.subr.bf16.mxu0 0
        %722 = vmatpush1.bf16.msra.mxu0 0
        %723 = vmatprep.subr.bf16.mxu0 0
        %724 = vmatpush1.bf16.msra.mxu0 0
        %725 = vmatprep.subr.bf16.mxu0 0
        %726 = vmatpush1.bf16.msra.mxu0 0
        %727 = vmatprep.subr.bf16.mxu0 0
        %728 = vmatpush1.bf16.msra.mxu0 0
        %729 = vmatprep.subr.bf16.mxu0 0
        %730 = vmatpush1.bf16.msra.mxu0 0
        %731 = vmatprep.subr.bf16.mxu0 0
        %732 = vmatpush1.bf16.msra.mxu0 0
        %733 = vmatprep.mubr.bf16.mxu0 0
        %734 = vmatmul.mubr.bf16.gmra.mrb[0].mxu0 %v649
        %v735 = vpop.f32.mrb[0].mxu0
        %v736 = vadd.f32 0.0, %v735
        %v737 = vpop.f32.mrb[0].mxu0
        %v738 = vpop.f32.mrb[0].mxu0
        %v739 = vadd.f32 0.0, %v738
        %v740 = vpop.f32.mrb[0].mxu0
        %741 = vmatprep.mubr.bf16.mxu0 0
        %742 = vmatmul.mubr.bf16.gmra.mrb[0].mxu0 %v650
        %v743 = vpop.f32.mrb[0].mxu0
        %v744 = vadd.f32 0.0, %v743
        %v745 = vpop.f32.mrb[0].mxu0
        %v746 = vpop.f32.mrb[0].mxu0
        %v747 = vadd.f32 0.0, %v746
        %v748 = vpop.f32.mrb[0].mxu0
        %749 = vdwg.mxu0
        %v750 = vadd.f32 %v610, %v736
        %v751 = vadd.f32 %v611, %v739
        %v752 = vadd.f32 %v612, %v744
        %v753 = vadd.f32 %v613, %v747
        %v754 = vld [vmem:[#allocation5 + $0x100] sm:$0xf]
        %v755 = vld [vmem:[#allocation5 + $0x104] sm:$0xf]
        %v756 = vld [vmem:[#allocation5 + $0x108] sm:$0xf]
        %v757 = vld [vmem:[#allocation5 + $0x10c] sm:$0xf]
        %v758 = vld [vmem:[#allocation5 + $0x110] sm:$0xf]
        %v759 = vld [vmem:[#allocation5 + $0x114] sm:$0xf]
        %v760 = vld [vmem:[#allocation5 + $0x118] sm:$0xf]
        %v761 = vld [vmem:[#allocation5 + $0x11c] sm:$0xf]
        %v762 = vld [vmem:[#allocation5 + $0x120] sm:$0xf]
        %v763 = vld [vmem:[#allocation5 + $0x124] sm:$0xf]
        %v764 = vld [vmem:[#allocation5 + $0x128] sm:$0xf]
        %v765 = vld [vmem:[#allocation5 + $0x12c] sm:$0xf]
        %v766 = vld [vmem:[#allocation5 + $0x130] sm:$0xf]
        %v767 = vld [vmem:[#allocation5 + $0x134] sm:$0xf]
        %v768 = vld [vmem:[#allocation5 + $0x138] sm:$0xf]
        %v769 = vld [vmem:[#allocation5 + $0x13c] sm:$0xf]
        %v773 = vunpack.c.l.b16 %v622
        %v774 = vunpack.c.l.b16 %v623
        %v775 = vunpack.c.l.b16 %v624
        %v776 = vpack.c.b16 %v773, %v648
        %v777 = vpack.c.b16 %v775, %v774
        %v796 = vunpack.c.l.b16 %v754
        %v797 = vunpack.c.l.b16 %v755
        %v798 = vunpack.c.l.b16 %v756
        %v799 = vunpack.c.l.b16 %v757
        %v800 = vunpack.c.l.b16 %v758
        %v801 = vunpack.c.l.b16 %v759
        %v802 = vunpack.c.l.b16 %v760
        %v803 = vunpack.c.l.b16 %v761
        %v804 = vunpack.c.l.b16 %v762
        %v805 = vunpack.c.l.b16 %v763
        %v806 = vunpack.c.l.b16 %v764
        %v807 = vunpack.c.l.b16 %v765
        %v808 = vunpack.c.l.b16 %v766
        %v809 = vunpack.c.l.b16 %v767
        %v810 = vunpack.c.l.b16 %v768
        %v811 = vunpack.c.l.b16 %v769
        %v812 = vpack.c.b16 %v797, %v796
        %v813 = vpack.c.b16 %v799, %v798
        %v814 = vpack.c.b16 %v801, %v800
        %v815 = vpack.c.b16 %v803, %v802
        %v816 = vpack.c.b16 %v805, %v804
        %v817 = vpack.c.b16 %v807, %v806
        %v818 = vpack.c.b16 %v809, %v808
        %v819 = vpack.c.b16 %v811, %v810
        %828 = vmatprep.subr.bf16.mxu0 0
        %829 = vmatpush1.bf16.msra.mxu0 %v812
        %830 = vmatprep.subr.bf16.mxu0 0
        %831 = vmatpush1.bf16.msra.mxu0 %v813
        %832 = vmatprep.subr.bf16.mxu0 0
        %833 = vmatpush1.bf16.msra.mxu0 %v814
        %834 = vmatprep.subr.bf16.mxu0 0
        %835 = vmatpush1.bf16.msra.mxu0 %v815
        %836 = vmatprep.subr.bf16.mxu0 0
        %837 = vmatpush1.bf16.msra.mxu0 %v816
        %838 = vmatprep.subr.bf16.mxu0 0
        %839 = vmatpush1.bf16.msra.mxu0 %v817
        %840 = vmatprep.subr.bf16.mxu0 0
        %841 = vmatpush1.bf16.msra.mxu0 %v818
        %842 = vmatprep.subr.bf16.mxu0 0
        %843 = vmatpush1.bf16.msra.mxu0 %v819
        %844 = vmatprep.subr.bf16.mxu0 0
        %845 = vmatpush1.bf16.msra.mxu0 0
        %846 = vmatprep.subr.bf16.mxu0 0
        %847 = vmatpush1.bf16.msra.mxu0 0
        %848 = vmatprep.subr.bf16.mxu0 0
        %849 = vmatpush1.bf16.msra.mxu0 0
        %850 = vmatprep.subr.bf16.mxu0 0
        %851 = vmatpush1.bf16.msra.mxu0 0
        %852 = vmatprep.subr.bf16.mxu0 0
        %853 = vmatpush1.bf16.msra.mxu0 0
        %854 = vmatprep.subr.bf16.mxu0 0
        %855 = vmatpush1.bf16.msra.mxu0 0
        %856 = vmatprep.subr.bf16.mxu0 0
        %857 = vmatpush1.bf16.msra.mxu0 0
        %858 = vmatprep.subr.bf16.mxu0 0
        %859 = vmatpush1.bf16.msra.mxu0 0
        %860 = vmatprep.mubr.bf16.mxu0 0
        %861 = vmatmul.mubr.bf16.gmra.mrb[0].mxu0 %v776
        %v862 = vpop.f32.mrb[0].mxu0
        %v863 = vadd.f32 0.0, %v862
        %v864 = vpop.f32.mrb[0].mxu0
        %v865 = vpop.f32.mrb[0].mxu0
        %v866 = vadd.f32 0.0, %v865
        %v867 = vpop.f32.mrb[0].mxu0
        %868 = vmatprep.mubr.bf16.mxu0 0
        %869 = vmatmul.mubr.bf16.gmra.mrb[0].mxu0 %v777
        %v870 = vpop.f32.mrb[0].mxu0
        %v871 = vadd.f32 0.0, %v870
        %v872 = vpop.f32.mrb[0].mxu0
        %v873 = vpop.f32.mrb[0].mxu0
        %v874 = vadd.f32 0.0, %v873
        %v875 = vpop.f32.mrb[0].mxu0
        %876 = vdwg.mxu0
        %v877 = vadd.f32 %v750, %v863
        %v878 = vadd.f32 %v751, %v866
        %v879 = vadd.f32 %v752, %v871
        %v880 = vadd.f32 %v753, %v874
        %v881 = vld [vmem:[#allocation5 + $0x140] sm:$0xf]
        %v882 = vld [vmem:[#allocation5 + $0x144] sm:$0xf]
        %v883 = vld [vmem:[#allocation5 + $0x148] sm:$0xf]
        %v884 = vld [vmem:[#allocation5 + $0x14c] sm:$0xf]
        %v885 = vld [vmem:[#allocation5 + $0x150] sm:$0xf]
        %v886 = vld [vmem:[#allocation5 + $0x154] sm:$0xf]
        %v887 = vld [vmem:[#allocation5 + $0x158] sm:$0xf]
        %v888 = vld [vmem:[#allocation5 + $0x15c] sm:$0xf]
        %v889 = vld [vmem:[#allocation5 + $0x160] sm:$0xf]
        %v890 = vld [vmem:[#allocation5 + $0x164] sm:$0xf]
        %v891 = vld [vmem:[#allocation5 + $0x168] sm:$0xf]
        %v892 = vld [vmem:[#allocation5 + $0x16c] sm:$0xf]
        %v893 = vld [vmem:[#allocation5 + $0x170] sm:$0xf]
        %v894 = vld [vmem:[#allocation5 + $0x174] sm:$0xf]
        %v895 = vld [vmem:[#allocation5 + $0x178] sm:$0xf]
        %v896 = vld [vmem:[#allocation5 + $0x17c] sm:$0xf]
        %v897 = vpack.c.b16 %v773, %v773
        %v899 = vshrl.u32 %v649, 16
        %v901 = vshll.u32 %v649, 16
        %v903 = vrot.slane %v901, 1
        %v904 = vor.u32 %v899, %v903
        %v906 = vshll.u32 %v650, 16
        %v908 = vrot.slane %v906, 1
        %v909 = vsel %vm490, %v904, %v908
        %v910 = vshrl.u32 %v650, 16
        %v912 = vor.u32 %v910, %v908
        %v914 = vshll.u32 %v897, 16
        %v916 = vrot.slane %v914, 1
        %v917 = vsel %vm490, %v912, %v916
        %v936 = vunpack.c.l.b16 %v881
        %v937 = vunpack.c.l.b16 %v882
        %v938 = vunpack.c.l.b16 %v883
        %v939 = vunpack.c.l.b16 %v884
        %v940 = vunpack.c.l.b16 %v885
        %v941 = vunpack.c.l.b16 %v886
        %v942 = vunpack.c.l.b16 %v887
        %v943 = vunpack.c.l.b16 %v888
        %v944 = vunpack.c.l.b16 %v889
        %v945 = vunpack.c.l.b16 %v890
        %v946 = vunpack.c.l.b16 %v891
        %v947 = vunpack.c.l.b16 %v892
        %v948 = vunpack.c.l.b16 %v893
        %v949 = vunpack.c.l.b16 %v894
        %v950 = vunpack.c.l.b16 %v895
        %v951 = vunpack.c.l.b16 %v896
        %v952 = vpack.c.b16 %v937, %v936
        %v953 = vpack.c.b16 %v939, %v938
        %v954 = vpack.c.b16 %v941, %v940
        %v955 = vpack.c.b16 %v943, %v942
        %v956 = vpack.c.b16 %v945, %v944
        %v957 = vpack.c.b16 %v947, %v946
        %v958 = vpack.c.b16 %v949, %v948
        %v959 = vpack.c.b16 %v951, %v950
        %968 = vmatprep.subr.bf16.mxu0 0
        %969 = vmatpush1.bf16.msra.mxu0 %v952
        %970 = vmatprep.subr.bf16.mxu0 0
        %971 = vmatpush1.bf16.msra.mxu0 %v953
        %972 = vmatprep.subr.bf16.mxu0 0
        %973 = vmatpush1.bf16.msra.mxu0 %v954
        %974 = vmatprep.subr.bf16.mxu0 0
        %975 = vmatpush1.bf16.msra.mxu0 %v955
        %976 = vmatprep.subr.bf16.mxu0 0
        %977 = vmatpush1.bf16.msra.mxu0 %v956
        %978 = vmatprep.subr.bf16.mxu0 0
        %979 = vmatpush1.bf16.msra.mxu0 %v957
        %980 = vmatprep.subr.bf16.mxu0 0
        %981 = vmatpush1.bf16.msra.mxu0 %v958
        %982 = vmatprep.subr.bf16.mxu0 0
        %983 = vmatpush1.bf16.msra.mxu0 %v959
        %984 = vmatprep.subr.bf16.mxu0 0
        %985 = vmatpush1.bf16.msra.mxu0 0
        %986 = vmatprep.subr.bf16.mxu0 0
        %987 = vmatpush1.bf16.msra.mxu0 0
        %988 = vmatprep.subr.bf16.mxu0 0
        %989 = vmatpush1.bf16.msra.mxu0 0
        %990 = vmatprep.subr.bf16.mxu0 0
        %991 = vmatpush1.bf16.msra.mxu0 0
        %992 = vmatprep.subr.bf16.mxu0 0
        %993 = vmatpush1.bf16.msra.mxu0 0
        %994 = vmatprep.subr.bf16.mxu0 0
        %995 = vmatpush1.bf16.msra.mxu0 0
        %996 = vmatprep.subr.bf16.mxu0 0
        %997 = vmatpush1.bf16.msra.mxu0 0
        %998 = vmatprep.subr.bf16.mxu0 0
        %999 = vmatpush1.bf16.msra.mxu0 0
        %1000 = vmatprep.mubr.bf16.mxu0 0
        %1001 = vmatmul.mubr.bf16.gmra.mrb[0].mxu0 %v909
        %v1002 = vpop.f32.mrb[0].mxu0
        %v1003 = vadd.f32 0.0, %v1002
        %v1004 = vpop.f32.mrb[0].mxu0
        %v1005 = vpop.f32.mrb[0].mxu0
        %v1006 = vadd.f32 0.0, %v1005
        %v1007 = vpop.f32.mrb[0].mxu0
        %1008 = vmatprep.mubr.bf16.mxu0 0
        %1009 = vmatmul.mubr.bf16.gmra.mrb[0].mxu0 %v917
        %v1010 = vpop.f32.mrb[0].mxu0
        %v1011 = vadd.f32 0.0, %v1010
        %v1012 = vpop.f32.mrb[0].mxu0
        %v1013 = vpop.f32.mrb[0].mxu0
        %v1014 = vadd.f32 0.0, %v1013
        %v1015 = vpop.f32.mrb[0].mxu0
        %1016 = vdwg.mxu0
        %v1017 = vadd.f32 %v877, %v1003
        %v1018 = vadd.f32 %v878, %v1006
        %v1019 = vadd.f32 %v879, %v1011
        %v1020 = vadd.f32 %v880, %v1014
        %s1021 = sadd.s32 %s214, 2
        %s1022 = smul.u32 %s1021, 8
        %s1023 = smul.addr %s1022, 4
        %s1024 = scalar_lea.vmem [#allocation2], %s1023
        %v1025 = vld [vmem:[%s1024] sm:$0xf]
        %v1026 = vld [vmem:[%s1024 + $0x4] sm:$0xf]
        %v1027 = vld [vmem:[%s1024 + $0x8] sm:$0xf]
        %v1028 = vld [vmem:[%s1024 + $0xc] sm:$0xf]
        %v1029 = vld [vmem:[%s1024 + $0x10] sm:$0xf]
        %v1030 = vld [vmem:[%s1024 + $0x14] sm:$0xf]
        %v1031 = vld [vmem:[%s1024 + $0x18] sm:$0xf]
        %v1032 = vld [vmem:[#allocation5 + $0x180] sm:$0xf]
        %v1033 = vld [vmem:[#allocation5 + $0x184] sm:$0xf]
        %v1034 = vld [vmem:[#allocation5 + $0x188] sm:$0xf]
        %v1035 = vld [vmem:[#allocation5 + $0x18c] sm:$0xf]
        %v1036 = vld [vmem:[#allocation5 + $0x190] sm:$0xf]
        %v1037 = vld [vmem:[#allocation5 + $0x194] sm:$0xf]
        %v1038 = vld [vmem:[#allocation5 + $0x198] sm:$0xf]
        %v1039 = vld [vmem:[#allocation5 + $0x19c] sm:$0xf]
        %v1040 = vld [vmem:[#allocation5 + $0x1a0] sm:$0xf]
        %v1041 = vld [vmem:[#allocation5 + $0x1a4] sm:$0xf]
        %v1042 = vld [vmem:[#allocation5 + $0x1a8] sm:$0xf]
        %v1043 = vld [vmem:[#allocation5 + $0x1ac] sm:$0xf]
        %v1044 = vld [vmem:[#allocation5 + $0x1b0] sm:$0xf]
        %v1045 = vld [vmem:[#allocation5 + $0x1b4] sm:$0xf]
        %v1046 = vld [vmem:[#allocation5 + $0x1b8] sm:$0xf]
        %v1047 = vld [vmem:[#allocation5 + $0x1bc] sm:$0xf]
        %v1052 = vunpack.c.l.b16 %v1025
        %v1053 = vunpack.c.l.b16 %v1026
        %v1054 = vunpack.c.l.b16 %v1027
        %v1055 = vunpack.c.l.b16 %v1028
        %v1056 = vpack.c.b16 %v1053, %v1052
        %v1057 = vpack.c.b16 %v1055, %v1054
        %v1076 = vunpack.c.l.b16 %v1032
        %v1077 = vunpack.c.l.b16 %v1033
        %v1078 = vunpack.c.l.b16 %v1034
        %v1079 = vunpack.c.l.b16 %v1035
        %v1080 = vunpack.c.l.b16 %v1036
        %v1081 = vunpack.c.l.b16 %v1037
        %v1082 = vunpack.c.l.b16 %v1038
        %v1083 = vunpack.c.l.b16 %v1039
        %v1084 = vunpack.c.l.b16 %v1040
        %v1085 = vunpack.c.l.b16 %v1041
        %v1086 = vunpack.c.l.b16 %v1042
        %v1087 = vunpack.c.l.b16 %v1043
        %v1088 = vunpack.c.l.b16 %v1044
        %v1089 = vunpack.c.l.b16 %v1045
        %v1090 = vunpack.c.l.b16 %v1046
        %v1091 = vunpack.c.l.b16 %v1047
        %v1092 = vpack.c.b16 %v1077, %v1076
        %v1093 = vpack.c.b16 %v1079, %v1078
        %v1094 = vpack.c.b16 %v1081, %v1080
        %v1095 = vpack.c.b16 %v1083, %v1082
        %v1096 = vpack.c.b16 %v1085, %v1084
        %v1097 = vpack.c.b16 %v1087, %v1086
        %v1098 = vpack.c.b16 %v1089, %v1088
        %v1099 = vpack.c.b16 %v1091, %v1090
        %1108 = vmatprep.subr.bf16.mxu0 0
        %1109 = vmatpush1.bf16.msra.mxu0 %v1092
        %1110 = vmatprep.subr.bf16.mxu0 0
        %1111 = vmatpush1.bf16.msra.mxu0 %v1093
        %1112 = vmatprep.subr.bf16.mxu0 0
        %1113 = vmatpush1.bf16.msra.mxu0 %v1094
        %1114 = vmatprep.subr.bf16.mxu0 0
        %1115 = vmatpush1.bf16.msra.mxu0 %v1095
        %1116 = vmatprep.subr.bf16.mxu0 0
        %1117 = vmatpush1.bf16.msra.mxu0 %v1096
        %1118 = vmatprep.subr.bf16.mxu0 0
        %1119 = vmatpush1.bf16.msra.mxu0 %v1097
        %1120 = vmatprep.subr.bf16.mxu0 0
        %1121 = vmatpush1.bf16.msra.mxu0 %v1098
        %1122 = vmatprep.subr.bf16.mxu0 0
        %1123 = vmatpush1.bf16.msra.mxu0 %v1099
        %1124 = vmatprep.subr.bf16.mxu0 0
        %1125 = vmatpush1.bf16.msra.mxu0 0
        %1126 = vmatprep.subr.bf16.mxu0 0
        %1127 = vmatpush1.bf16.msra.mxu0 0
        %1128 = vmatprep.subr.bf16.mxu0 0
        %1129 = vmatpush1.bf16.msra.mxu0 0
        %1130 = vmatprep.subr.bf16.mxu0 0
        %1131 = vmatpush1.bf16.msra.mxu0 0
        %1132 = vmatprep.subr.bf16.mxu0 0
        %1133 = vmatpush1.bf16.msra.mxu0 0
        %1134 = vmatprep.subr.bf16.mxu0 0
        %1135 = vmatpush1.bf16.msra.mxu0 0
        %1136 = vmatprep.subr.bf16.mxu0 0
        %1137 = vmatpush1.bf16.msra.mxu0 0
        %1138 = vmatprep.subr.bf16.mxu0 0
        %1139 = vmatpush1.bf16.msra.mxu0 0
        %1140 = vmatprep.mubr.bf16.mxu0 0
        %1141 = vmatmul.mubr.bf16.gmra.mrb[0].mxu0 %v1056
        %v1142 = vpop.f32.mrb[0].mxu0
        %v1143 = vadd.f32 0.0, %v1142
        %v1144 = vpop.f32.mrb[0].mxu0
        %v1145 = vpop.f32.mrb[0].mxu0
        %v1146 = vadd.f32 0.0, %v1145
        %v1147 = vpop.f32.mrb[0].mxu0
        %1148 = vmatprep.mubr.bf16.mxu0 0
        %1149 = vmatmul.mubr.bf16.gmra.mrb[0].mxu0 %v1057
        %v1150 = vpop.f32.mrb[0].mxu0
        %v1151 = vadd.f32 0.0, %v1150
        %v1152 = vpop.f32.mrb[0].mxu0
        %v1153 = vpop.f32.mrb[0].mxu0
        %v1154 = vadd.f32 0.0, %v1153
        %v1155 = vpop.f32.mrb[0].mxu0
        %1156 = vdwg.mxu0
        %v1157 = vadd.f32 %v1017, %v1143
        %v1158 = vadd.f32 %v1018, %v1146
        %v1159 = vadd.f32 %v1019, %v1151
        %v1160 = vadd.f32 %v1020, %v1154
        %v1161 = vld [vmem:[#allocation5 + $0x1c0] sm:$0xf]
        %v1162 = vld [vmem:[#allocation5 + $0x1c4] sm:$0xf]
        %v1163 = vld [vmem:[#allocation5 + $0x1c8] sm:$0xf]
        %v1164 = vld [vmem:[#allocation5 + $0x1cc] sm:$0xf]
        %v1165 = vld [vmem:[#allocation5 + $0x1d0] sm:$0xf]
        %v1166 = vld [vmem:[#allocation5 + $0x1d4] sm:$0xf]
        %v1167 = vld [vmem:[#allocation5 + $0x1d8] sm:$0xf]
        %v1168 = vld [vmem:[#allocation5 + $0x1dc] sm:$0xf]
        %v1169 = vld [vmem:[#allocation5 + $0x1e0] sm:$0xf]
        %v1170 = vld [vmem:[#allocation5 + $0x1e4] sm:$0xf]
        %v1171 = vld [vmem:[#allocation5 + $0x1e8] sm:$0xf]
        %v1172 = vld [vmem:[#allocation5 + $0x1ec] sm:$0xf]
        %v1173 = vld [vmem:[#allocation5 + $0x1f0] sm:$0xf]
        %v1174 = vld [vmem:[#allocation5 + $0x1f4] sm:$0xf]
        %v1175 = vld [vmem:[#allocation5 + $0x1f8] sm:$0xf]
        %v1176 = vld [vmem:[#allocation5 + $0x1fc] sm:$0xf]
        %v1180 = vunpack.c.l.b16 %v1029
        %v1181 = vunpack.c.l.b16 %v1030
        %v1182 = vunpack.c.l.b16 %v1031
        %v1183 = vpack.c.b16 %v1180, %v1055
        %v1184 = vpack.c.b16 %v1182, %v1181
        %v1203 = vunpack.c.l.b16 %v1161
        %v1204 = vunpack.c.l.b16 %v1162
        %v1205 = vunpack.c.l.b16 %v1163
        %v1206 = vunpack.c.l.b16 %v1164
        %v1207 = vunpack.c.l.b16 %v1165
        %v1208 = vunpack.c.l.b16 %v1166
        %v1209 = vunpack.c.l.b16 %v1167
        %v1210 = vunpack.c.l.b16 %v1168
        %v1211 = vunpack.c.l.b16 %v1169
        %v1212 = vunpack.c.l.b16 %v1170
        %v1213 = vunpack.c.l.b16 %v1171
        %v1214 = vunpack.c.l.b16 %v1172
        %v1215 = vunpack.c.l.b16 %v1173
        %v1216 = vunpack.c.l.b16 %v1174
        %v1217 = vunpack.c.l.b16 %v1175
        %v1218 = vunpack.c.l.b16 %v1176
        %v1219 = vpack.c.b16 %v1204, %v1203
        %v1220 = vpack.c.b16 %v1206, %v1205
        %v1221 = vpack.c.b16 %v1208, %v1207
        %v1222 = vpack.c.b16 %v1210, %v1209
        %v1223 = vpack.c.b16 %v1212, %v1211
        %v1224 = vpack.c.b16 %v1214, %v1213
        %v1225 = vpack.c.b16 %v1216, %v1215
        %v1226 = vpack.c.b16 %v1218, %v1217
        %1235 = vmatprep.subr.bf16.mxu0 0
        %1236 = vmatpush1.bf16.msra.mxu0 %v1219
        %1237 = vmatprep.subr.bf16.mxu0 0
        %1238 = vmatpush1.bf16.msra.mxu0 %v1220
        %1239 = vmatprep.subr.bf16.mxu0 0
        %1240 = vmatpush1.bf16.msra.mxu0 %v1221
        %1241 = vmatprep.subr.bf16.mxu0 0
        %1242 = vmatpush1.bf16.msra.mxu0 %v1222
        %1243 = vmatprep.subr.bf16.mxu0 0
        %1244 = vmatpush1.bf16.msra.mxu0 %v1223
        %1245 = vmatprep.subr.bf16.mxu0 0
        %1246 = vmatpush1.bf16.msra.mxu0 %v1224
        %1247 = vmatprep.subr.bf16.mxu0 0
        %1248 = vmatpush1.bf16.msra.mxu0 %v1225
        %1249 = vmatprep.subr.bf16.mxu0 0
        %1250 = vmatpush1.bf16.msra.mxu0 %v1226
        %1251 = vmatprep.subr.bf16.mxu0 0
        %1252 = vmatpush1.bf16.msra.mxu0 0
        %1253 = vmatprep.subr.bf16.mxu0 0
        %1254 = vmatpush1.bf16.msra.mxu0 0
        %1255 = vmatprep.subr.bf16.mxu0 0
        %1256 = vmatpush1.bf16.msra.mxu0 0
        %1257 = vmatprep.subr.bf16.mxu0 0
        %1258 = vmatpush1.bf16.msra.mxu0 0
        %1259 = vmatprep.subr.bf16.mxu0 0
        %1260 = vmatpush1.bf16.msra.mxu0 0
        %1261 = vmatprep.subr.bf16.mxu0 0
        %1262 = vmatpush1.bf16.msra.mxu0 0
        %1263 = vmatprep.subr.bf16.mxu0 0
        %1264 = vmatpush1.bf16.msra.mxu0 0
        %1265 = vmatprep.subr.bf16.mxu0 0
        %1266 = vmatpush1.bf16.msra.mxu0 0
        %1267 = vmatprep.mubr.bf16.mxu0 0
        %1268 = vmatmul.mubr.bf16.gmra.mrb[0].mxu0 %v1183
        %v1269 = vpop.f32.mrb[0].mxu0
        %v1270 = vadd.f32 0.0, %v1269
        %v1271 = vpop.f32.mrb[0].mxu0
        %v1272 = vpop.f32.mrb[0].mxu0
        %v1273 = vadd.f32 0.0, %v1272
        %v1274 = vpop.f32.mrb[0].mxu0
        %1275 = vmatprep.mubr.bf16.mxu0 0
        %1276 = vmatmul.mubr.bf16.gmra.mrb[0].mxu0 %v1184
        %v1277 = vpop.f32.mrb[0].mxu0
        %v1278 = vadd.f32 0.0, %v1277
        %v1279 = vpop.f32.mrb[0].mxu0
        %v1280 = vpop.f32.mrb[0].mxu0
        %v1281 = vadd.f32 0.0, %v1280
        %v1282 = vpop.f32.mrb[0].mxu0
        %1283 = vdwg.mxu0
        %v1284 = vadd.f32 %v1157, %v1270
        %v1285 = vadd.f32 %v1158, %v1273
        %v1286 = vadd.f32 %v1159, %v1278
        %v1287 = vadd.f32 %v1160, %v1281
        %v1288 = vld [vmem:[#allocation5 + $0x200] sm:$0xf]
        %v1289 = vld [vmem:[#allocation5 + $0x204] sm:$0xf]
        %v1290 = vld [vmem:[#allocation5 + $0x208] sm:$0xf]
        %v1291 = vld [vmem:[#allocation5 + $0x20c] sm:$0xf]
        %v1292 = vld [vmem:[#allocation5 + $0x210] sm:$0xf]
        %v1293 = vld [vmem:[#allocation5 + $0x214] sm:$0xf]
        %v1294 = vld [vmem:[#allocation5 + $0x218] sm:$0xf]
        %v1295 = vld [vmem:[#allocation5 + $0x21c] sm:$0xf]
        %v1296 = vld [vmem:[#allocation5 + $0x220] sm:$0xf]
        %v1297 = vld [vmem:[#allocation5 + $0x224] sm:$0xf]
        %v1298 = vld [vmem:[#allocation5 + $0x228] sm:$0xf]
        %v1299 = vld [vmem:[#allocation5 + $0x22c] sm:$0xf]
        %v1300 = vld [vmem:[#allocation5 + $0x230] sm:$0xf]
        %v1301 = vld [vmem:[#allocation5 + $0x234] sm:$0xf]
        %v1302 = vld [vmem:[#allocation5 + $0x238] sm:$0xf]
        %v1303 = vld [vmem:[#allocation5 + $0x23c] sm:$0xf]
        %v1304 = vpack.c.b16 %v1180, %v1180
        %v1306 = vshrl.u32 %v1056, 16
        %v1308 = vshll.u32 %v1056, 16
        %v1310 = vrot.slane %v1308, 1
        %v1311 = vor.u32 %v1306, %v1310
        %v1313 = vshll.u32 %v1057, 16
        %v1315 = vrot.slane %v1313, 1
        %v1316 = vsel %vm490, %v1311, %v1315
        %v1317 = vshrl.u32 %v1057, 16
        %v1319 = vor.u32 %v1317, %v1315
        %v1321 = vshll.u32 %v1304, 16
        %v1323 = vrot.slane %v1321, 1
        %v1324 = vsel %vm490, %v1319, %v1323
        %v1343 = vunpack.c.l.b16 %v1288
        %v1344 = vunpack.c.l.b16 %v1289
        %v1345 = vunpack.c.l.b16 %v1290
        %v1346 = vunpack.c.l.b16 %v1291
        %v1347 = vunpack.c.l.b16 %v1292
        %v1348 = vunpack.c.l.b16 %v1293
        %v1349 = vunpack.c.l.b16 %v1294
        %v1350 = vunpack.c.l.b16 %v1295
        %v1351 = vunpack.c.l.b16 %v1296
        %v1352 = vunpack.c.l.b16 %v1297
        %v1353 = vunpack.c.l.b16 %v1298
        %v1354 = vunpack.c.l.b16 %v1299
        %v1355 = vunpack.c.l.b16 %v1300
        %v1356 = vunpack.c.l.b16 %v1301
        %v1357 = vunpack.c.l.b16 %v1302
        %v1358 = vunpack.c.l.b16 %v1303
        %v1359 = vpack.c.b16 %v1344, %v1343
        %v1360 = vpack.c.b16 %v1346, %v1345
        %v1361 = vpack.c.b16 %v1348, %v1347
        %v1362 = vpack.c.b16 %v1350, %v1349
        %v1363 = vpack.c.b16 %v1352, %v1351
        %v1364 = vpack.c.b16 %v1354, %v1353
        %v1365 = vpack.c.b16 %v1356, %v1355
        %v1366 = vpack.c.b16 %v1358, %v1357
        %1375 = vmatprep.subr.bf16.mxu0 0
        %1376 = vmatpush1.bf16.msra.mxu0 %v1359
        %1377 = vmatprep.subr.bf16.mxu0 0
        %1378 = vmatpush1.bf16.msra.mxu0 %v1360
        %1379 = vmatprep.subr.bf16.mxu0 0
        %1380 = vmatpush1.bf16.msra.mxu0 %v1361
        %1381 = vmatprep.subr.bf16.mxu0 0
        %1382 = vmatpush1.bf16.msra.mxu0 %v1362
        %1383 = vmatprep.subr.bf16.mxu0 0
        %1384 = vmatpush1.bf16.msra.mxu0 %v1363
        %1385 = vmatprep.subr.bf16.mxu0 0
        %1386 = vmatpush1.bf16.msra.mxu0 %v1364
        %1387 = vmatprep.subr.bf16.mxu0 0
        %1388 = vmatpush1.bf16.msra.mxu0 %v1365
        %1389 = vmatprep.subr.bf16.mxu0 0
        %1390 = vmatpush1.bf16.msra.mxu0 %v1366
        %1391 = vmatprep.subr.bf16.mxu0 0
        %1392 = vmatpush1.bf16.msra.mxu0 0
        %1393 = vmatprep.subr.bf16.mxu0 0
        %1394 = vmatpush1.bf16.msra.mxu0 0
        %1395 = vmatprep.subr.bf16.mxu0 0
        %1396 = vmatpush1.bf16.msra.mxu0 0
        %1397 = vmatprep.subr.bf16.mxu0 0
        %1398 = vmatpush1.bf16.msra.mxu0 0
        %1399 = vmatprep.subr.bf16.mxu0 0
        %1400 = vmatpush1.bf16.msra.mxu0 0
        %1401 = vmatprep.subr.bf16.mxu0 0
        %1402 = vmatpush1.bf16.msra.mxu0 0
        %1403 = vmatprep.subr.bf16.mxu0 0
        %1404 = vmatpush1.bf16.msra.mxu0 0
        %1405 = vmatprep.subr.bf16.mxu0 0
        %1406 = vmatpush1.bf16.msra.mxu0 0
        %1407 = vmatprep.mubr.bf16.mxu0 0
        %1408 = vmatmul.mubr.bf16.gmra.mrb[0].mxu0 %v1316
        %v1409 = vpop.f32.mrb[0].mxu0
        %v1410 = vadd.f32 0.0, %v1409
        %v1411 = vpop.f32.mrb[0].mxu0
        %v1412 = vpop.f32.mrb[0].mxu0
        %v1413 = vadd.f32 0.0, %v1412
        %v1414 = vpop.f32.mrb[0].mxu0
        %1415 = vmatprep.mubr.bf16.mxu0 0
        %1416 = vmatmul.mubr.bf16.gmra.mrb[0].mxu0 %v1324
        %v1417 = vpop.f32.mrb[0].mxu0
        %v1418 = vadd.f32 0.0, %v1417
        %v1419 = vpop.f32.mrb[0].mxu0
        %v1420 = vpop.f32.mrb[0].mxu0
        %v1421 = vadd.f32 0.0, %v1420
        %v1422 = vpop.f32.mrb[0].mxu0
        %1423 = vdwg.mxu0
        %v1424 = vadd.f32 %v1284, %v1410
        %v1425 = vadd.f32 %v1285, %v1413
        %v1426 = vadd.f32 %v1286, %v1418
        %v1427 = vadd.f32 %v1287, %v1421
        %v1429 = vlaneseq
        %v1430 = vshrl.u32 %v1429, 7
        %v1431 = vsub.s32 0, %v1430
        %v1432 = vrot.slane %v209, %v1431
        %v1434 = vadd.f32 %v1424, %v1432
        %v1435 = vadd.f32 %v1425, %v1432
        %v1436 = vadd.f32 %v1426, %v1432
        %v1437 = vadd.f32 %v1427, %v1432
        %v1438 = vmax.f32 %v1434, 0.0
        %v1439 = vmax.f32 %v1435, 0.0
        %v1440 = vmax.f32 %v1436, 0.0
        %v1441 = vmax.f32 %v1437, 0.0
        %1443 = vset.pattern.permute.xlu0 0
        %1444 = vperm.xlu0 %1443, %v210
        %v1445 = vpop.permute.xlu0 %1444
        %1448 = vset.pattern.permute.xlu0 0
        %1449 = vperm.xlu0 %1448, %v211
        %v1450 = vpop.permute.xlu0 %1449
        %1453 = vset.pattern.permute.xlu0 0
        %1454 = vperm.xlu0 %1453, %v212
        %v1455 = vpop.permute.xlu0 %1454
        %1458 = vset.pattern.permute.xlu0 0
        %1459 = vperm.xlu0 %1458, %v213
        %v1460 = vpop.permute.xlu0 %1459
        %v1462 = vmul.f32 %v1438, %v1445
        %v1463 = vmul.f32 %v1439, %v1450
        %v1464 = vmul.f32 %v1440, %v1455
        %v1465 = vmul.f32 %v1441, %v1460
        %v1466 = vpack.c.bf16 %v1463, %v1462
        %v1467 = vpack.c.bf16 %v1465, %v1464
        %v1470 = vunpack.c.l.b16 %v1466
        %v1471 = vunpack.c.h.b16 %v1466
        %v1472 = vunpack.c.l.b16 %v1467
        %v1473 = vunpack.c.h.b16 %v1467
        %v1474 = vpack.c.b16 %v1470, %v1470
        %v1475 = vpack.c.b16 %v1471, %v1471
        %v1476 = vpack.c.b16 %v1472, %v1472
        %v1477 = vpack.c.b16 %v1473, %v1473
        %1482 = vst [vmem:[%s205] sm:$0xf] %v1474
        %1483 = vst [vmem:[%s205 + $0x4] sm:$0xf] %v1475
        %1484 = vst [vmem:[%s205 + $0x8] sm:$0xf] %v1476
        %1485 = vst [vmem:[%s205 + $0xc] sm:$0xf] %v1477
        %s1486 = sadd.s32 %s208, 1
        %s1487 = smul.u32 %s1486, 2
        %s1488 = smul.u32 %s1487, 8
        %s1489 = smul.addr %s1488, 4
        %s1490 = scalar_lea.vmem [#allocation2], %s1489
        %v1491 = vld [vmem:[%s1490] sm:$0xf]
        %v1492 = vld [vmem:[%s1490 + $0x4] sm:$0xf]
        %v1493 = vld [vmem:[%s1490 + $0x8] sm:$0xf]
        %v1494 = vld [vmem:[%s1490 + $0xc] sm:$0xf]
        %v1495 = vld [vmem:[%s1490 + $0x10] sm:$0xf]
        %v1496 = vld [vmem:[%s1490 + $0x14] sm:$0xf]
        %v1497 = vld [vmem:[%s1490 + $0x18] sm:$0xf]
        %v1498 = vld [vmem:[#allocation5] sm:$0xf]
        %v1499 = vld [vmem:[#allocation5 + $0x4] sm:$0xf]
        %v1500 = vld [vmem:[#allocation5 + $0x8] sm:$0xf]
        %v1501 = vld [vmem:[#allocation5 + $0xc] sm:$0xf]
        %v1502 = vld [vmem:[#allocation5 + $0x10] sm:$0xf]
        %v1503 = vld [vmem:[#allocation5 + $0x14] sm:$0xf]
        %v1504 = vld [vmem:[#allocation5 + $0x18] sm:$0xf]
        %v1505 = vld [vmem:[#allocation5 + $0x1c] sm:$0xf]
        %v1506 = vld [vmem:[#allocation5 + $0x20] sm:$0xf]
        %v1507 = vld [vmem:[#allocation5 + $0x24] sm:$0xf]
        %v1508 = vld [vmem:[#allocation5 + $0x28] sm:$0xf]
        %v1509 = vld [vmem:[#allocation5 + $0x2c] sm:$0xf]
        %v1510 = vld [vmem:[#allocation5 + $0x30] sm:$0xf]
        %v1511 = vld [vmem:[#allocation5 + $0x34] sm:$0xf]
        %v1512 = vld [vmem:[#allocation5 + $0x38] sm:$0xf]
        %v1513 = vld [vmem:[#allocation5 + $0x3c] sm:$0xf]
        %v1514 = vld [vmem:[#allocation5 + $0x40] sm:$0xf]
        %v1515 = vld [vmem:[#allocation5 + $0x44] sm:$0xf]
        %v1516 = vld [vmem:[#allocation5 + $0x48] sm:$0xf]
        %v1517 = vld [vmem:[#allocation5 + $0x4c] sm:$0xf]
        %v1518 = vld [vmem:[#allocation5 + $0x50] sm:$0xf]
        %v1519 = vld [vmem:[#allocation5 + $0x54] sm:$0xf]
        %v1520 = vld [vmem:[#allocation5 + $0x58] sm:$0xf]
        %v1521 = vld [vmem:[#allocation5 + $0x5c] sm:$0xf]
        %v1522 = vld [vmem:[#allocation5 + $0x60] sm:$0xf]
        %v1523 = vld [vmem:[#allocation5 + $0x64] sm:$0xf]
        %v1524 = vld [vmem:[#allocation5 + $0x68] sm:$0xf]
        %v1525 = vld [vmem:[#allocation5 + $0x6c] sm:$0xf]
        %v1526 = vld [vmem:[#allocation5 + $0x70] sm:$0xf]
        %v1527 = vld [vmem:[#allocation5 + $0x74] sm:$0xf]
        %v1528 = vld [vmem:[#allocation5 + $0x78] sm:$0xf]
        %v1529 = vld [vmem:[#allocation5 + $0x7c] sm:$0xf]
        %v1534 = vunpack.c.l.b16 %v1494
        %v1535 = vunpack.c.l.b16 %v1495
        %v1536 = vunpack.c.l.b16 %v1496
        %v1537 = vunpack.c.l.b16 %v1497
        %v1538 = vpack.c.b16 %v1535, %v1534
        %v1539 = vpack.c.b16 %v1537, %v1536
        %v1558 = vunpack.c.l.b16 %v1514
        %v1559 = vunpack.c.l.b16 %v1515
        %v1560 = vunpack.c.l.b16 %v1516
        %v1561 = vunpack.c.l.b16 %v1517
        %v1562 = vunpack.c.l.b16 %v1518
        %v1563 = vunpack.c.l.b16 %v1519
        %v1564 = vunpack.c.l.b16 %v1520
        %v1565 = vunpack.c.l.b16 %v1521
        %v1566 = vunpack.c.l.b16 %v1522
        %v1567 = vunpack.c.l.b16 %v1523
        %v1568 = vunpack.c.l.b16 %v1524
        %v1569 = vunpack.c.l.b16 %v1525
        %v1570 = vunpack.c.l.b16 %v1526
        %v1571 = vunpack.c.l.b16 %v1527
        %v1572 = vunpack.c.l.b16 %v1528
        %v1573 = vunpack.c.l.b16 %v1529
        %v1574 = vpack.c.b16 %v1559, %v1558
        %v1575 = vpack.c.b16 %v1561, %v1560
        %v1576 = vpack.c.b16 %v1563, %v1562
        %v1577 = vpack.c.b16 %v1565, %v1564
        %v1578 = vpack.c.b16 %v1567, %v1566
        %v1579 = vpack.c.b16 %v1569, %v1568
        %v1580 = vpack.c.b16 %v1571, %v1570
        %v1581 = vpack.c.b16 %v1573, %v1572
        %1590 = vmatprep.subr.bf16.mxu0 0
        %1591 = vmatpush1.bf16.msra.mxu0 %v1574
        %1592 = vmatprep.subr.bf16.mxu0 0
        %1593 = vmatpush1.bf16.msra.mxu0 %v1575
        %1594 = vmatprep.subr.bf16.mxu0 0
        %1595 = vmatpush1.bf16.msra.mxu0 %v1576
        %1596 = vmatprep.subr.bf16.mxu0 0
        %1597 = vmatpush1.bf16.msra.mxu0 %v1577
        %1598 = vmatprep.subr.bf16.mxu0 0
        %1599 = vmatpush1.bf16.msra.mxu0 %v1578
        %1600 = vmatprep.subr.bf16.mxu0 0
        %1601 = vmatpush1.bf16.msra.mxu0 %v1579
        %1602 = vmatprep.subr.bf16.mxu0 0
        %1603 = vmatpush1.bf16.msra.mxu0 %v1580
        %1604 = vmatprep.subr.bf16.mxu0 0
        %1605 = vmatpush1.bf16.msra.mxu0 %v1581
        %1606 = vmatprep.subr.bf16.mxu0 0
        %1607 = vmatpush1.bf16.msra.mxu0 0
        %1608 = vmatprep.subr.bf16.mxu0 0
        %1609 = vmatpush1.bf16.msra.mxu0 0
        %1610 = vmatprep.subr.bf16.mxu0 0
        %1611 = vmatpush1.bf16.msra.mxu0 0
        %1612 = vmatprep.subr.bf16.mxu0 0
        %1613 = vmatpush1.bf16.msra.mxu0 0
        %1614 = vmatprep.subr.bf16.mxu0 0
        %1615 = vmatpush1.bf16.msra.mxu0 0
        %1616 = vmatprep.subr.bf16.mxu0 0
        %1617 = vmatpush1.bf16.msra.mxu0 0
        %1618 = vmatprep.subr.bf16.mxu0 0
        %1619 = vmatpush1.bf16.msra.mxu0 0
        %1620 = vmatprep.subr.bf16.mxu0 0
        %1621 = vmatpush1.bf16.msra.mxu0 0
        %1622 = vmatprep.mubr.bf16.mxu0 0
        %1623 = vmatmul.mubr.bf16.gmra.mrb[0].mxu0 %v1538
        %v1624 = vpop.f32.mrb[0].mxu0
        %v1625 = vadd.f32 0.0, %v1624
        %v1626 = vpop.f32.mrb[0].mxu0
        %v1627 = vpop.f32.mrb[0].mxu0
        %v1628 = vadd.f32 0.0, %v1627
        %v1629 = vpop.f32.mrb[0].mxu0
        %1630 = vmatprep.mubr.bf16.mxu0 0
        %1631 = vmatmul.mubr.bf16.gmra.mrb[0].mxu0 %v1539
        %v1632 = vpop.f32.mrb[0].mxu0
        %v1633 = vadd.f32 0.0, %v1632
        %v1634 = vpop.f32.mrb[0].mxu0
        %v1635 = vpop.f32.mrb[0].mxu0
        %v1636 = vadd.f32 0.0, %v1635
        %v1637 = vpop.f32.mrb[0].mxu0
        %1638 = vdwg.mxu0
        %v1642 = vunpack.c.l.b16 %v1491
        %v1643 = vunpack.c.l.b16 %v1492
        %v1644 = vunpack.c.l.b16 %v1493
        %v1645 = vpack.c.b16 %v1643, %v1642
        %v1646 = vpack.c.b16 %v1534, %v1644
        %v1665 = vunpack.c.l.b16 %v1498
        %v1666 = vunpack.c.l.b16 %v1499
        %v1667 = vunpack.c.l.b16 %v1500
        %v1668 = vunpack.c.l.b16 %v1501
        %v1669 = vunpack.c.l.b16 %v1502
        %v1670 = vunpack.c.l.b16 %v1503
        %v1671 = vunpack.c.l.b16 %v1504
        %v1672 = vunpack.c.l.b16 %v1505
        %v1673 = vunpack.c.l.b16 %v1506
        %v1674 = vunpack.c.l.b16 %v1507
        %v1675 = vunpack.c.l.b16 %v1508
        %v1676 = vunpack.c.l.b16 %v1509
        %v1677 = vunpack.c.l.b16 %v1510
        %v1678 = vunpack.c.l.b16 %v1511
        %v1679 = vunpack.c.l.b16 %v1512
        %v1680 = vunpack.c.l.b16 %v1513
        %v1681 = vpack.c.b16 %v1666, %v1665
        %v1682 = vpack.c.b16 %v1668, %v1667
        %v1683 = vpack.c.b16 %v1670, %v1669
        %v1684 = vpack.c.b16 %v1672, %v1671
        %v1685 = vpack.c.b16 %v1674, %v1673
        %v1686 = vpack.c.b16 %v1676, %v1675
        %v1687 = vpack.c.b16 %v1678, %v1677
        %v1688 = vpack.c.b16 %v1680, %v1679
        %1697 = vmatprep.subr.bf16.mxu0 0
        %1698 = vmatpush1.bf16.msra.mxu0 %v1681
        %1699 = vmatprep.subr.bf16.mxu0 0
        %1700 = vmatpush1.bf16.msra.mxu0 %v1682
        %1701 = vmatprep.subr.bf16.mxu0 0
        %1702 = vmatpush1.bf16.msra.mxu0 %v1683
        %1703 = vmatprep.subr.bf16.mxu0 0
        %1704 = vmatpush1.bf16.msra.mxu0 %v1684
        %1705 = vmatprep.subr.bf16.mxu0 0
        %1706 = vmatpush1.bf16.msra.mxu0 %v1685
        %1707 = vmatprep.subr.bf16.mxu0 0
        %1708 = vmatpush1.bf16.msra.mxu0 %v1686
        %1709 = vmatprep.subr.bf16.mxu0 0
        %1710 = vmatpush1.bf16.msra.mxu0 %v1687
        %1711 = vmatprep.subr.bf16.mxu0 0
        %1712 = vmatpush1.bf16.msra.mxu0 %v1688
        %1713 = vmatprep.subr.bf16.mxu0 0
        %1714 = vmatpush1.bf16.msra.mxu0 0
        %1715 = vmatprep.subr.bf16.mxu0 0
        %1716 = vmatpush1.bf16.msra.mxu0 0
        %1717 = vmatprep.subr.bf16.mxu0 0
        %1718 = vmatpush1.bf16.msra.mxu0 0
        %1719 = vmatprep.subr.bf16.mxu0 0
        %1720 = vmatpush1.bf16.msra.mxu0 0
        %1721 = vmatprep.subr.bf16.mxu0 0
        %1722 = vmatpush1.bf16.msra.mxu0 0
        %1723 = vmatprep.subr.bf16.mxu0 0
        %1724 = vmatpush1.bf16.msra.mxu0 0
        %1725 = vmatprep.subr.bf16.mxu0 0
        %1726 = vmatpush1.bf16.msra.mxu0 0
        %1727 = vmatprep.subr.bf16.mxu0 0
        %1728 = vmatpush1.bf16.msra.mxu0 0
        %1729 = vmatprep.mubr.bf16.mxu0 0
        %1730 = vmatmul.mubr.bf16.gmra.mrb[0].mxu0 %v1645
        %v1731 = vpop.f32.mrb[0].mxu0
        %v1732 = vadd.f32 %v1625, %v1731
        %v1733 = vpop.f32.mrb[0].mxu0
        %v1734 = vpop.f32.mrb[0].mxu0
        %v1735 = vadd.f32 %v1628, %v1734
        %v1736 = vpop.f32.mrb[0].mxu0
        %1737 = vmatprep.mubr.bf16.mxu0 0
        %1738 = vmatmul.mubr.bf16.gmra.mrb[0].mxu0 %v1646
        %v1739 = vpop.f32.mrb[0].mxu0
        %v1740 = vadd.f32 %v1633, %v1739
        %v1741 = vpop.f32.mrb[0].mxu0
        %v1742 = vpop.f32.mrb[0].mxu0
        %v1743 = vadd.f32 %v1636, %v1742
        %v1744 = vpop.f32.mrb[0].mxu0
        %1745 = vdwg.mxu0
        %v1746 = vld [vmem:[#allocation5 + $0x80] sm:$0xf]
        %v1747 = vld [vmem:[#allocation5 + $0x84] sm:$0xf]
        %v1748 = vld [vmem:[#allocation5 + $0x88] sm:$0xf]
        %v1749 = vld [vmem:[#allocation5 + $0x8c] sm:$0xf]
        %v1750 = vld [vmem:[#allocation5 + $0x90] sm:$0xf]
        %v1751 = vld [vmem:[#allocation5 + $0x94] sm:$0xf]
        %v1752 = vld [vmem:[#allocation5 + $0x98] sm:$0xf]
        %v1753 = vld [vmem:[#allocation5 + $0x9c] sm:$0xf]
        %v1754 = vld [vmem:[#allocation5 + $0xa0] sm:$0xf]
        %v1755 = vld [vmem:[#allocation5 + $0xa4] sm:$0xf]
        %v1756 = vld [vmem:[#allocation5 + $0xa8] sm:$0xf]
        %v1757 = vld [vmem:[#allocation5 + $0xac] sm:$0xf]
        %v1758 = vld [vmem:[#allocation5 + $0xb0] sm:$0xf]
        %v1759 = vld [vmem:[#allocation5 + $0xb4] sm:$0xf]
        %v1760 = vld [vmem:[#allocation5 + $0xb8] sm:$0xf]
        %v1761 = vld [vmem:[#allocation5 + $0xbc] sm:$0xf]
        %v1762 = vpack.c.b16 %v1535, %v1535
        %v1764 = vshrl.u32 %v1645, 16
        %v1766 = vshll.u32 %v1645, 16
        %v1768 = vrot.slane %v1766, 1
        %v1769 = vor.u32 %v1764, %v1768
        %v1771 = vshll.u32 %v1646, 16
        %v1773 = vrot.slane %v1771, 1
        %v1774 = vsel %vm490, %v1769, %v1773
        %v1775 = vshrl.u32 %v1646, 16
        %v1777 = vor.u32 %v1775, %v1773
        %v1779 = vshll.u32 %v1762, 16
        %v1781 = vrot.slane %v1779, 1
        %v1782 = vsel %vm490, %v1777, %v1781
        %v1801 = vunpack.c.l.b16 %v1746
        %v1802 = vunpack.c.l.b16 %v1747
        %v1803 = vunpack.c.l.b16 %v1748
        %v1804 = vunpack.c.l.b16 %v1749
        %v1805 = vunpack.c.l.b16 %v1750
        %v1806 = vunpack.c.l.b16 %v1751
        %v1807 = vunpack.c.l.b16 %v1752
        %v1808 = vunpack.c.l.b16 %v1753
        %v1809 = vunpack.c.l.b16 %v1754
        %v1810 = vunpack.c.l.b16 %v1755
        %v1811 = vunpack.c.l.b16 %v1756
        %v1812 = vunpack.c.l.b16 %v1757
        %v1813 = vunpack.c.l.b16 %v1758
        %v1814 = vunpack.c.l.b16 %v1759
        %v1815 = vunpack.c.l.b16 %v1760
        %v1816 = vunpack.c.l.b16 %v1761
        %v1817 = vpack.c.b16 %v1802, %v1801
        %v1818 = vpack.c.b16 %v1804, %v1803
        %v1819 = vpack.c.b16 %v1806, %v1805
        %v1820 = vpack.c.b16 %v1808, %v1807
        %v1821 = vpack.c.b16 %v1810, %v1809
        %v1822 = vpack.c.b16 %v1812, %v1811
        %v1823 = vpack.c.b16 %v1814, %v1813
        %v1824 = vpack.c.b16 %v1816, %v1815
        %1833 = vmatprep.subr.bf16.mxu0 0
        %1834 = vmatpush1.bf16.msra.mxu0 %v1817
        %1835 = vmatprep.subr.bf16.mxu0 0
        %1836 = vmatpush1.bf16.msra.mxu0 %v1818
        %1837 = vmatprep.subr.bf16.mxu0 0
        %1838 = vmatpush1.bf16.msra.mxu0 %v1819
        %1839 = vmatprep.subr.bf16.mxu0 0
        %1840 = vmatpush1.bf16.msra.mxu0 %v1820
        %1841 = vmatprep.subr.bf16.mxu0 0
        %1842 = vmatpush1.bf16.msra.mxu0 %v1821
        %1843 = vmatprep.subr.bf16.mxu0 0
        %1844 = vmatpush1.bf16.msra.mxu0 %v1822
        %1845 = vmatprep.subr.bf16.mxu0 0
        %1846 = vmatpush1.bf16.msra.mxu0 %v1823
        %1847 = vmatprep.subr.bf16.mxu0 0
        %1848 = vmatpush1.bf16.msra.mxu0 %v1824
        %1849 = vmatprep.subr.bf16.mxu0 0
        %1850 = vmatpush1.bf16.msra.mxu0 0
        %1851 = vmatprep.subr.bf16.mxu0 0
        %1852 = vmatpush1.bf16.msra.mxu0 0
        %1853 = vmatprep.subr.bf16.mxu0 0
        %1854 = vmatpush1.bf16.msra.mxu0 0
        %1855 = vmatprep.subr.bf16.mxu0 0
        %1856 = vmatpush1.bf16.msra.mxu0 0
        %1857 = vmatprep.subr.bf16.mxu0 0
        %1858 = vmatpush1.bf16.msra.mxu0 0
        %1859 = vmatprep.subr.bf16.mxu0 0
        %1860 = vmatpush1.bf16.msra.mxu0 0
        %1861 = vmatprep.subr.bf16.mxu0 0
        %1862 = vmatpush1.bf16.msra.mxu0 0
        %1863 = vmatprep.subr.bf16.mxu0 0
        %1864 = vmatpush1.bf16.msra.mxu0 0
        %1865 = vmatprep.mubr.bf16.mxu0 0
        %1866 = vmatmul.mubr.bf16.gmra.mrb[0].mxu0 %v1774
        %v1867 = vpop.f32.mrb[0].mxu0
        %v1868 = vadd.f32 0.0, %v1867
        %v1869 = vpop.f32.mrb[0].mxu0
        %v1870 = vpop.f32.mrb[0].mxu0
        %v1871 = vadd.f32 0.0, %v1870
        %v1872 = vpop.f32.mrb[0].mxu0
        %1873 = vmatprep.mubr.bf16.mxu0 0
        %1874 = vmatmul.mubr.bf16.gmra.mrb[0].mxu0 %v1782
        %v1875 = vpop.f32.mrb[0].mxu0
        %v1876 = vadd.f32 0.0, %v1875
        %v1877 = vpop.f32.mrb[0].mxu0
        %v1878 = vpop.f32.mrb[0].mxu0
        %v1879 = vadd.f32 0.0, %v1878
        %v1880 = vpop.f32.mrb[0].mxu0
        %1881 = vdwg.mxu0
        %v1882 = vadd.f32 %v1732, %v1868
        %v1883 = vadd.f32 %v1735, %v1871
        %v1884 = vadd.f32 %v1740, %v1876
        %v1885 = vadd.f32 %v1743, %v1879
        %s1886 = sadd.s32 %s1487, 1
        %s1887 = smul.u32 %s1886, 8
        %s1888 = smul.addr %s1887, 4
        %s1889 = scalar_lea.vmem [#allocation2], %s1888
        %v1890 = vld [vmem:[%s1889] sm:$0xf]
        %v1891 = vld [vmem:[%s1889 + $0x4] sm:$0xf]
        %v1892 = vld [vmem:[%s1889 + $0x8] sm:$0xf]
        %v1893 = vld [vmem:[%s1889 + $0xc] sm:$0xf]
        %v1894 = vld [vmem:[%s1889 + $0x10] sm:$0xf]
        %v1895 = vld [vmem:[%s1889 + $0x14] sm:$0xf]
        %v1896 = vld [vmem:[%s1889 + $0x18] sm:$0xf]
        %v1897 = vld [vmem:[#allocation5 + $0xc0] sm:$0xf]
        %v1898 = vld [vmem:[#allocation5 + $0xc4] sm:$0xf]
        %v1899 = vld [vmem:[#allocation5 + $0xc8] sm:$0xf]
        %v1900 = vld [vmem:[#allocation5 + $0xcc] sm:$0xf]
        %v1901 = vld [vmem:[#allocation5 + $0xd0] sm:$0xf]
        %v1902 = vld [vmem:[#allocation5 + $0xd4] sm:$0xf]
        %v1903 = vld [vmem:[#allocation5 + $0xd8] sm:$0xf]
        %v1904 = vld [vmem:[#allocation5 + $0xdc] sm:$0xf]
        %v1905 = vld [vmem:[#allocation5 + $0xe0] sm:$0xf]
        %v1906 = vld [vmem:[#allocation5 + $0xe4] sm:$0xf]
        %v1907 = vld [vmem:[#allocation5 + $0xe8] sm:$0xf]
        %v1908 = vld [vmem:[#allocation5 + $0xec] sm:$0xf]
        %v1909 = vld [vmem:[#allocation5 + $0xf0] sm:$0xf]
        %v1910 = vld [vmem:[#allocation5 + $0xf4] sm:$0xf]
        %v1911 = vld [vmem:[#allocation5 + $0xf8] sm:$0xf]
        %v1912 = vld [vmem:[#allocation5 + $0xfc] sm:$0xf]
        %v1917 = vunpack.c.l.b16 %v1890
        %v1918 = vunpack.c.l.b16 %v1891
        %v1919 = vunpack.c.l.b16 %v1892
        %v1920 = vunpack.c.l.b16 %v1893
        %v1921 = vpack.c.b16 %v1918, %v1917
        %v1922 = vpack.c.b16 %v1920, %v1919
        %v1941 = vunpack.c.l.b16 %v1897
        %v1942 = vunpack.c.l.b16 %v1898
        %v1943 = vunpack.c.l.b16 %v1899
        %v1944 = vunpack.c.l.b16 %v1900
        %v1945 = vunpack.c.l.b16 %v1901
        %v1946 = vunpack.c.l.b16 %v1902
        %v1947 = vunpack.c.l.b16 %v1903
        %v1948 = vunpack.c.l.b16 %v1904
        %v1949 = vunpack.c.l.b16 %v1905
        %v1950 = vunpack.c.l.b16 %v1906
        %v1951 = vunpack.c.l.b16 %v1907
        %v1952 = vunpack.c.l.b16 %v1908
        %v1953 = vunpack.c.l.b16 %v1909
        %v1954 = vunpack.c.l.b16 %v1910
        %v1955 = vunpack.c.l.b16 %v1911
        %v1956 = vunpack.c.l.b16 %v1912
        %v1957 = vpack.c.b16 %v1942, %v1941
        %v1958 = vpack.c.b16 %v1944, %v1943
        %v1959 = vpack.c.b16 %v1946, %v1945
        %v1960 = vpack.c.b16 %v1948, %v1947
        %v1961 = vpack.c.b16 %v1950, %v1949
        %v1962 = vpack.c.b16 %v1952, %v1951
        %v1963 = vpack.c.b16 %v1954, %v1953
        %v1964 = vpack.c.b16 %v1956, %v1955
        %1973 = vmatprep.subr.bf16.mxu0 0
        %1974 = vmatpush1.bf16.msra.mxu0 %v1957
        %1975 = vmatprep.subr.bf16.mxu0 0
        %1976 = vmatpush1.bf16.msra.mxu0 %v1958
        %1977 = vmatprep.subr.bf16.mxu0 0
        %1978 = vmatpush1.bf16.msra.mxu0 %v1959
        %1979 = vmatprep.subr.bf16.mxu0 0
        %1980 = vmatpush1.bf16.msra.mxu0 %v1960
        %1981 = vmatprep.subr.bf16.mxu0 0
        %1982 = vmatpush1.bf16.msra.mxu0 %v1961
        %1983 = vmatprep.subr.bf16.mxu0 0
        %1984 = vmatpush1.bf16.msra.mxu0 %v1962
        %1985 = vmatprep.subr.bf16.mxu0 0
        %1986 = vmatpush1.bf16.msra.mxu0 %v1963
        %1987 = vmatprep.subr.bf16.mxu0 0
        %1988 = vmatpush1.bf16.msra.mxu0 %v1964
        %1989 = vmatprep.subr.bf16.mxu0 0
        %1990 = vmatpush1.bf16.msra.mxu0 0
        %1991 = vmatprep.subr.bf16.mxu0 0
        %1992 = vmatpush1.bf16.msra.mxu0 0
        %1993 = vmatprep.subr.bf16.mxu0 0
        %1994 = vmatpush1.bf16.msra.mxu0 0
        %1995 = vmatprep.subr.bf16.mxu0 0
        %1996 = vmatpush1.bf16.msra.mxu0 0
        %1997 = vmatprep.subr.bf16.mxu0 0
        %1998 = vmatpush1.bf16.msra.mxu0 0
        %1999 = vmatprep.subr.bf16.mxu0 0
        %2000 = vmatpush1.bf16.msra.mxu0 0
        %2001 = vmatprep.subr.bf16.mxu0 0
        %2002 = vmatpush1.bf16.msra.mxu0 0
        %2003 = vmatprep.subr.bf16.mxu0 0
        %2004 = vmatpush1.bf16.msra.mxu0 0
        %2005 = vmatprep.mubr.bf16.mxu0 0
        %2006 = vmatmul.mubr.bf16.gmra.mrb[0].mxu0 %v1921
        %v2007 = vpop.f32.mrb[0].mxu0
        %v2008 = vadd.f32 0.0, %v2007
        %v2009 = vpop.f32.mrb[0].mxu0
        %v2010 = vpop.f32.mrb[0].mxu0
        %v2011 = vadd.f32 0.0, %v2010
        %v2012 = vpop.f32.mrb[0].mxu0
        %2013 = vmatprep.mubr.bf16.mxu0 0
        %2014 = vmatmul.mubr.bf16.gmra.mrb[0].mxu0 %v1922
        %v2015 = vpop.f32.mrb[0].mxu0
        %v2016 = vadd.f32 0.0, %v2015
        %v2017 = vpop.f32.mrb[0].mxu0
        %v2018 = vpop.f32.mrb[0].mxu0
        %v2019 = vadd.f32 0.0, %v2018
        %v2020 = vpop.f32.mrb[0].mxu0
        %2021 = vdwg.mxu0
        %v2022 = vadd.f32 %v1882, %v2008
        %v2023 = vadd.f32 %v1883, %v2011
        %v2024 = vadd.f32 %v1884, %v2016
        %v2025 = vadd.f32 %v1885, %v2019
        %v2026 = vld [vmem:[#allocation5 + $0x100] sm:$0xf]
        %v2027 = vld [vmem:[#allocation5 + $0x104] sm:$0xf]
        %v2028 = vld [vmem:[#allocation5 + $0x108] sm:$0xf]
        %v2029 = vld [vmem:[#allocation5 + $0x10c] sm:$0xf]
        %v2030 = vld [vmem:[#allocation5 + $0x110] sm:$0xf]
        %v2031 = vld [vmem:[#allocation5 + $0x114] sm:$0xf]
        %v2032 = vld [vmem:[#allocation5 + $0x118] sm:$0xf]
        %v2033 = vld [vmem:[#allocation5 + $0x11c] sm:$0xf]
        %v2034 = vld [vmem:[#allocation5 + $0x120] sm:$0xf]
        %v2035 = vld [vmem:[#allocation5 + $0x124] sm:$0xf]
        %v2036 = vld [vmem:[#allocation5 + $0x128] sm:$0xf]
        %v2037 = vld [vmem:[#allocation5 + $0x12c] sm:$0xf]
        %v2038 = vld [vmem:[#allocation5 + $0x130] sm:$0xf]
        %v2039 = vld [vmem:[#allocation5 + $0x134] sm:$0xf]
        %v2040 = vld [vmem:[#allocation5 + $0x138] sm:$0xf]
        %v2041 = vld [vmem:[#allocation5 + $0x13c] sm:$0xf]
        %v2045 = vunpack.c.l.b16 %v1894
        %v2046 = vunpack.c.l.b16 %v1895
        %v2047 = vunpack.c.l.b16 %v1896
        %v2048 = vpack.c.b16 %v2045, %v1920
        %v2049 = vpack.c.b16 %v2047, %v2046
        %v2068 = vunpack.c.l.b16 %v2026
        %v2069 = vunpack.c.l.b16 %v2027
        %v2070 = vunpack.c.l.b16 %v2028
        %v2071 = vunpack.c.l.b16 %v2029
        %v2072 = vunpack.c.l.b16 %v2030
        %v2073 = vunpack.c.l.b16 %v2031
        %v2074 = vunpack.c.l.b16 %v2032
        %v2075 = vunpack.c.l.b16 %v2033
        %v2076 = vunpack.c.l.b16 %v2034
        %v2077 = vunpack.c.l.b16 %v2035
        %v2078 = vunpack.c.l.b16 %v2036
        %v2079 = vunpack.c.l.b16 %v2037
        %v2080 = vunpack.c.l.b16 %v2038
        %v2081 = vunpack.c.l.b16 %v2039
        %v2082 = vunpack.c.l.b16 %v2040
        %v2083 = vunpack.c.l.b16 %v2041
        %v2084 = vpack.c.b16 %v2069, %v2068
        %v2085 = vpack.c.b16 %v2071, %v2070
        %v2086 = vpack.c.b16 %v2073, %v2072
        %v2087 = vpack.c.b16 %v2075, %v2074
        %v2088 = vpack.c.b16 %v2077, %v2076
        %v2089 = vpack.c.b16 %v2079, %v2078
        %v2090 = vpack.c.b16 %v2081, %v2080
        %v2091 = vpack.c.b16 %v2083, %v2082
        %2100 = vmatprep.subr.bf16.mxu0 0
        %2101 = vmatpush1.bf16.msra.mxu0 %v2084
        %2102 = vmatprep.subr.bf16.mxu0 0
        %2103 = vmatpush1.bf16.msra.mxu0 %v2085
        %2104 = vmatprep.subr.bf16.mxu0 0
        %2105 = vmatpush1.bf16.msra.mxu0 %v2086
        %2106 = vmatprep.subr.bf16.mxu0 0
        %2107 = vmatpush1.bf16.msra.mxu0 %v2087
        %2108 = vmatprep.subr.bf16.mxu0 0
        %2109 = vmatpush1.bf16.msra.mxu0 %v2088
        %2110 = vmatprep.subr.bf16.mxu0 0
        %2111 = vmatpush1.bf16.msra.mxu0 %v2089
        %2112 = vmatprep.subr.bf16.mxu0 0
        %2113 = vmatpush1.bf16.msra.mxu0 %v2090
        %2114 = vmatprep.subr.bf16.mxu0 0
        %2115 = vmatpush1.bf16.msra.mxu0 %v2091
        %2116 = vmatprep.subr.bf16.mxu0 0
        %2117 = vmatpush1.bf16.msra.mxu0 0
        %2118 = vmatprep.subr.bf16.mxu0 0
        %2119 = vmatpush1.bf16.msra.mxu0 0
        %2120 = vmatprep.subr.bf16.mxu0 0
        %2121 = vmatpush1.bf16.msra.mxu0 0
        %2122 = vmatprep.subr.bf16.mxu0 0
        %2123 = vmatpush1.bf16.msra.mxu0 0
        %2124 = vmatprep.subr.bf16.mxu0 0
        %2125 = vmatpush1.bf16.msra.mxu0 0
        %2126 = vmatprep.subr.bf16.mxu0 0
        %2127 = vmatpush1.bf16.msra.mxu0 0
        %2128 = vmatprep.subr.bf16.mxu0 0
        %2129 = vmatpush1.bf16.msra.mxu0 0
        %2130 = vmatprep.subr.bf16.mxu0 0
        %2131 = vmatpush1.bf16.msra.mxu0 0
        %2132 = vmatprep.mubr.bf16.mxu0 0
        %2133 = vmatmul.mubr.bf16.gmra.mrb[0].mxu0 %v2048
        %v2134 = vpop.f32.mrb[0].mxu0
        %v2135 = vadd.f32 0.0, %v2134
        %v2136 = vpop.f32.mrb[0].mxu0
        %v2137 = vpop.f32.mrb[0].mxu0
        %v2138 = vadd.f32 0.0, %v2137
        %v2139 = vpop.f32.mrb[0].mxu0
        %2140 = vmatprep.mubr.bf16.mxu0 0
        %2141 = vmatmul.mubr.bf16.gmra.mrb[0].mxu0 %v2049
        %v2142 = vpop.f32.mrb[0].mxu0
        %v2143 = vadd.f32 0.0, %v2142
        %v2144 = vpop.f32.mrb[0].mxu0
        %v2145 = vpop.f32.mrb[0].mxu0
        %v2146 = vadd.f32 0.0, %v2145
        %v2147 = vpop.f32.mrb[0].mxu0
        %2148 = vdwg.mxu0
        %v2149 = vadd.f32 %v2022, %v2135
        %v2150 = vadd.f32 %v2023, %v2138
        %v2151 = vadd.f32 %v2024, %v2143
        %v2152 = vadd.f32 %v2025, %v2146
        %v2153 = vld [vmem:[#allocation5 + $0x140] sm:$0xf]
        %v2154 = vld [vmem:[#allocation5 + $0x144] sm:$0xf]
        %v2155 = vld [vmem:[#allocation5 + $0x148] sm:$0xf]
        %v2156 = vld [vmem:[#allocation5 + $0x14c] sm:$0xf]
        %v2157 = vld [vmem:[#allocation5 + $0x150] sm:$0xf]
        %v2158 = vld [vmem:[#allocation5 + $0x154] sm:$0xf]
        %v2159 = vld [vmem:[#allocation5 + $0x158] sm:$0xf]
        %v2160 = vld [vmem:[#allocation5 + $0x15c] sm:$0xf]
        %v2161 = vld [vmem:[#allocation5 + $0x160] sm:$0xf]
        %v2162 = vld [vmem:[#allocation5 + $0x164] sm:$0xf]
        %v2163 = vld [vmem:[#allocation5 + $0x168] sm:$0xf]
        %v2164 = vld [vmem:[#allocation5 + $0x16c] sm:$0xf]
        %v2165 = vld [vmem:[#allocation5 + $0x170] sm:$0xf]
        %v2166 = vld [vmem:[#allocation5 + $0x174] sm:$0xf]
        %v2167 = vld [vmem:[#allocation5 + $0x178] sm:$0xf]
        %v2168 = vld [vmem:[#allocation5 + $0x17c] sm:$0xf]
        %v2169 = vpack.c.b16 %v2045, %v2045
        %v2171 = vshrl.u32 %v1921, 16
        %v2173 = vshll.u32 %v1921, 16
        %v2175 = vrot.slane %v2173, 1
        %v2176 = vor.u32 %v2171, %v2175
        %v2178 = vshll.u32 %v1922, 16
        %v2180 = vrot.slane %v2178, 1
        %v2181 = vsel %vm490, %v2176, %v2180
        %v2182 = vshrl.u32 %v1922, 16
        %v2184 = vor.u32 %v2182, %v2180
        %v2186 = vshll.u32 %v2169, 16
        %v2188 = vrot.slane %v2186, 1
        %v2189 = vsel %vm490, %v2184, %v2188
        %v2208 = vunpack.c.l.b16 %v2153
        %v2209 = vunpack.c.l.b16 %v2154
        %v2210 = vunpack.c.l.b16 %v2155
        %v2211 = vunpack.c.l.b16 %v2156
        %v2212 = vunpack.c.l.b16 %v2157
        %v2213 = vunpack.c.l.b16 %v2158
        %v2214 = vunpack.c.l.b16 %v2159
        %v2215 = vunpack.c.l.b16 %v2160
        %v2216 = vunpack.c.l.b16 %v2161
        %v2217 = vunpack.c.l.b16 %v2162
        %v2218 = vunpack.c.l.b16 %v2163
        %v2219 = vunpack.c.l.b16 %v2164
        %v2220 = vunpack.c.l.b16 %v2165
        %v2221 = vunpack.c.l.b16 %v2166
        %v2222 = vunpack.c.l.b16 %v2167
        %v2223 = vunpack.c.l.b16 %v2168
        %v2224 = vpack.c.b16 %v2209, %v2208
        %v2225 = vpack.c.b16 %v2211, %v2210
        %v2226 = vpack.c.b16 %v2213, %v2212
        %v2227 = vpack.c.b16 %v2215, %v2214
        %v2228 = vpack.c.b16 %v2217, %v2216
        %v2229 = vpack.c.b16 %v2219, %v2218
        %v2230 = vpack.c.b16 %v2221, %v2220
        %v2231 = vpack.c.b16 %v2223, %v2222
        %2240 = vmatprep.subr.bf16.mxu0 0
        %2241 = vmatpush1.bf16.msra.mxu0 %v2224
        %2242 = vmatprep.subr.bf16.mxu0 0
        %2243 = vmatpush1.bf16.msra.mxu0 %v2225
        %2244 = vmatprep.subr.bf16.mxu0 0
        %2245 = vmatpush1.bf16.msra.mxu0 %v2226
        %2246 = vmatprep.subr.bf16.mxu0 0
        %2247 = vmatpush1.bf16.msra.mxu0 %v2227
        %2248 = vmatprep.subr.bf16.mxu0 0
        %2249 = vmatpush1.bf16.msra.mxu0 %v2228
        %2250 = vmatprep.subr.bf16.mxu0 0
        %2251 = vmatpush1.bf16.msra.mxu0 %v2229
        %2252 = vmatprep.subr.bf16.mxu0 0
        %2253 = vmatpush1.bf16.msra.mxu0 %v2230
        %2254 = vmatprep.subr.bf16.mxu0 0
        %2255 = vmatpush1.bf16.msra.mxu0 %v2231
        %2256 = vmatprep.subr.bf16.mxu0 0
        %2257 = vmatpush1.bf16.msra.mxu0 0
        %2258 = vmatprep.subr.bf16.mxu0 0
        %2259 = vmatpush1.bf16.msra.mxu0 0
        %2260 = vmatprep.subr.bf16.mxu0 0
        %2261 = vmatpush1.bf16.msra.mxu0 0
        %2262 = vmatprep.subr.bf16.mxu0 0
        %2263 = vmatpush1.bf16.msra.mxu0 0
        %2264 = vmatprep.subr.bf16.mxu0 0
        %2265 = vmatpush1.bf16.msra.mxu0 0
        %2266 = vmatprep.subr.bf16.mxu0 0
        %2267 = vmatpush1.bf16.msra.mxu0 0
        %2268 = vmatprep.subr.bf16.mxu0 0
        %2269 = vmatpush1.bf16.msra.mxu0 0
        %2270 = vmatprep.subr.bf16.mxu0 0
        %2271 = vmatpush1.bf16.msra.mxu0 0
        %2272 = vmatprep.mubr.bf16.mxu0 0
        %2273 = vmatmul.mubr.bf16.gmra.mrb[0].mxu0 %v2181
        %v2274 = vpop.f32.mrb[0].mxu0
        %v2275 = vadd.f32 0.0, %v2274
        %v2276 = vpop.f32.mrb[0].mxu0
        %v2277 = vpop.f32.mrb[0].mxu0
        %v2278 = vadd.f32 0.0, %v2277
        %v2279 = vpop.f32.mrb[0].mxu0
        %2280 = vmatprep.mubr.bf16.mxu0 0
        %2281 = vmatmul.mubr.bf16.gmra.mrb[0].mxu0 %v2189
        %v2282 = vpop.f32.mrb[0].mxu0
        %v2283 = vadd.f32 0.0, %v2282
        %v2284 = vpop.f32.mrb[0].mxu0
        %v2285 = vpop.f32.mrb[0].mxu0
        %v2286 = vadd.f32 0.0, %v2285
        %v2287 = vpop.f32.mrb[0].mxu0
        %2288 = vdwg.mxu0
        %v2289 = vadd.f32 %v2149, %v2275
        %v2290 = vadd.f32 %v2150, %v2278
        %v2291 = vadd.f32 %v2151, %v2283
        %v2292 = vadd.f32 %v2152, %v2286
        %s2293 = sadd.s32 %s1487, 2
        %s2294 = smul.u32 %s2293, 8
        %s2295 = smul.addr %s2294, 4
        %s2296 = scalar_lea.vmem [#allocation2], %s2295
        %v2297 = vld [vmem:[%s2296] sm:$0xf]
        %v2298 = vld [vmem:[%s2296 + $0x4] sm:$0xf]
        %v2299 = vld [vmem:[%s2296 + $0x8] sm:$0xf]
        %v2300 = vld [vmem:[%s2296 + $0xc] sm:$0xf]
        %v2301 = vld [vmem:[%s2296 + $0x10] sm:$0xf]
        %v2302 = vld [vmem:[%s2296 + $0x14] sm:$0xf]
        %v2303 = vld [vmem:[%s2296 + $0x18] sm:$0xf]
        %v2304 = vld [vmem:[#allocation5 + $0x180] sm:$0xf]
        %v2305 = vld [vmem:[#allocation5 + $0x184] sm:$0xf]
        %v2306 = vld [vmem:[#allocation5 + $0x188] sm:$0xf]
        %v2307 = vld [vmem:[#allocation5 + $0x18c] sm:$0xf]
        %v2308 = vld [vmem:[#allocation5 + $0x190] sm:$0xf]
        %v2309 = vld [vmem:[#allocation5 + $0x194] sm:$0xf]
        %v2310 = vld [vmem:[#allocation5 + $0x198] sm:$0xf]
        %v2311 = vld [vmem:[#allocation5 + $0x19c] sm:$0xf]
        %v2312 = vld [vmem:[#allocation5 + $0x1a0] sm:$0xf]
        %v2313 = vld [vmem:[#allocation5 + $0x1a4] sm:$0xf]
        %v2314 = vld [vmem:[#allocation5 + $0x1a8] sm:$0xf]
        %v2315 = vld [vmem:[#allocation5 + $0x1ac] sm:$0xf]
        %v2316 = vld [vmem:[#allocation5 + $0x1b0] sm:$0xf]
        %v2317 = vld [vmem:[#allocation5 + $0x1b4] sm:$0xf]
        %v2318 = vld [vmem:[#allocation5 + $0x1b8] sm:$0xf]
        %v2319 = vld [vmem:[#allocation5 + $0x1bc] sm:$0xf]
        %v2324 = vunpack.c.l.b16 %v2297
        %v2325 = vunpack.c.l.b16 %v2298
        %v2326 = vunpack.c.l.b16 %v2299
        %v2327 = vunpack.c.l.b16 %v2300
        %v2328 = vpack.c.b16 %v2325, %v2324
        %v2329 = vpack.c.b16 %v2327, %v2326
        %v2348 = vunpack.c.l.b16 %v2304
        %v2349 = vunpack.c.l.b16 %v2305
        %v2350 = vunpack.c.l.b16 %v2306
        %v2351 = vunpack.c.l.b16 %v2307
        %v2352 = vunpack.c.l.b16 %v2308
        %v2353 = vunpack.c.l.b16 %v2309
        %v2354 = vunpack.c.l.b16 %v2310
        %v2355 = vunpack.c.l.b16 %v2311
        %v2356 = vunpack.c.l.b16 %v2312
        %v2357 = vunpack.c.l.b16 %v2313
        %v2358 = vunpack.c.l.b16 %v2314
        %v2359 = vunpack.c.l.b16 %v2315
        %v2360 = vunpack.c.l.b16 %v2316
        %v2361 = vunpack.c.l.b16 %v2317
        %v2362 = vunpack.c.l.b16 %v2318
        %v2363 = vunpack.c.l.b16 %v2319
        %v2364 = vpack.c.b16 %v2349, %v2348
        %v2365 = vpack.c.b16 %v2351, %v2350
        %v2366 = vpack.c.b16 %v2353, %v2352
        %v2367 = vpack.c.b16 %v2355, %v2354
        %v2368 = vpack.c.b16 %v2357, %v2356
        %v2369 = vpack.c.b16 %v2359, %v2358
        %v2370 = vpack.c.b16 %v2361, %v2360
        %v2371 = vpack.c.b16 %v2363, %v2362
        %2380 = vmatprep.subr.bf16.mxu0 0
        %2381 = vmatpush1.bf16.msra.mxu0 %v2364
        %2382 = vmatprep.subr.bf16.mxu0 0
        %2383 = vmatpush1.bf16.msra.mxu0 %v2365
        %2384 = vmatprep.subr.bf16.mxu0 0
        %2385 = vmatpush1.bf16.msra.mxu0 %v2366
        %2386 = vmatprep.subr.bf16.mxu0 0
        %2387 = vmatpush1.bf16.msra.mxu0 %v2367
        %2388 = vmatprep.subr.bf16.mxu0 0
        %2389 = vmatpush1.bf16.msra.mxu0 %v2368
        %2390 = vmatprep.subr.bf16.mxu0 0
        %2391 = vmatpush1.bf16.msra.mxu0 %v2369
        %2392 = vmatprep.subr.bf16.mxu0 0
        %2393 = vmatpush1.bf16.msra.mxu0 %v2370
        %2394 = vmatprep.subr.bf16.mxu0 0
        %2395 = vmatpush1.bf16.msra.mxu0 %v2371
        %2396 = vmatprep.subr.bf16.mxu0 0
        %2397 = vmatpush1.bf16.msra.mxu0 0
        %2398 = vmatprep.subr.bf16.mxu0 0
        %2399 = vmatpush1.bf16.msra.mxu0 0
        %2400 = vmatprep.subr.bf16.mxu0 0
        %2401 = vmatpush1.bf16.msra.mxu0 0
        %2402 = vmatprep.subr.bf16.mxu0 0
        %2403 = vmatpush1.bf16.msra.mxu0 0
        %2404 = vmatprep.subr.bf16.mxu0 0
        %2405 = vmatpush1.bf16.msra.mxu0 0
        %2406 = vmatprep.subr.bf16.mxu0 0
        %2407 = vmatpush1.bf16.msra.mxu0 0
        %2408 = vmatprep.subr.bf16.mxu0 0
        %2409 = vmatpush1.bf16.msra.mxu0 0
        %2410 = vmatprep.subr.bf16.mxu0 0
        %2411 = vmatpush1.bf16.msra.mxu0 0
        %2412 = vmatprep.mubr.bf16.mxu0 0
        %2413 = vmatmul.mubr.bf16.gmra.mrb[0].mxu0 %v2328
        %v2414 = vpop.f32.mrb[0].mxu0
        %v2415 = vadd.f32 0.0, %v2414
        %v2416 = vpop.f32.mrb[0].mxu0
        %v2417 = vpop.f32.mrb[0].mxu0
        %v2418 = vadd.f32 0.0, %v2417
        %v2419 = vpop.f32.mrb[0].mxu0
        %2420 = vmatprep.mubr.bf16.mxu0 0
        %2421 = vmatmul.mubr.bf16.gmra.mrb[0].mxu0 %v2329
        %v2422 = vpop.f32.mrb[0].mxu0
        %v2423 = vadd.f32 0.0, %v2422
        %v2424 = vpop.f32.mrb[0].mxu0
        %v2425 = vpop.f32.mrb[0].mxu0
        %v2426 = vadd.f32 0.0, %v2425
        %v2427 = vpop.f32.mrb[0].mxu0
        %2428 = vdwg.mxu0
        %v2429 = vadd.f32 %v2289, %v2415
        %v2430 = vadd.f32 %v2290, %v2418
        %v2431 = vadd.f32 %v2291, %v2423
        %v2432 = vadd.f32 %v2292, %v2426
        %v2433 = vld [vmem:[#allocation5 + $0x1c0] sm:$0xf]
        %v2434 = vld [vmem:[#allocation5 + $0x1c4] sm:$0xf]
        %v2435 = vld [vmem:[#allocation5 + $0x1c8] sm:$0xf]
        %v2436 = vld [vmem:[#allocation5 + $0x1cc] sm:$0xf]
        %v2437 = vld [vmem:[#allocation5 + $0x1d0] sm:$0xf]
        %v2438 = vld [vmem:[#allocation5 + $0x1d4] sm:$0xf]
        %v2439 = vld [vmem:[#allocation5 + $0x1d8] sm:$0xf]
        %v2440 = vld [vmem:[#allocation5 + $0x1dc] sm:$0xf]
        %v2441 = vld [vmem:[#allocation5 + $0x1e0] sm:$0xf]
        %v2442 = vld [vmem:[#allocation5 + $0x1e4] sm:$0xf]
        %v2443 = vld [vmem:[#allocation5 + $0x1e8] sm:$0xf]
        %v2444 = vld [vmem:[#allocation5 + $0x1ec] sm:$0xf]
        %v2445 = vld [vmem:[#allocation5 + $0x1f0] sm:$0xf]
        %v2446 = vld [vmem:[#allocation5 + $0x1f4] sm:$0xf]
        %v2447 = vld [vmem:[#allocation5 + $0x1f8] sm:$0xf]
        %v2448 = vld [vmem:[#allocation5 + $0x1fc] sm:$0xf]
        %v2452 = vunpack.c.l.b16 %v2301
        %v2453 = vunpack.c.l.b16 %v2302
        %v2454 = vunpack.c.l.b16 %v2303
        %v2455 = vpack.c.b16 %v2452, %v2327
        %v2456 = vpack.c.b16 %v2454, %v2453
        %v2475 = vunpack.c.l.b16 %v2433
        %v2476 = vunpack.c.l.b16 %v2434
        %v2477 = vunpack.c.l.b16 %v2435
        %v2478 = vunpack.c.l.b16 %v2436
        %v2479 = vunpack.c.l.b16 %v2437
        %v2480 = vunpack.c.l.b16 %v2438
        %v2481 = vunpack.c.l.b16 %v2439
        %v2482 = vunpack.c.l.b16 %v2440
        %v2483 = vunpack.c.l.b16 %v2441
        %v2484 = vunpack.c.l.b16 %v2442
        %v2485 = vunpack.c.l.b16 %v2443
        %v2486 = vunpack.c.l.b16 %v2444
        %v2487 = vunpack.c.l.b16 %v2445
        %v2488 = vunpack.c.l.b16 %v2446
        %v2489 = vunpack.c.l.b16 %v2447
        %v2490 = vunpack.c.l.b16 %v2448
        %v2491 = vpack.c.b16 %v2476, %v2475
        %v2492 = vpack.c.b16 %v2478, %v2477
        %v2493 = vpack.c.b16 %v2480, %v2479
        %v2494 = vpack.c.b16 %v2482, %v2481
        %v2495 = vpack.c.b16 %v2484, %v2483
        %v2496 = vpack.c.b16 %v2486, %v2485
        %v2497 = vpack.c.b16 %v2488, %v2487
        %v2498 = vpack.c.b16 %v2490, %v2489
        %2507 = vmatprep.subr.bf16.mxu0 0
        %2508 = vmatpush1.bf16.msra.mxu0 %v2491
        %2509 = vmatprep.subr.bf16.mxu0 0
        %2510 = vmatpush1.bf16.msra.mxu0 %v2492
        %2511 = vmatprep.subr.bf16.mxu0 0
        %2512 = vmatpush1.bf16.msra.mxu0 %v2493
        %2513 = vmatprep.subr.bf16.mxu0 0
        %2514 = vmatpush1.bf16.msra.mxu0 %v2494
        %2515 = vmatprep.subr.bf16.mxu0 0
        %2516 = vmatpush1.bf16.msra.mxu0 %v2495
        %2517 = vmatprep.subr.bf16.mxu0 0
        %2518 = vmatpush1.bf16.msra.mxu0 %v2496
        %2519 = vmatprep.subr.bf16.mxu0 0
        %2520 = vmatpush1.bf16.msra.mxu0 %v2497
        %2521 = vmatprep.subr.bf16.mxu0 0
        %2522 = vmatpush1.bf16.msra.mxu0 %v2498
        %2523 = vmatprep.subr.bf16.mxu0 0
        %2524 = vmatpush1.bf16.msra.mxu0 0
        %2525 = vmatprep.subr.bf16.mxu0 0
        %2526 = vmatpush1.bf16.msra.mxu0 0
        %2527 = vmatprep.subr.bf16.mxu0 0
        %2528 = vmatpush1.bf16.msra.mxu0 0
        %2529 = vmatprep.subr.bf16.mxu0 0
        %2530 = vmatpush1.bf16.msra.mxu0 0
        %2531 = vmatprep.subr.bf16.mxu0 0
        %2532 = vmatpush1.bf16.msra.mxu0 0
        %2533 = vmatprep.subr.bf16.mxu0 0
        %2534 = vmatpush1.bf16.msra.mxu0 0
        %2535 = vmatprep.subr.bf16.mxu0 0
        %2536 = vmatpush1.bf16.msra.mxu0 0
        %2537 = vmatprep.subr.bf16.mxu0 0
        %2538 = vmatpush1.bf16.msra.mxu0 0
        %2539 = vmatprep.mubr.bf16.mxu0 0
        %2540 = vmatmul.mubr.bf16.gmra.mrb[0].mxu0 %v2455
        %v2541 = vpop.f32.mrb[0].mxu0
        %v2542 = vadd.f32 0.0, %v2541
        %v2543 = vpop.f32.mrb[0].mxu0
        %v2544 = vpop.f32.mrb[0].mxu0
        %v2545 = vadd.f32 0.0, %v2544
        %v2546 = vpop.f32.mrb[0].mxu0
        %2547 = vmatprep.mubr.bf16.mxu0 0
        %2548 = vmatmul.mubr.bf16.gmra.mrb[0].mxu0 %v2456
        %v2549 = vpop.f32.mrb[0].mxu0
        %v2550 = vadd.f32 0.0, %v2549
        %v2551 = vpop.f32.mrb[0].mxu0
        %v2552 = vpop.f32.mrb[0].mxu0
        %v2553 = vadd.f32 0.0, %v2552
        %v2554 = vpop.f32.mrb[0].mxu0
        %2555 = vdwg.mxu0
        %v2556 = vadd.f32 %v2429, %v2542
        %v2557 = vadd.f32 %v2430, %v2545
        %v2558 = vadd.f32 %v2431, %v2550
        %v2559 = vadd.f32 %v2432, %v2553
        %v2560 = vld [vmem:[#allocation5 + $0x200] sm:$0xf]
        %v2561 = vld [vmem:[#allocation5 + $0x204] sm:$0xf]
        %v2562 = vld [vmem:[#allocation5 + $0x208] sm:$0xf]
        %v2563 = vld [vmem:[#allocation5 + $0x20c] sm:$0xf]
        %v2564 = vld [vmem:[#allocation5 + $0x210] sm:$0xf]
        %v2565 = vld [vmem:[#allocation5 + $0x214] sm:$0xf]
        %v2566 = vld [vmem:[#allocation5 + $0x218] sm:$0xf]
        %v2567 = vld [vmem:[#allocation5 + $0x21c] sm:$0xf]
        %v2568 = vld [vmem:[#allocation5 + $0x220] sm:$0xf]
        %v2569 = vld [vmem:[#allocation5 + $0x224] sm:$0xf]
        %v2570 = vld [vmem:[#allocation5 + $0x228] sm:$0xf]
        %v2571 = vld [vmem:[#allocation5 + $0x22c] sm:$0xf]
        %v2572 = vld [vmem:[#allocation5 + $0x230] sm:$0xf]
        %v2573 = vld [vmem:[#allocation5 + $0x234] sm:$0xf]
        %v2574 = vld [vmem:[#allocation5 + $0x238] sm:$0xf]
        %v2575 = vld [vmem:[#allocation5 + $0x23c] sm:$0xf]
        %v2576 = vpack.c.b16 %v2452, %v2452
        %v2578 = vshrl.u32 %v2328, 16
        %v2580 = vshll.u32 %v2328, 16
        %v2582 = vrot.slane %v2580, 1
        %v2583 = vor.u32 %v2578, %v2582
        %v2585 = vshll.u32 %v2329, 16
        %v2587 = vrot.slane %v2585, 1
        %v2588 = vsel %vm490, %v2583, %v2587
        %v2589 = vshrl.u32 %v2329, 16
        %v2591 = vor.u32 %v2589, %v2587
        %v2593 = vshll.u32 %v2576, 16
        %v2595 = vrot.slane %v2593, 1
        %v2596 = vsel %vm490, %v2591, %v2595
        %v2615 = vunpack.c.l.b16 %v2560
        %v2616 = vunpack.c.l.b16 %v2561
        %v2617 = vunpack.c.l.b16 %v2562
        %v2618 = vunpack.c.l.b16 %v2563
        %v2619 = vunpack.c.l.b16 %v2564
        %v2620 = vunpack.c.l.b16 %v2565
        %v2621 = vunpack.c.l.b16 %v2566
        %v2622 = vunpack.c.l.b16 %v2567
        %v2623 = vunpack.c.l.b16 %v2568
        %v2624 = vunpack.c.l.b16 %v2569
        %v2625 = vunpack.c.l.b16 %v2570
        %v2626 = vunpack.c.l.b16 %v2571
        %v2627 = vunpack.c.l.b16 %v2572
        %v2628 = vunpack.c.l.b16 %v2573
        %v2629 = vunpack.c.l.b16 %v2574
        %v2630 = vunpack.c.l.b16 %v2575
        %v2631 = vpack.c.b16 %v2616, %v2615
        %v2632 = vpack.c.b16 %v2618, %v2617
        %v2633 = vpack.c.b16 %v2620, %v2619
        %v2634 = vpack.c.b16 %v2622, %v2621
        %v2635 = vpack.c.b16 %v2624, %v2623
        %v2636 = vpack.c.b16 %v2626, %v2625
        %v2637 = vpack.c.b16 %v2628, %v2627
        %v2638 = vpack.c.b16 %v2630, %v2629
        %2647 = vmatprep.subr.bf16.mxu0 0
        %2648 = vmatpush1.bf16.msra.mxu0 %v2631
        %2649 = vmatprep.subr.bf16.mxu0 0
        %2650 = vmatpush1.bf16.msra.mxu0 %v2632
        %2651 = vmatprep.subr.bf16.mxu0 0
        %2652 = vmatpush1.bf16.msra.mxu0 %v2633
        %2653 = vmatprep.subr.bf16.mxu0 0
        %2654 = vmatpush1.bf16.msra.mxu0 %v2634
        %2655 = vmatprep.subr.bf16.mxu0 0
        %2656 = vmatpush1.bf16.msra.mxu0 %v2635
        %2657 = vmatprep.subr.bf16.mxu0 0
        %2658 = vmatpush1.bf16.msra.mxu0 %v2636
        %2659 = vmatprep.subr.bf16.mxu0 0
        %2660 = vmatpush1.bf16.msra.mxu0 %v2637
        %2661 = vmatprep.subr.bf16.mxu0 0
        %2662 = vmatpush1.bf16.msra.mxu0 %v2638
        %2663 = vmatprep.subr.bf16.mxu0 0
        %2664 = vmatpush1.bf16.msra.mxu0 0
        %2665 = vmatprep.subr.bf16.mxu0 0
        %2666 = vmatpush1.bf16.msra.mxu0 0
        %2667 = vmatprep.subr.bf16.mxu0 0
        %2668 = vmatpush1.bf16.msra.mxu0 0
        %2669 = vmatprep.subr.bf16.mxu0 0
        %2670 = vmatpush1.bf16.msra.mxu0 0
        %2671 = vmatprep.subr.bf16.mxu0 0
        %2672 = vmatpush1.bf16.msra.mxu0 0
        %2673 = vmatprep.subr.bf16.mxu0 0
        %2674 = vmatpush1.bf16.msra.mxu0 0
        %2675 = vmatprep.subr.bf16.mxu0 0
        %2676 = vmatpush1.bf16.msra.mxu0 0
        %2677 = vmatprep.subr.bf16.mxu0 0
        %2678 = vmatpush1.bf16.msra.mxu0 0
        %2679 = vmatprep.mubr.bf16.mxu0 0
        %2680 = vmatmul.mubr.bf16.gmra.mrb[0].mxu0 %v2588
        %v2681 = vpop.f32.mrb[0].mxu0
        %v2682 = vadd.f32 0.0, %v2681
        %v2683 = vpop.f32.mrb[0].mxu0
        %v2684 = vpop.f32.mrb[0].mxu0
        %v2685 = vadd.f32 0.0, %v2684
        %v2686 = vpop.f32.mrb[0].mxu0
        %2687 = vmatprep.mubr.bf16.mxu0 0
        %2688 = vmatmul.mubr.bf16.gmra.mrb[0].mxu0 %v2596
        %v2689 = vpop.f32.mrb[0].mxu0
        %v2690 = vadd.f32 0.0, %v2689
        %v2691 = vpop.f32.mrb[0].mxu0
        %v2692 = vpop.f32.mrb[0].mxu0
        %v2693 = vadd.f32 0.0, %v2692
        %v2694 = vpop.f32.mrb[0].mxu0
        %2695 = vdwg.mxu0
        %v2696 = vadd.f32 %v2556, %v2682
        %v2697 = vadd.f32 %v2557, %v2685
        %v2698 = vadd.f32 %v2558, %v2690
        %v2699 = vadd.f32 %v2559, %v2693
        %v2700 = vadd.f32 %v2696, %v1432
        %v2701 = vadd.f32 %v2697, %v1432
        %v2702 = vadd.f32 %v2698, %v1432
        %v2703 = vadd.f32 %v2699, %v1432
        %v2704 = vmax.f32 %v2700, 0.0
        %v2705 = vmax.f32 %v2701, 0.0
        %v2706 = vmax.f32 %v2702, 0.0
        %v2707 = vmax.f32 %v2703, 0.0
        %v2708 = vmul.f32 %v2704, %v1445
        %v2709 = vmul.f32 %v2705, %v1450
        %v2710 = vmul.f32 %v2706, %v1455
        %v2711 = vmul.f32 %v2707, %v1460
        %v2712 = vpack.c.bf16 %v2709, %v2708
        %v2713 = vpack.c.bf16 %v2711, %v2710
        %v2716 = vunpack.c.l.b16 %v2712
        %v2717 = vunpack.c.h.b16 %v2712
        %v2718 = vunpack.c.l.b16 %v2713
        %v2719 = vunpack.c.h.b16 %v2713
        %v2720 = vpack.c.b16 %v2716, %v2716
        %v2721 = vpack.c.b16 %v2717, %v2717
        %v2722 = vpack.c.b16 %v2718, %v2718
        %v2723 = vpack.c.b16 %v2719, %v2719
        %s2728 = scalar_lea.vmem %s205, 16 [#allocation7]
        %2729 = vst [vmem:[%s2728] sm:$0xf] %v2720
        %2730 = vst [vmem:[%s2728 + $0x4] sm:$0xf] %v2721
        %2731 = vst [vmem:[%s2728 + $0x8] sm:$0xf] %v2722
        %2732 = vst [vmem:[%s2728 + $0xc] sm:$0xf] %v2723
        %s2733 = sadd.s32 %s208, 2
        %s2734 = smul.u32 %s2733, 2
        %s2735 = smul.u32 %s2734, 8
        %s2736 = smul.addr %s2735, 4
        %s2737 = scalar_lea.vmem [#allocation2], %s2736
        %v2738 = vld [vmem:[%s2737] sm:$0xf]
        %v2739 = vld [vmem:[%s2737 + $0x4] sm:$0xf]
        %v2740 = vld [vmem:[%s2737 + $0x8] sm:$0xf]
        %v2741 = vld [vmem:[%s2737 + $0xc] sm:$0xf]
        %v2742 = vld [vmem:[%s2737 + $0x10] sm:$0xf]
        %v2743 = vld [vmem:[%s2737 + $0x14] sm:$0xf]
        %v2744 = vld [vmem:[%s2737 + $0x18] sm:$0xf]
        %v2745 = vld [vmem:[#allocation5] sm:$0xf]
        %v2746 = vld [vmem:[#allocation5 + $0x4] sm:$0xf]
        %v2747 = vld [vmem:[#allocation5 + $0x8] sm:$0xf]
        %v2748 = vld [vmem:[#allocation5 + $0xc] sm:$0xf]
        %v2749 = vld [vmem:[#allocation5 + $0x10] sm:$0xf]
        %v2750 = vld [vmem:[#allocation5 + $0x14] sm:$0xf]
        %v2751 = vld [vmem:[#allocation5 + $0x18] sm:$0xf]
        %v2752 = vld [vmem:[#allocation5 + $0x1c] sm:$0xf]
        %v2753 = vld [vmem:[#allocation5 + $0x20] sm:$0xf]
        %v2754 = vld [vmem:[#allocation5 + $0x24] sm:$0xf]
        %v2755 = vld [vmem:[#allocation5 + $0x28] sm:$0xf]
        %v2756 = vld [vmem:[#allocation5 + $0x2c] sm:$0xf]
        %v2757 = vld [vmem:[#allocation5 + $0x30] sm:$0xf]
        %v2758 = vld [vmem:[#allocation5 + $0x34] sm:$0xf]
        %v2759 = vld [vmem:[#allocation5 + $0x38] sm:$0xf]
        %v2760 = vld [vmem:[#allocation5 + $0x3c] sm:$0xf]
        %v2761 = vld [vmem:[#allocation5 + $0x40] sm:$0xf]
        %v2762 = vld [vmem:[#allocation5 + $0x44] sm:$0xf]
        %v2763 = vld [vmem:[#allocation5 + $0x48] sm:$0xf]
        %v2764 = vld [vmem:[#allocation5 + $0x4c] sm:$0xf]
        %v2765 = vld [vmem:[#allocation5 + $0x50] sm:$0xf]
        %v2766 = vld [vmem:[#allocation5 + $0x54] sm:$0xf]
        %v2767 = vld [vmem:[#allocation5 + $0x58] sm:$0xf]
        %v2768 = vld [vmem:[#allocation5 + $0x5c] sm:$0xf]
        %v2769 = vld [vmem:[#allocation5 + $0x60] sm:$0xf]
        %v2770 = vld [vmem:[#allocation5 + $0x64] sm:$0xf]
        %v2771 = vld [vmem:[#allocation5 + $0x68] sm:$0xf]
        %v2772 = vld [vmem:[#allocation5 + $0x6c] sm:$0xf]
        %v2773 = vld [vmem:[#allocation5 + $0x70] sm:$0xf]
        %v2774 = vld [vmem:[#allocation5 + $0x74] sm:$0xf]
        %v2775 = vld [vmem:[#allocation5 + $0x78] sm:$0xf]
        %v2776 = vld [vmem:[#allocation5 + $0x7c] sm:$0xf]
        %v2781 = vunpack.c.l.b16 %v2741
        %v2782 = vunpack.c.l.b16 %v2742
        %v2783 = vunpack.c.l.b16 %v2743
        %v2784 = vunpack.c.l.b16 %v2744
        %v2785 = vpack.c.b16 %v2782, %v2781
        %v2786 = vpack.c.b16 %v2784, %v2783
        %v2805 = vunpack.c.l.b16 %v2761
        %v2806 = vunpack.c.l.b16 %v2762
        %v2807 = vunpack.c.l.b16 %v2763
        %v2808 = vunpack.c.l.b16 %v2764
        %v2809 = vunpack.c.l.b16 %v2765
        %v2810 = vunpack.c.l.b16 %v2766
        %v2811 = vunpack.c.l.b16 %v2767
        %v2812 = vunpack.c.l.b16 %v2768
        %v2813 = vunpack.c.l.b16 %v2769
        %v2814 = vunpack.c.l.b16 %v2770
        %v2815 = vunpack.c.l.b16 %v2771
        %v2816 = vunpack.c.l.b16 %v2772
        %v2817 = vunpack.c.l.b16 %v2773
        %v2818 = vunpack.c.l.b16 %v2774
        %v2819 = vunpack.c.l.b16 %v2775
        %v2820 = vunpack.c.l.b16 %v2776
        %v2821 = vpack.c.b16 %v2806, %v2805
        %v2822 = vpack.c.b16 %v2808, %v2807
        %v2823 = vpack.c.b16 %v2810, %v2809
        %v2824 = vpack.c.b16 %v2812, %v2811
        %v2825 = vpack.c.b16 %v2814, %v2813
        %v2826 = vpack.c.b16 %v2816, %v2815
        %v2827 = vpack.c.b16 %v2818, %v2817
        %v2828 = vpack.c.b16 %v2820, %v2819
        %2837 = vmatprep.subr.bf16.mxu0 0
        %2838 = vmatpush1.bf16.msra.mxu0 %v2821
        %2839 = vmatprep.subr.bf16.mxu0 0
        %2840 = vmatpush1.bf16.msra.mxu0 %v2822
        %2841 = vmatprep.subr.bf16.mxu0 0
        %2842 = vmatpush1.bf16.msra.mxu0 %v2823
        %2843 = vmatprep.subr.bf16.mxu0 0
        %2844 = vmatpush1.bf16.msra.mxu0 %v2824
        %2845 = vmatprep.subr.bf16.mxu0 0
        %2846 = vmatpush1.bf16.msra.mxu0 %v2825
        %2847 = vmatprep.subr.bf16.mxu0 0
        %2848 = vmatpush1.bf16.msra.mxu0 %v2826
        %2849 = vmatprep.subr.bf16.mxu0 0
        %2850 = vmatpush1.bf16.msra.mxu0 %v2827
        %2851 = vmatprep.subr.bf16.mxu0 0
        %2852 = vmatpush1.bf16.msra.mxu0 %v2828
        %2853 = vmatprep.subr.bf16.mxu0 0
        %2854 = vmatpush1.bf16.msra.mxu0 0
        %2855 = vmatprep.subr.bf16.mxu0 0
        %2856 = vmatpush1.bf16.msra.mxu0 0
        %2857 = vmatprep.subr.bf16.mxu0 0
        %2858 = vmatpush1.bf16.msra.mxu0 0
        %2859 = vmatprep.subr.bf16.mxu0 0
        %2860 = vmatpush1.bf16.msra.mxu0 0
        %2861 = vmatprep.subr.bf16.mxu0 0
        %2862 = vmatpush1.bf16.msra.mxu0 0
        %2863 = vmatprep.subr.bf16.mxu0 0
        %2864 = vmatpush1.bf16.msra.mxu0 0
        %2865 = vmatprep.subr.bf16.mxu0 0
        %2866 = vmatpush1.bf16.msra.mxu0 0
        %2867 = vmatprep.subr.bf16.mxu0 0
        %2868 = vmatpush1.bf16.msra.mxu0 0
        %2869 = vmatprep.mubr.bf16.mxu0 0
        %2870 = vmatmul.mubr.bf16.gmra.mrb[0].mxu0 %v2785
        %v2871 = vpop.f32.mrb[0].mxu0
        %v2872 = vadd.f32 0.0, %v2871
        %v2873 = vpop.f32.mrb[0].mxu0
        %v2874 = vpop.f32.mrb[0].mxu0
        %v2875 = vadd.f32 0.0, %v2874
        %v2876 = vpop.f32.mrb[0].mxu0
        %2877 = vmatprep.mubr.bf16.mxu0 0
        %2878 = vmatmul.mubr.bf16.gmra.mrb[0].mxu0 %v2786
        %v2879 = vpop.f32.mrb[0].mxu0
        %v2880 = vadd.f32 0.0, %v2879
        %v2881 = vpop.f32.mrb[0].mxu0
        %v2882 = vpop.f32.mrb[0].mxu0
        %v2883 = vadd.f32 0.0, %v2882
        %v2884 = vpop.f32.mrb[0].mxu0
        %2885 = vdwg.mxu0
        %v2889 = vunpack.c.l.b16 %v2738
        %v2890 = vunpack.c.l.b16 %v2739
        %v2891 = vunpack.c.l.b16 %v2740
        %v2892 = vpack.c.b16 %v2890, %v2889
        %v2893 = vpack.c.b16 %v2781, %v2891
        %v2912 = vunpack.c.l.b16 %v2745
        %v2913 = vunpack.c.l.b16 %v2746
        %v2914 = vunpack.c.l.b16 %v2747
        %v2915 = vunpack.c.l.b16 %v2748
        %v2916 = vunpack.c.l.b16 %v2749
        %v2917 = vunpack.c.l.b16 %v2750
        %v2918 = vunpack.c.l.b16 %v2751
        %v2919 = vunpack.c.l.b16 %v2752
        %v2920 = vunpack.c.l.b16 %v2753
        %v2921 = vunpack.c.l.b16 %v2754
        %v2922 = vunpack.c.l.b16 %v2755
        %v2923 = vunpack.c.l.b16 %v2756
        %v2924 = vunpack.c.l.b16 %v2757
        %v2925 = vunpack.c.l.b16 %v2758
        %v2926 = vunpack.c.l.b16 %v2759
        %v2927 = vunpack.c.l.b16 %v2760
        %v2928 = vpack.c.b16 %v2913, %v2912
        %v2929 = vpack.c.b16 %v2915, %v2914
        %v2930 = vpack.c.b16 %v2917, %v2916
        %v2931 = vpack.c.b16 %v2919, %v2918
        %v2932 = vpack.c.b16 %v2921, %v2920
        %v2933 = vpack.c.b16 %v2923, %v2922
        %v2934 = vpack.c.b16 %v2925, %v2924
        %v2935 = vpack.c.b16 %v2927, %v2926
        %2944 = vmatprep.subr.bf16.mxu0 0
        %2945 = vmatpush1.bf16.msra.mxu0 %v2928
        %2946 = vmatprep.subr.bf16.mxu0 0
        %2947 = vmatpush1.bf16.msra.mxu0 %v2929
        %2948 = vmatprep.subr.bf16.mxu0 0
        %2949 = vmatpush1.bf16.msra.mxu0 %v2930
        %2950 = vmatprep.subr.bf16.mxu0 0
        %2951 = vmatpush1.bf16.msra.mxu0 %v2931
        %2952 = vmatprep.subr.bf16.mxu0 0
        %2953 = vmatpush1.bf16.msra.mxu0 %v2932
        %2954 = vmatprep.subr.bf16.mxu0 0
        %2955 = vmatpush1.bf16.msra.mxu0 %v2933
        %2956 = vmatprep.subr.bf16.mxu0 0
        %2957 = vmatpush1.bf16.msra.mxu0 %v2934
        %2958 = vmatprep.subr.bf16.mxu0 0
        %2959 = vmatpush1.bf16.msra.mxu0 %v2935
        %2960 = vmatprep.subr.bf16.mxu0 0
        %2961 = vmatpush1.bf16.msra.mxu0 0
        %2962 = vmatprep.subr.bf16.mxu0 0
        %2963 = vmatpush1.bf16.msra.mxu0 0
        %2964 = vmatprep.subr.bf16.mxu0 0
        %2965 = vmatpush1.bf16.msra.mxu0 0
        %2966 = vmatprep.subr.bf16.mxu0 0
        %2967 = vmatpush1.bf16.msra.mxu0 0
        %2968 = vmatprep.subr.bf16.mxu0 0
        %2969 = vmatpush1.bf16.msra.mxu0 0
        %2970 = vmatprep.subr.bf16.mxu0 0
        %2971 = vmatpush1.bf16.msra.mxu0 0
        %2972 = vmatprep.subr.bf16.mxu0 0
        %2973 = vmatpush1.bf16.msra.mxu0 0
        %2974 = vmatprep.subr.bf16.mxu0 0
        %2975 = vmatpush1.bf16.msra.mxu0 0
        %2976 = vmatprep.mubr.bf16.mxu0 0
        %2977 = vmatmul.mubr.bf16.gmra.mrb[0].mxu0 %v2892
        %v2978 = vpop.f32.mrb[0].mxu0
        %v2979 = vadd.f32 %v2872, %v2978
        %v2980 = vpop.f32.mrb[0].mxu0
        %v2981 = vpop.f32.mrb[0].mxu0
        %v2982 = vadd.f32 %v2875, %v2981
        %v2983 = vpop.f32.mrb[0].mxu0
        %2984 = vmatprep.mubr.bf16.mxu0 0
        %2985 = vmatmul.mubr.bf16.gmra.mrb[0].mxu0 %v2893
        %v2986 = vpop.f32.mrb[0].mxu0
        %v2987 = vadd.f32 %v2880, %v2986
        %v2988 = vpop.f32.mrb[0].mxu0
        %v2989 = vpop.f32.mrb[0].mxu0
        %v2990 = vadd.f32 %v2883, %v2989
        %v2991 = vpop.f32.mrb[0].mxu0
        %2992 = vdwg.mxu0
        %v2993 = vld [vmem:[#allocation5 + $0x80] sm:$0xf]
        %v2994 = vld [vmem:[#allocation5 + $0x84] sm:$0xf]
        %v2995 = vld [vmem:[#allocation5 + $0x88] sm:$0xf]
        %v2996 = vld [vmem:[#allocation5 + $0x8c] sm:$0xf]
        %v2997 = vld [vmem:[#allocation5 + $0x90] sm:$0xf]
        %v2998 = vld [vmem:[#allocation5 + $0x94] sm:$0xf]
        %v2999 = vld [vmem:[#allocation5 + $0x98] sm:$0xf]
        %v3000 = vld [vmem:[#allocation5 + $0x9c] sm:$0xf]
        %v3001 = vld [vmem:[#allocation5 + $0xa0] sm:$0xf]
        %v3002 = vld [vmem:[#allocation5 + $0xa4] sm:$0xf]
        %v3003 = vld [vmem:[#allocation5 + $0xa8] sm:$0xf]
        %v3004 = vld [vmem:[#allocation5 + $0xac] sm:$0xf]
        %v3005 = vld [vmem:[#allocation5 + $0xb0] sm:$0xf]
        %v3006 = vld [vmem:[#allocation5 + $0xb4] sm:$0xf]
        %v3007 = vld [vmem:[#allocation5 + $0xb8] sm:$0xf]
        %v3008 = vld [vmem:[#allocation5 + $0xbc] sm:$0xf]
        %v3009 = vpack.c.b16 %v2782, %v2782
        %v3011 = vshrl.u32 %v2892, 16
        %v3013 = vshll.u32 %v2892, 16
        %v3015 = vrot.slane %v3013, 1
        %v3016 = vor.u32 %v3011, %v3015
        %v3018 = vshll.u32 %v2893, 16
        %v3020 = vrot.slane %v3018, 1
        %v3021 = vsel %vm490, %v3016, %v3020
        %v3022 = vshrl.u32 %v2893, 16
        %v3024 = vor.u32 %v3022, %v3020
        %v3026 = vshll.u32 %v3009, 16
        %v3028 = vrot.slane %v3026, 1
        %v3029 = vsel %vm490, %v3024, %v3028
        %v3048 = vunpack.c.l.b16 %v2993
        %v3049 = vunpack.c.l.b16 %v2994
        %v3050 = vunpack.c.l.b16 %v2995
        %v3051 = vunpack.c.l.b16 %v2996
        %v3052 = vunpack.c.l.b16 %v2997
        %v3053 = vunpack.c.l.b16 %v2998
        %v3054 = vunpack.c.l.b16 %v2999
        %v3055 = vunpack.c.l.b16 %v3000
        %v3056 = vunpack.c.l.b16 %v3001
        %v3057 = vunpack.c.l.b16 %v3002
        %v3058 = vunpack.c.l.b16 %v3003
        %v3059 = vunpack.c.l.b16 %v3004
        %v3060 = vunpack.c.l.b16 %v3005
        %v3061 = vunpack.c.l.b16 %v3006
        %v3062 = vunpack.c.l.b16 %v3007
        %v3063 = vunpack.c.l.b16 %v3008
        %v3064 = vpack.c.b16 %v3049, %v3048
        %v3065 = vpack.c.b16 %v3051, %v3050
        %v3066 = vpack.c.b16 %v3053, %v3052
        %v3067 = vpack.c.b16 %v3055, %v3054
        %v3068 = vpack.c.b16 %v3057, %v3056
        %v3069 = vpack.c.b16 %v3059, %v3058
        %v3070 = vpack.c.b16 %v3061, %v3060
        %v3071 = vpack.c.b16 %v3063, %v3062
        %3080 = vmatprep.subr.bf16.mxu0 0
        %3081 = vmatpush1.bf16.msra.mxu0 %v3064
        %3082 = vmatprep.subr.bf16.mxu0 0
        %3083 = vmatpush1.bf16.msra.mxu0 %v3065
        %3084 = vmatprep.subr.bf16.mxu0 0
        %3085 = vmatpush1.bf16.msra.mxu0 %v3066
        %3086 = vmatprep.subr.bf16.mxu0 0
        %3087 = vmatpush1.bf16.msra.mxu0 %v3067
        %3088 = vmatprep.subr.bf16.mxu0 0
        %3089 = vmatpush1.bf16.msra.mxu0 %v3068
        %3090 = vmatprep.subr.bf16.mxu0 0
        %3091 = vmatpush1.bf16.msra.mxu0 %v3069
        %3092 = vmatprep.subr.bf16.mxu0 0
        %3093 = vmatpush1.bf16.msra.mxu0 %v3070
        %3094 = vmatprep.subr.bf16.mxu0 0
        %3095 = vmatpush1.bf16.msra.mxu0 %v3071
        %3096 = vmatprep.subr.bf16.mxu0 0
        %3097 = vmatpush1.bf16.msra.mxu0 0
        %3098 = vmatprep.subr.bf16.mxu0 0
        %3099 = vmatpush1.bf16.msra.mxu0 0
        %3100 = vmatprep.subr.bf16.mxu0 0
        %3101 = vmatpush1.bf16.msra.mxu0 0
        %3102 = vmatprep.subr.bf16.mxu0 0
        %3103 = vmatpush1.bf16.msra.mxu0 0
        %3104 = vmatprep.subr.bf16.mxu0 0
        %3105 = vmatpush1.bf16.msra.mxu0 0
        %3106 = vmatprep.subr.bf16.mxu0 0
        %3107 = vmatpush1.bf16.msra.mxu0 0
        %3108 = vmatprep.subr.bf16.mxu0 0
        %3109 = vmatpush1.bf16.msra.mxu0 0
        %3110 = vmatprep.subr.bf16.mxu0 0
        %3111 = vmatpush1.bf16.msra.mxu0 0
        %3112 = vmatprep.mubr.bf16.mxu0 0
        %3113 = vmatmul.mubr.bf16.gmra.mrb[0].mxu0 %v3021
        %v3114 = vpop.f32.mrb[0].mxu0
        %v3115 = vadd.f32 0.0, %v3114
        %v3116 = vpop.f32.mrb[0].mxu0
        %v3117 = vpop.f32.mrb[0].mxu0
        %v3118 = vadd.f32 0.0, %v3117
        %v3119 = vpop.f32.mrb[0].mxu0
        %3120 = vmatprep.mubr.bf16.mxu0 0
        %3121 = vmatmul.mubr.bf16.gmra.mrb[0].mxu0 %v3029
        %v3122 = vpop.f32.mrb[0].mxu0
        %v3123 = vadd.f32 0.0, %v3122
        %v3124 = vpop.f32.mrb[0].mxu0
        %v3125 = vpop.f32.mrb[0].mxu0
        %v3126 = vadd.f32 0.0, %v3125
        %v3127 = vpop.f32.mrb[0].mxu0
        %3128 = vdwg.mxu0
        %v3129 = vadd.f32 %v2979, %v3115
        %v3130 = vadd.f32 %v2982, %v3118
        %v3131 = vadd.f32 %v2987, %v3123
        %v3132 = vadd.f32 %v2990, %v3126
        %s3133 = sadd.s32 %s2734, 1
        %s3134 = smul.u32 %s3133, 8
        %s3135 = smul.addr %s3134, 4
        %s3136 = scalar_lea.vmem [#allocation2], %s3135
        %v3137 = vld [vmem:[%s3136] sm:$0xf]
        %v3138 = vld [vmem:[%s3136 + $0x4] sm:$0xf]
        %v3139 = vld [vmem:[%s3136 + $0x8] sm:$0xf]
        %v3140 = vld [vmem:[%s3136 + $0xc] sm:$0xf]
        %v3141 = vld [vmem:[%s3136 + $0x10] sm:$0xf]
        %v3142 = vld [vmem:[%s3136 + $0x14] sm:$0xf]
        %v3143 = vld [vmem:[%s3136 + $0x18] sm:$0xf]
        %v3144 = vld [vmem:[#allocation5 + $0xc0] sm:$0xf]
        %v3145 = vld [vmem:[#allocation5 + $0xc4] sm:$0xf]
        %v3146 = vld [vmem:[#allocation5 + $0xc8] sm:$0xf]
        %v3147 = vld [vmem:[#allocation5 + $0xcc] sm:$0xf]
        %v3148 = vld [vmem:[#allocation5 + $0xd0] sm:$0xf]
        %v3149 = vld [vmem:[#allocation5 + $0xd4] sm:$0xf]
        %v3150 = vld [vmem:[#allocation5 + $0xd8] sm:$0xf]
        %v3151 = vld [vmem:[#allocation5 + $0xdc] sm:$0xf]
        %v3152 = vld [vmem:[#allocation5 + $0xe0] sm:$0xf]
        %v3153 = vld [vmem:[#allocation5 + $0xe4] sm:$0xf]
        %v3154 = vld [vmem:[#allocation5 + $0xe8] sm:$0xf]
        %v3155 = vld [vmem:[#allocation5 + $0xec] sm:$0xf]
        %v3156 = vld [vmem:[#allocation5 + $0xf0] sm:$0xf]
        %v3157 = vld [vmem:[#allocation5 + $0xf4] sm:$0xf]
        %v3158 = vld [vmem:[#allocation5 + $0xf8] sm:$0xf]
        %v3159 = vld [vmem:[#allocation5 + $0xfc] sm:$0xf]
        %v3164 = vunpack.c.l.b16 %v3137
        %v3165 = vunpack.c.l.b16 %v3138
        %v3166 = vunpack.c.l.b16 %v3139
        %v3167 = vunpack.c.l.b16 %v3140
        %v3168 = vpack.c.b16 %v3165, %v3164
        %v3169 = vpack.c.b16 %v3167, %v3166
        %v3188 = vunpack.c.l.b16 %v3144
        %v3189 = vunpack.c.l.b16 %v3145
        %v3190 = vunpack.c.l.b16 %v3146
        %v3191 = vunpack.c.l.b16 %v3147
        %v3192 = vunpack.c.l.b16 %v3148
        %v3193 = vunpack.c.l.b16 %v3149
        %v3194 = vunpack.c.l.b16 %v3150
        %v3195 = vunpack.c.l.b16 %v3151
        %v3196 = vunpack.c.l.b16 %v3152
        %v3197 = vunpack.c.l.b16 %v3153
        %v3198 = vunpack.c.l.b16 %v3154
        %v3199 = vunpack.c.l.b16 %v3155
        %v3200 = vunpack.c.l.b16 %v3156
        %v3201 = vunpack.c.l.b16 %v3157
        %v3202 = vunpack.c.l.b16 %v3158
        %v3203 = vunpack.c.l.b16 %v3159
        %v3204 = vpack.c.b16 %v3189, %v3188
        %v3205 = vpack.c.b16 %v3191, %v3190
        %v3206 = vpack.c.b16 %v3193, %v3192
        %v3207 = vpack.c.b16 %v3195, %v3194
        %v3208 = vpack.c.b16 %v3197, %v3196
        %v3209 = vpack.c.b16 %v3199, %v3198
        %v3210 = vpack.c.b16 %v3201, %v3200
        %v3211 = vpack.c.b16 %v3203, %v3202
        %3220 = vmatprep.subr.bf16.mxu0 0
        %3221 = vmatpush1.bf16.msra.mxu0 %v3204
        %3222 = vmatprep.subr.bf16.mxu0 0
        %3223 = vmatpush1.bf16.msra.mxu0 %v3205
        %3224 = vmatprep.subr.bf16.mxu0 0
        %3225 = vmatpush1.bf16.msra.mxu0 %v3206
        %3226 = vmatprep.subr.bf16.mxu0 0
        %3227 = vmatpush1.bf16.msra.mxu0 %v3207
        %3228 = vmatprep.subr.bf16.mxu0 0
        %3229 = vmatpush1.bf16.msra.mxu0 %v3208
        %3230 = vmatprep.subr.bf16.mxu0 0
        %3231 = vmatpush1.bf16.msra.mxu0 %v3209
        %3232 = vmatprep.subr.bf16.mxu0 0
        %3233 = vmatpush1.bf16.msra.mxu0 %v3210
        %3234 = vmatprep.subr.bf16.mxu0 0
        %3235 = vmatpush1.bf16.msra.mxu0 %v3211
        %3236 = vmatprep.subr.bf16.mxu0 0
        %3237 = vmatpush1.bf16.msra.mxu0 0
        %3238 = vmatprep.subr.bf16.mxu0 0
        %3239 = vmatpush1.bf16.msra.mxu0 0
        %3240 = vmatprep.subr.bf16.mxu0 0
        %3241 = vmatpush1.bf16.msra.mxu0 0
        %3242 = vmatprep.subr.bf16.mxu0 0
        %3243 = vmatpush1.bf16.msra.mxu0 0
        %3244 = vmatprep.subr.bf16.mxu0 0
        %3245 = vmatpush1.bf16.msra.mxu0 0
        %3246 = vmatprep.subr.bf16.mxu0 0
        %3247 = vmatpush1.bf16.msra.mxu0 0
        %3248 = vmatprep.subr.bf16.mxu0 0
        %3249 = vmatpush1.bf16.msra.mxu0 0
        %3250 = vmatprep.subr.bf16.mxu0 0
        %3251 = vmatpush1.bf16.msra.mxu0 0
        %3252 = vmatprep.mubr.bf16.mxu0 0
        %3253 = vmatmul.mubr.bf16.gmra.mrb[0].mxu0 %v3168
        %v3254 = vpop.f32.mrb[0].mxu0
        %v3255 = vadd.f32 0.0, %v3254
        %v3256 = vpop.f32.mrb[0].mxu0
        %v3257 = vpop.f32.mrb[0].mxu0
        %v3258 = vadd.f32 0.0, %v3257
        %v3259 = vpop.f32.mrb[0].mxu0
        %3260 = vmatprep.mubr.bf16.mxu0 0
        %3261 = vmatmul.mubr.bf16.gmra.mrb[0].mxu0 %v3169
        %v3262 = vpop.f32.mrb[0].mxu0
        %v3263 = vadd.f32 0.0, %v3262
        %v3264 = vpop.f32.mrb[0].mxu0
        %v3265 = vpop.f32.mrb[0].mxu0
        %v3266 = vadd.f32 0.0, %v3265
        %v3267 = vpop.f32.mrb[0].mxu0
        %3268 = vdwg.mxu0
        %v3269 = vadd.f32 %v3129, %v3255
        %v3270 = vadd.f32 %v3130, %v3258
        %v3271 = vadd.f32 %v3131, %v3263
        %v3272 = vadd.f32 %v3132, %v3266
        %v3273 = vld [vmem:[#allocation5 + $0x100] sm:$0xf]
        %v3274 = vld [vmem:[#allocation5 + $0x104] sm:$0xf]
        %v3275 = vld [vmem:[#allocation5 + $0x108] sm:$0xf]
        %v3276 = vld [vmem:[#allocation5 + $0x10c] sm:$0xf]
        %v3277 = vld [vmem:[#allocation5 + $0x110] sm:$0xf]
        %v3278 = vld [vmem:[#allocation5 + $0x114] sm:$0xf]
        %v3279 = vld [vmem:[#allocation5 + $0x118] sm:$0xf]
        %v3280 = vld [vmem:[#allocation5 + $0x11c] sm:$0xf]
        %v3281 = vld [vmem:[#allocation5 + $0x120] sm:$0xf]
        %v3282 = vld [vmem:[#allocation5 + $0x124] sm:$0xf]
        %v3283 = vld [vmem:[#allocation5 + $0x128] sm:$0xf]
        %v3284 = vld [vmem:[#allocation5 + $0x12c] sm:$0xf]
        %v3285 = vld [vmem:[#allocation5 + $0x130] sm:$0xf]
        %v3286 = vld [vmem:[#allocation5 + $0x134] sm:$0xf]
        %v3287 = vld [vmem:[#allocation5 + $0x138] sm:$0xf]
        %v3288 = vld [vmem:[#allocation5 + $0x13c] sm:$0xf]
        %v3292 = vunpack.c.l.b16 %v3141
        %v3293 = vunpack.c.l.b16 %v3142
        %v3294 = vunpack.c.l.b16 %v3143
        %v3295 = vpack.c.b16 %v3292, %v3167
        %v3296 = vpack.c.b16 %v3294, %v3293
        %v3315 = vunpack.c.l.b16 %v3273
        %v3316 = vunpack.c.l.b16 %v3274
        %v3317 = vunpack.c.l.b16 %v3275
        %v3318 = vunpack.c.l.b16 %v3276
        %v3319 = vunpack.c.l.b16 %v3277
        %v3320 = vunpack.c.l.b16 %v3278
        %v3321 = vunpack.c.l.b16 %v3279
        %v3322 = vunpack.c.l.b16 %v3280
        %v3323 = vunpack.c.l.b16 %v3281
        %v3324 = vunpack.c.l.b16 %v3282
        %v3325 = vunpack.c.l.b16 %v3283
        %v3326 = vunpack.c.l.b16 %v3284
        %v3327 = vunpack.c.l.b16 %v3285
        %v3328 = vunpack.c.l.b16 %v3286
        %v3329 = vunpack.c.l.b16 %v3287
        %v3330 = vunpack.c.l.b16 %v3288
        %v3331 = vpack.c.b16 %v3316, %v3315
        %v3332 = vpack.c.b16 %v3318, %v3317
        %v3333 = vpack.c.b16 %v3320, %v3319
        %v3334 = vpack.c.b16 %v3322, %v3321
        %v3335 = vpack.c.b16 %v3324, %v3323
        %v3336 = vpack.c.b16 %v3326, %v3325
        %v3337 = vpack.c.b16 %v3328, %v3327
        %v3338 = vpack.c.b16 %v3330, %v3329
        %3347 = vmatprep.subr.bf16.mxu0 0
        %3348 = vmatpush1.bf16.msra.mxu0 %v3331
        %3349 = vmatprep.subr.bf16.mxu0 0
        %3350 = vmatpush1.bf16.msra.mxu0 %v3332
        %3351 = vmatprep.subr.bf16.mxu0 0
        %3352 = vmatpush1.bf16.msra.mxu0 %v3333
        %3353 = vmatprep.subr.bf16.mxu0 0
        %3354 = vmatpush1.bf16.msra.mxu0 %v3334
        %3355 = vmatprep.subr.bf16.mxu0 0
        %3356 = vmatpush1.bf16.msra.mxu0 %v3335
        %3357 = vmatprep.subr.bf16.mxu0 0
        %3358 = vmatpush1.bf16.msra.mxu0 %v3336
        %3359 = vmatprep.subr.bf16.mxu0 0
        %3360 = vmatpush1.bf16.msra.mxu0 %v3337
        %3361 = vmatprep.subr.bf16.mxu0 0
        %3362 = vmatpush1.bf16.msra.mxu0 %v3338
        %3363 = vmatprep.subr.bf16.mxu0 0
        %3364 = vmatpush1.bf16.msra.mxu0 0
        %3365 = vmatprep.subr.bf16.mxu0 0
        %3366 = vmatpush1.bf16.msra.mxu0 0
        %3367 = vmatprep.subr.bf16.mxu0 0
        %3368 = vmatpush1.bf16.msra.mxu0 0
        %3369 = vmatprep.subr.bf16.mxu0 0
        %3370 = vmatpush1.bf16.msra.mxu0 0
        %3371 = vmatprep.subr.bf16.mxu0 0
        %3372 = vmatpush1.bf16.msra.mxu0 0
        %3373 = vmatprep.subr.bf16.mxu0 0
        %3374 = vmatpush1.bf16.msra.mxu0 0
        %3375 = vmatprep.subr.bf16.mxu0 0
        %3376 = vmatpush1.bf16.msra.mxu0 0
        %3377 = vmatprep.subr.bf16.mxu0 0
        %3378 = vmatpush1.bf16.msra.mxu0 0
        %3379 = vmatprep.mubr.bf16.mxu0 0
        %3380 = vmatmul.mubr.bf16.gmra.mrb[0].mxu0 %v3295
        %v3381 = vpop.f32.mrb[0].mxu0
        %v3382 = vadd.f32 0.0, %v3381
        %v3383 = vpop.f32.mrb[0].mxu0
        %v3384 = vpop.f32.mrb[0].mxu0
        %v3385 = vadd.f32 0.0, %v3384
        %v3386 = vpop.f32.mrb[0].mxu0
        %3387 = vmatprep.mubr.bf16.mxu0 0
        %3388 = vmatmul.mubr.bf16.gmra.mrb[0].mxu0 %v3296
        %v3389 = vpop.f32.mrb[0].mxu0
        %v3390 = vadd.f32 0.0, %v3389
        %v3391 = vpop.f32.mrb[0].mxu0
        %v3392 = vpop.f32.mrb[0].mxu0
        %v3393 = vadd.f32 0.0, %v3392
        %v3394 = vpop.f32.mrb[0].mxu0
        %3395 = vdwg.mxu0
        %v3396 = vadd.f32 %v3269, %v3382
        %v3397 = vadd.f32 %v3270, %v3385
        %v3398 = vadd.f32 %v3271, %v3390
        %v3399 = vadd.f32 %v3272, %v3393
        %v3400 = vld [vmem:[#allocation5 + $0x140] sm:$0xf]
        %v3401 = vld [vmem:[#allocation5 + $0x144] sm:$0xf]
        %v3402 = vld [vmem:[#allocation5 + $0x148] sm:$0xf]
        %v3403 = vld [vmem:[#allocation5 + $0x14c] sm:$0xf]
        %v3404 = vld [vmem:[#allocation5 + $0x150] sm:$0xf]
        %v3405 = vld [vmem:[#allocation5 + $0x154] sm:$0xf]
        %v3406 = vld [vmem:[#allocation5 + $0x158] sm:$0xf]
        %v3407 = vld [vmem:[#allocation5 + $0x15c] sm:$0xf]
        %v3408 = vld [vmem:[#allocation5 + $0x160] sm:$0xf]
        %v3409 = vld [vmem:[#allocation5 + $0x164] sm:$0xf]
        %v3410 = vld [vmem:[#allocation5 + $0x168] sm:$0xf]
        %v3411 = vld [vmem:[#allocation5 + $0x16c] sm:$0xf]
        %v3412 = vld [vmem:[#allocation5 + $0x170] sm:$0xf]
        %v3413 = vld [vmem:[#allocation5 + $0x174] sm:$0xf]
        %v3414 = vld [vmem:[#allocation5 + $0x178] sm:$0xf]
        %v3415 = vld [vmem:[#allocation5 + $0x17c] sm:$0xf]
        %v3416 = vpack.c.b16 %v3292, %v3292
        %v3418 = vshrl.u32 %v3168, 16
        %v3420 = vshll.u32 %v3168, 16
        %v3422 = vrot.slane %v3420, 1
        %v3423 = vor.u32 %v3418, %v3422
        %v3425 = vshll.u32 %v3169, 16
        %v3427 = vrot.slane %v3425, 1
        %v3428 = vsel %vm490, %v3423, %v3427
        %v3429 = vshrl.u32 %v3169, 16
        %v3431 = vor.u32 %v3429, %v3427
        %v3433 = vshll.u32 %v3416, 16
        %v3435 = vrot.slane %v3433, 1
        %v3436 = vsel %vm490, %v3431, %v3435
        %v3455 = vunpack.c.l.b16 %v3400
        %v3456 = vunpack.c.l.b16 %v3401
        %v3457 = vunpack.c.l.b16 %v3402
        %v3458 = vunpack.c.l.b16 %v3403
        %v3459 = vunpack.c.l.b16 %v3404
        %v3460 = vunpack.c.l.b16 %v3405
        %v3461 = vunpack.c.l.b16 %v3406
        %v3462 = vunpack.c.l.b16 %v3407
        %v3463 = vunpack.c.l.b16 %v3408
        %v3464 = vunpack.c.l.b16 %v3409
        %v3465 = vunpack.c.l.b16 %v3410
        %v3466 = vunpack.c.l.b16 %v3411
        %v3467 = vunpack.c.l.b16 %v3412
        %v3468 = vunpack.c.l.b16 %v3413
        %v3469 = vunpack.c.l.b16 %v3414
        %v3470 = vunpack.c.l.b16 %v3415
        %v3471 = vpack.c.b16 %v3456, %v3455
        %v3472 = vpack.c.b16 %v3458, %v3457
        %v3473 = vpack.c.b16 %v3460, %v3459
        %v3474 = vpack.c.b16 %v3462, %v3461
        %v3475 = vpack.c.b16 %v3464, %v3463
        %v3476 = vpack.c.b16 %v3466, %v3465
        %v3477 = vpack.c.b16 %v3468, %v3467
        %v3478 = vpack.c.b16 %v3470, %v3469
        %3487 = vmatprep.subr.bf16.mxu0 0
        %3488 = vmatpush1.bf16.msra.mxu0 %v3471
        %3489 = vmatprep.subr.bf16.mxu0 0
        %3490 = vmatpush1.bf16.msra.mxu0 %v3472
        %3491 = vmatprep.subr.bf16.mxu0 0
        %3492 = vmatpush1.bf16.msra.mxu0 %v3473
        %3493 = vmatprep.subr.bf16.mxu0 0
        %3494 = vmatpush1.bf16.msra.mxu0 %v3474
        %3495 = vmatprep.subr.bf16.mxu0 0
        %3496 = vmatpush1.bf16.msra.mxu0 %v3475
        %3497 = vmatprep.subr.bf16.mxu0 0
        %3498 = vmatpush1.bf16.msra.mxu0 %v3476
        %3499 = vmatprep.subr.bf16.mxu0 0
        %3500 = vmatpush1.bf16.msra.mxu0 %v3477
        %3501 = vmatprep.subr.bf16.mxu0 0
        %3502 = vmatpush1.bf16.msra.mxu0 %v3478
        %3503 = vmatprep.subr.bf16.mxu0 0
        %3504 = vmatpush1.bf16.msra.mxu0 0
        %3505 = vmatprep.subr.bf16.mxu0 0
        %3506 = vmatpush1.bf16.msra.mxu0 0
        %3507 = vmatprep.subr.bf16.mxu0 0
        %3508 = vmatpush1.bf16.msra.mxu0 0
        %3509 = vmatprep.subr.bf16.mxu0 0
        %3510 = vmatpush1.bf16.msra.mxu0 0
        %3511 = vmatprep.subr.bf16.mxu0 0
        %3512 = vmatpush1.bf16.msra.mxu0 0
        %3513 = vmatprep.subr.bf16.mxu0 0
        %3514 = vmatpush1.bf16.msra.mxu0 0
        %3515 = vmatprep.subr.bf16.mxu0 0
        %3516 = vmatpush1.bf16.msra.mxu0 0
        %3517 = vmatprep.subr.bf16.mxu0 0
        %3518 = vmatpush1.bf16.msra.mxu0 0
        %3519 = vmatprep.mubr.bf16.mxu0 0
        %3520 = vmatmul.mubr.bf16.gmra.mrb[0].mxu0 %v3428
        %v3521 = vpop.f32.mrb[0].mxu0
        %v3522 = vadd.f32 0.0, %v3521
        %v3523 = vpop.f32.mrb[0].mxu0
        %v3524 = vpop.f32.mrb[0].mxu0
        %v3525 = vadd.f32 0.0, %v3524
        %v3526 = vpop.f32.mrb[0].mxu0
        %3527 = vmatprep.mubr.bf16.mxu0 0
        %3528 = vmatmul.mubr.bf16.gmra.mrb[0].mxu0 %v3436
        %v3529 = vpop.f32.mrb[0].mxu0
        %v3530 = vadd.f32 0.0, %v3529
        %v3531 = vpop.f32.mrb[0].mxu0
        %v3532 = vpop.f32.mrb[0].mxu0
        %v3533 = vadd.f32 0.0, %v3532
        %v3534 = vpop.f32.mrb[0].mxu0
        %3535 = vdwg.mxu0
        %v3536 = vadd.f32 %v3396, %v3522
        %v3537 = vadd.f32 %v3397, %v3525
        %v3538 = vadd.f32 %v3398, %v3530
        %v3539 = vadd.f32 %v3399, %v3533
        %s3540 = sadd.s32 %s2734, 2
        %s3541 = smul.u32 %s3540, 8
        %s3542 = smul.addr %s3541, 4
        %s3543 = scalar_lea.vmem [#allocation2], %s3542
        %v3544 = vld [vmem:[%s3543] sm:$0xf]
        %v3545 = vld [vmem:[%s3543 + $0x4] sm:$0xf]
        %v3546 = vld [vmem:[%s3543 + $0x8] sm:$0xf]
        %v3547 = vld [vmem:[%s3543 + $0xc] sm:$0xf]
        %v3548 = vld [vmem:[%s3543 + $0x10] sm:$0xf]
        %v3549 = vld [vmem:[%s3543 + $0x14] sm:$0xf]
        %v3550 = vld [vmem:[%s3543 + $0x18] sm:$0xf]
        %v3551 = vld [vmem:[#allocation5 + $0x180] sm:$0xf]
        %v3552 = vld [vmem:[#allocation5 + $0x184] sm:$0xf]
        %v3553 = vld [vmem:[#allocation5 + $0x188] sm:$0xf]
        %v3554 = vld [vmem:[#allocation5 + $0x18c] sm:$0xf]
        %v3555 = vld [vmem:[#allocation5 + $0x190] sm:$0xf]
        %v3556 = vld [vmem:[#allocation5 + $0x194] sm:$0xf]
        %v3557 = vld [vmem:[#allocation5 + $0x198] sm:$0xf]
        %v3558 = vld [vmem:[#allocation5 + $0x19c] sm:$0xf]
        %v3559 = vld [vmem:[#allocation5 + $0x1a0] sm:$0xf]
        %v3560 = vld [vmem:[#allocation5 + $0x1a4] sm:$0xf]
        %v3561 = vld [vmem:[#allocation5 + $0x1a8] sm:$0xf]
        %v3562 = vld [vmem:[#allocation5 + $0x1ac] sm:$0xf]
        %v3563 = vld [vmem:[#allocation5 + $0x1b0] sm:$0xf]
        %v3564 = vld [vmem:[#allocation5 + $0x1b4] sm:$0xf]
        %v3565 = vld [vmem:[#allocation5 + $0x1b8] sm:$0xf]
        %v3566 = vld [vmem:[#allocation5 + $0x1bc] sm:$0xf]
        %v3571 = vunpack.c.l.b16 %v3544
        %v3572 = vunpack.c.l.b16 %v3545
        %v3573 = vunpack.c.l.b16 %v3546
        %v3574 = vunpack.c.l.b16 %v3547
        %v3575 = vpack.c.b16 %v3572, %v3571
        %v3576 = vpack.c.b16 %v3574, %v3573
        %v3595 = vunpack.c.l.b16 %v3551
        %v3596 = vunpack.c.l.b16 %v3552
        %v3597 = vunpack.c.l.b16 %v3553
        %v3598 = vunpack.c.l.b16 %v3554
        %v3599 = vunpack.c.l.b16 %v3555
        %v3600 = vunpack.c.l.b16 %v3556
        %v3601 = vunpack.c.l.b16 %v3557
        %v3602 = vunpack.c.l.b16 %v3558
        %v3603 = vunpack.c.l.b16 %v3559
        %v3604 = vunpack.c.l.b16 %v3560
        %v3605 = vunpack.c.l.b16 %v3561
        %v3606 = vunpack.c.l.b16 %v3562
        %v3607 = vunpack.c.l.b16 %v3563
        %v3608 = vunpack.c.l.b16 %v3564
        %v3609 = vunpack.c.l.b16 %v3565
        %v3610 = vunpack.c.l.b16 %v3566
        %v3611 = vpack.c.b16 %v3596, %v3595
        %v3612 = vpack.c.b16 %v3598, %v3597
        %v3613 = vpack.c.b16 %v3600, %v3599
        %v3614 = vpack.c.b16 %v3602, %v3601
        %v3615 = vpack.c.b16 %v3604, %v3603
        %v3616 = vpack.c.b16 %v3606, %v3605
        %v3617 = vpack.c.b16 %v3608, %v3607
        %v3618 = vpack.c.b16 %v3610, %v3609
        %3627 = vmatprep.subr.bf16.mxu0 0
        %3628 = vmatpush1.bf16.msra.mxu0 %v3611
        %3629 = vmatprep.subr.bf16.mxu0 0
        %3630 = vmatpush1.bf16.msra.mxu0 %v3612
        %3631 = vmatprep.subr.bf16.mxu0 0
        %3632 = vmatpush1.bf16.msra.mxu0 %v3613
        %3633 = vmatprep.subr.bf16.mxu0 0
        %3634 = vmatpush1.bf16.msra.mxu0 %v3614
        %3635 = vmatprep.subr.bf16.mxu0 0
        %3636 = vmatpush1.bf16.msra.mxu0 %v3615
        %3637 = vmatprep.subr.bf16.mxu0 0
        %3638 = vmatpush1.bf16.msra.mxu0 %v3616
        %3639 = vmatprep.subr.bf16.mxu0 0
        %3640 = vmatpush1.bf16.msra.mxu0 %v3617
        %3641 = vmatprep.subr.bf16.mxu0 0
        %3642 = vmatpush1.bf16.msra.mxu0 %v3618
        %3643 = vmatprep.subr.bf16.mxu0 0
        %3644 = vmatpush1.bf16.msra.mxu0 0
        %3645 = vmatprep.subr.bf16.mxu0 0
        %3646 = vmatpush1.bf16.msra.mxu0 0
        %3647 = vmatprep.subr.bf16.mxu0 0
        %3648 = vmatpush1.bf16.msra.mxu0 0
        %3649 = vmatprep.subr.bf16.mxu0 0
        %3650 = vmatpush1.bf16.msra.mxu0 0
        %3651 = vmatprep.subr.bf16.mxu0 0
        %3652 = vmatpush1.bf16.msra.mxu0 0
        %3653 = vmatprep.subr.bf16.mxu0 0
        %3654 = vmatpush1.bf16.msra.mxu0 0
        %3655 = vmatprep.subr.bf16.mxu0 0
        %3656 = vmatpush1.bf16.msra.mxu0 0
        %3657 = vmatprep.subr.bf16.mxu0 0
        %3658 = vmatpush1.bf16.msra.mxu0 0
        %3659 = vmatprep.mubr.bf16.mxu0 0
        %3660 = vmatmul.mubr.bf16.gmra.mrb[0].mxu0 %v3575
        %v3661 = vpop.f32.mrb[0].mxu0
        %v3662 = vadd.f32 0.0, %v3661
        %v3663 = vpop.f32.mrb[0].mxu0
        %v3664 = vpop.f32.mrb[0].mxu0
        %v3665 = vadd.f32 0.0, %v3664
        %v3666 = vpop.f32.mrb[0].mxu0
        %3667 = vmatprep.mubr.bf16.mxu0 0
        %3668 = vmatmul.mubr.bf16.gmra.mrb[0].mxu0 %v3576
        %v3669 = vpop.f32.mrb[0].mxu0
        %v3670 = vadd.f32 0.0, %v3669
        %v3671 = vpop.f32.mrb[0].mxu0
        %v3672 = vpop.f32.mrb[0].mxu0
        %v3673 = vadd.f32 0.0, %v3672
        %v3674 = vpop.f32.mrb[0].mxu0
        %3675 = vdwg.mxu0
        %v3676 = vadd.f32 %v3536, %v3662
        %v3677 = vadd.f32 %v3537, %v3665
        %v3678 = vadd.f32 %v3538, %v3670
        %v3679 = vadd.f32 %v3539, %v3673
        %v3680 = vld [vmem:[#allocation5 + $0x1c0] sm:$0xf]
        %v3681 = vld [vmem:[#allocation5 + $0x1c4] sm:$0xf]
        %v3682 = vld [vmem:[#allocation5 + $0x1c8] sm:$0xf]
        %v3683 = vld [vmem:[#allocation5 + $0x1cc] sm:$0xf]
        %v3684 = vld [vmem:[#allocation5 + $0x1d0] sm:$0xf]
        %v3685 = vld [vmem:[#allocation5 + $0x1d4] sm:$0xf]
        %v3686 = vld [vmem:[#allocation5 + $0x1d8] sm:$0xf]
        %v3687 = vld [vmem:[#allocation5 + $0x1dc] sm:$0xf]
        %v3688 = vld [vmem:[#allocation5 + $0x1e0] sm:$0xf]
        %v3689 = vld [vmem:[#allocation5 + $0x1e4] sm:$0xf]
        %v3690 = vld [vmem:[#allocation5 + $0x1e8] sm:$0xf]
        %v3691 = vld [vmem:[#allocation5 + $0x1ec] sm:$0xf]
        %v3692 = vld [vmem:[#allocation5 + $0x1f0] sm:$0xf]
        %v3693 = vld [vmem:[#allocation5 + $0x1f4] sm:$0xf]
        %v3694 = vld [vmem:[#allocation5 + $0x1f8] sm:$0xf]
        %v3695 = vld [vmem:[#allocation5 + $0x1fc] sm:$0xf]
        %v3699 = vunpack.c.l.b16 %v3548
        %v3700 = vunpack.c.l.b16 %v3549
        %v3701 = vunpack.c.l.b16 %v3550
        %v3702 = vpack.c.b16 %v3699, %v3574
        %v3703 = vpack.c.b16 %v3701, %v3700
        %v3722 = vunpack.c.l.b16 %v3680
        %v3723 = vunpack.c.l.b16 %v3681
        %v3724 = vunpack.c.l.b16 %v3682
        %v3725 = vunpack.c.l.b16 %v3683
        %v3726 = vunpack.c.l.b16 %v3684
        %v3727 = vunpack.c.l.b16 %v3685
        %v3728 = vunpack.c.l.b16 %v3686
        %v3729 = vunpack.c.l.b16 %v3687
        %v3730 = vunpack.c.l.b16 %v3688
        %v3731 = vunpack.c.l.b16 %v3689
        %v3732 = vunpack.c.l.b16 %v3690
        %v3733 = vunpack.c.l.b16 %v3691
        %v3734 = vunpack.c.l.b16 %v3692
        %v3735 = vunpack.c.l.b16 %v3693
        %v3736 = vunpack.c.l.b16 %v3694
        %v3737 = vunpack.c.l.b16 %v3695
        %v3738 = vpack.c.b16 %v3723, %v3722
        %v3739 = vpack.c.b16 %v3725, %v3724
        %v3740 = vpack.c.b16 %v3727, %v3726
        %v3741 = vpack.c.b16 %v3729, %v3728
        %v3742 = vpack.c.b16 %v3731, %v3730
        %v3743 = vpack.c.b16 %v3733, %v3732
        %v3744 = vpack.c.b16 %v3735, %v3734
        %v3745 = vpack.c.b16 %v3737, %v3736
        %3754 = vmatprep.subr.bf16.mxu0 0
        %3755 = vmatpush1.bf16.msra.mxu0 %v3738
        %3756 = vmatprep.subr.bf16.mxu0 0
        %3757 = vmatpush1.bf16.msra.mxu0 %v3739
        %3758 = vmatprep.subr.bf16.mxu0 0
        %3759 = vmatpush1.bf16.msra.mxu0 %v3740
        %3760 = vmatprep.subr.bf16.mxu0 0
        %3761 = vmatpush1.bf16.msra.mxu0 %v3741
        %3762 = vmatprep.subr.bf16.mxu0 0
        %3763 = vmatpush1.bf16.msra.mxu0 %v3742
        %3764 = vmatprep.subr.bf16.mxu0 0
        %3765 = vmatpush1.bf16.msra.mxu0 %v3743
        %3766 = vmatprep.subr.bf16.mxu0 0
        %3767 = vmatpush1.bf16.msra.mxu0 %v3744
        %3768 = vmatprep.subr.bf16.mxu0 0
        %3769 = vmatpush1.bf16.msra.mxu0 %v3745
        %3770 = vmatprep.subr.bf16.mxu0 0
        %3771 = vmatpush1.bf16.msra.mxu0 0
        %3772 = vmatprep.subr.bf16.mxu0 0
        %3773 = vmatpush1.bf16.msra.mxu0 0
        %3774 = vmatprep.subr.bf16.mxu0 0
        %3775 = vmatpush1.bf16.msra.mxu0 0
        %3776 = vmatprep.subr.bf16.mxu0 0
        %3777 = vmatpush1.bf16.msra.mxu0 0
        %3778 = vmatprep.subr.bf16.mxu0 0
        %3779 = vmatpush1.bf16.msra.mxu0 0
        %3780 = vmatprep.subr.bf16.mxu0 0
        %3781 = vmatpush1.bf16.msra.mxu0 0
        %3782 = vmatprep.subr.bf16.mxu0 0
        %3783 = vmatpush1.bf16.msra.mxu0 0
        %3784 = vmatprep.subr.bf16.mxu0 0
        %3785 = vmatpush1.bf16.msra.mxu0 0
        %3786 = vmatprep.mubr.bf16.mxu0 0
        %3787 = vmatmul.mubr.bf16.gmra.mrb[0].mxu0 %v3702
        %v3788 = vpop.f32.mrb[0].mxu0
        %v3789 = vadd.f32 0.0, %v3788
        %v3790 = vpop.f32.mrb[0].mxu0
        %v3791 = vpop.f32.mrb[0].mxu0
        %v3792 = vadd.f32 0.0, %v3791
        %v3793 = vpop.f32.mrb[0].mxu0
        %3794 = vmatprep.mubr.bf16.mxu0 0
        %3795 = vmatmul.mubr.bf16.gmra.mrb[0].mxu0 %v3703
        %v3796 = vpop.f32.mrb[0].mxu0
        %v3797 = vadd.f32 0.0, %v3796
        %v3798 = vpop.f32.mrb[0].mxu0
        %v3799 = vpop.f32.mrb[0].mxu0
        %v3800 = vadd.f32 0.0, %v3799
        %v3801 = vpop.f32.mrb[0].mxu0
        %3802 = vdwg.mxu0
        %v3803 = vadd.f32 %v3676, %v3789
        %v3804 = vadd.f32 %v3677, %v3792
        %v3805 = vadd.f32 %v3678, %v3797
        %v3806 = vadd.f32 %v3679, %v3800
        %v3807 = vld [vmem:[#allocation5 + $0x200] sm:$0xf]
        %v3808 = vld [vmem:[#allocation5 + $0x204] sm:$0xf]
        %v3809 = vld [vmem:[#allocation5 + $0x208] sm:$0xf]
        %v3810 = vld [vmem:[#allocation5 + $0x20c] sm:$0xf]
        %v3811 = vld [vmem:[#allocation5 + $0x210] sm:$0xf]
        %v3812 = vld [vmem:[#allocation5 + $0x214] sm:$0xf]
        %v3813 = vld [vmem:[#allocation5 + $0x218] sm:$0xf]
        %v3814 = vld [vmem:[#allocation5 + $0x21c] sm:$0xf]
        %v3815 = vld [vmem:[#allocation5 + $0x220] sm:$0xf]
        %v3816 = vld [vmem:[#allocation5 + $0x224] sm:$0xf]
        %v3817 = vld [vmem:[#allocation5 + $0x228] sm:$0xf]
        %v3818 = vld [vmem:[#allocation5 + $0x22c] sm:$0xf]
        %v3819 = vld [vmem:[#allocation5 + $0x230] sm:$0xf]
        %v3820 = vld [vmem:[#allocation5 + $0x234] sm:$0xf]
        %v3821 = vld [vmem:[#allocation5 + $0x238] sm:$0xf]
        %v3822 = vld [vmem:[#allocation5 + $0x23c] sm:$0xf]
        %v3823 = vpack.c.b16 %v3699, %v3699
        %v3825 = vshrl.u32 %v3575, 16
        %v3827 = vshll.u32 %v3575, 16
        %v3829 = vrot.slane %v3827, 1
        %v3830 = vor.u32 %v3825, %v3829
        %v3832 = vshll.u32 %v3576, 16
        %v3834 = vrot.slane %v3832, 1
        %v3835 = vsel %vm490, %v3830, %v3834
        %v3836 = vshrl.u32 %v3576, 16
        %v3838 = vor.u32 %v3836, %v3834
        %v3840 = vshll.u32 %v3823, 16
        %v3842 = vrot.slane %v3840, 1
        %v3843 = vsel %vm490, %v3838, %v3842
        %v3862 = vunpack.c.l.b16 %v3807
        %v3863 = vunpack.c.l.b16 %v3808
        %v3864 = vunpack.c.l.b16 %v3809
        %v3865 = vunpack.c.l.b16 %v3810
        %v3866 = vunpack.c.l.b16 %v3811
        %v3867 = vunpack.c.l.b16 %v3812
        %v3868 = vunpack.c.l.b16 %v3813
        %v3869 = vunpack.c.l.b16 %v3814
        %v3870 = vunpack.c.l.b16 %v3815
        %v3871 = vunpack.c.l.b16 %v3816
        %v3872 = vunpack.c.l.b16 %v3817
        %v3873 = vunpack.c.l.b16 %v3818
        %v3874 = vunpack.c.l.b16 %v3819
        %v3875 = vunpack.c.l.b16 %v3820
        %v3876 = vunpack.c.l.b16 %v3821
        %v3877 = vunpack.c.l.b16 %v3822
        %v3878 = vpack.c.b16 %v3863, %v3862
        %v3879 = vpack.c.b16 %v3865, %v3864
        %v3880 = vpack.c.b16 %v3867, %v3866
        %v3881 = vpack.c.b16 %v3869, %v3868
        %v3882 = vpack.c.b16 %v3871, %v3870
        %v3883 = vpack.c.b16 %v3873, %v3872
        %v3884 = vpack.c.b16 %v3875, %v3874
        %v3885 = vpack.c.b16 %v3877, %v3876
        %3894 = vmatprep.subr.bf16.mxu0 0
        %3895 = vmatpush1.bf16.msra.mxu0 %v3878
        %3896 = vmatprep.subr.bf16.mxu0 0
        %3897 = vmatpush1.bf16.msra.mxu0 %v3879
        %3898 = vmatprep.subr.bf16.mxu0 0
        %3899 = vmatpush1.bf16.msra.mxu0 %v3880
        %3900 = vmatprep.subr.bf16.mxu0 0
        %3901 = vmatpush1.bf16.msra.mxu0 %v3881
        %3902 = vmatprep.subr.bf16.mxu0 0
        %3903 = vmatpush1.bf16.msra.mxu0 %v3882
        %3904 = vmatprep.subr.bf16.mxu0 0
        %3905 = vmatpush1.bf16.msra.mxu0 %v3883
        %3906 = vmatprep.subr.bf16.mxu0 0
        %3907 = vmatpush1.bf16.msra.mxu0 %v3884
        %3908 = vmatprep.subr.bf16.mxu0 0
        %3909 = vmatpush1.bf16.msra.mxu0 %v3885
        %3910 = vmatprep.subr.bf16.mxu0 0
        %3911 = vmatpush1.bf16.msra.mxu0 0
        %3912 = vmatprep.subr.bf16.mxu0 0
        %3913 = vmatpush1.bf16.msra.mxu0 0
        %3914 = vmatprep.subr.bf16.mxu0 0
        %3915 = vmatpush1.bf16.msra.mxu0 0
        %3916 = vmatprep.subr.bf16.mxu0 0
        %3917 = vmatpush1.bf16.msra.mxu0 0
        %3918 = vmatprep.subr.bf16.mxu0 0
        %3919 = vmatpush1.bf16.msra.mxu0 0
        %3920 = vmatprep.subr.bf16.mxu0 0
        %3921 = vmatpush1.bf16.msra.mxu0 0
        %3922 = vmatprep.subr.bf16.mxu0 0
        %3923 = vmatpush1.bf16.msra.mxu0 0
        %3924 = vmatprep.subr.bf16.mxu0 0
        %3925 = vmatpush1.bf16.msra.mxu0 0
        %3926 = vmatprep.mubr.bf16.mxu0 0
        %3927 = vmatmul.mubr.bf16.gmra.mrb[0].mxu0 %v3835
        %v3928 = vpop.f32.mrb[0].mxu0
        %v3929 = vadd.f32 0.0, %v3928
        %v3930 = vpop.f32.mrb[0].mxu0
        %v3931 = vpop.f32.mrb[0].mxu0
        %v3932 = vadd.f32 0.0, %v3931
        %v3933 = vpop.f32.mrb[0].mxu0
        %3934 = vmatprep.mubr.bf16.mxu0 0
        %3935 = vmatmul.mubr.bf16.gmra.mrb[0].mxu0 %v3843
        %v3936 = vpop.f32.mrb[0].mxu0
        %v3937 = vadd.f32 0.0, %v3936
        %v3938 = vpop.f32.mrb[0].mxu0
        %v3939 = vpop.f32.mrb[0].mxu0
        %v3940 = vadd.f32 0.0, %v3939
        %v3941 = vpop.f32.mrb[0].mxu0
        %3942 = vdwg.mxu0
        %v3943 = vadd.f32 %v3803, %v3929
        %v3944 = vadd.f32 %v3804, %v3932
        %v3945 = vadd.f32 %v3805, %v3937
        %v3946 = vadd.f32 %v3806, %v3940
        %v3947 = vadd.f32 %v3943, %v1432
        %v3948 = vadd.f32 %v3944, %v1432
        %v3949 = vadd.f32 %v3945, %v1432
        %v3950 = vadd.f32 %v3946, %v1432
        %v3951 = vmax.f32 %v3947, 0.0
        %v3952 = vmax.f32 %v3948, 0.0
        %v3953 = vmax.f32 %v3949, 0.0
        %v3954 = vmax.f32 %v3950, 0.0
        %v3955 = vmul.f32 %v3951, %v1445
        %v3956 = vmul.f32 %v3952, %v1450
        %v3957 = vmul.f32 %v3953, %v1455
        %v3958 = vmul.f32 %v3954, %v1460
        %v3959 = vpack.c.bf16 %v3956, %v3955
        %v3960 = vpack.c.bf16 %v3958, %v3957
        %v3963 = vunpack.c.l.b16 %v3959
        %v3964 = vunpack.c.h.b16 %v3959
        %v3965 = vunpack.c.l.b16 %v3960
        %v3966 = vunpack.c.h.b16 %v3960
        %v3967 = vpack.c.b16 %v3963, %v3963
        %v3968 = vpack.c.b16 %v3964, %v3964
        %v3969 = vpack.c.b16 %v3965, %v3965
        %v3970 = vpack.c.b16 %v3966, %v3966
        %s3975 = scalar_lea.vmem %s205, 32 [#allocation7]
        %3976 = vst [vmem:[%s3975] sm:$0xf] %v3967
        %3977 = vst [vmem:[%s3975 + $0x4] sm:$0xf] %v3968
        %3978 = vst [vmem:[%s3975 + $0x8] sm:$0xf] %v3969
        %3979 = vst [vmem:[%s3975 + $0xc] sm:$0xf] %v3970
        %s3980 = sadd.s32 %s208, 3
        %s3981 = smul.u32 %s3980, 2
        %s3982 = smul.u32 %s3981, 8
        %s3983 = smul.addr %s3982, 4
        %s3984 = scalar_lea.vmem [#allocation2], %s3983
        %v3985 = vld [vmem:[%s3984] sm:$0xf]
        %v3986 = vld [vmem:[%s3984 + $0x4] sm:$0xf]
        %v3987 = vld [vmem:[%s3984 + $0x8] sm:$0xf]
        %v3988 = vld [vmem:[%s3984 + $0xc] sm:$0xf]
        %v3989 = vld [vmem:[%s3984 + $0x10] sm:$0xf]
        %v3990 = vld [vmem:[%s3984 + $0x14] sm:$0xf]
        %v3991 = vld [vmem:[%s3984 + $0x18] sm:$0xf]
        %v3992 = vld [vmem:[#allocation5] sm:$0xf]
        %v3993 = vld [vmem:[#allocation5 + $0x4] sm:$0xf]
        %v3994 = vld [vmem:[#allocation5 + $0x8] sm:$0xf]
        %v3995 = vld [vmem:[#allocation5 + $0xc] sm:$0xf]
        %v3996 = vld [vmem:[#allocation5 + $0x10] sm:$0xf]
        %v3997 = vld [vmem:[#allocation5 + $0x14] sm:$0xf]
        %v3998 = vld [vmem:[#allocation5 + $0x18] sm:$0xf]
        %v3999 = vld [vmem:[#allocation5 + $0x1c] sm:$0xf]
        %v4000 = vld [vmem:[#allocation5 + $0x20] sm:$0xf]
        %v4001 = vld [vmem:[#allocation5 + $0x24] sm:$0xf]
        %v4002 = vld [vmem:[#allocation5 + $0x28] sm:$0xf]
        %v4003 = vld [vmem:[#allocation5 + $0x2c] sm:$0xf]
        %v4004 = vld [vmem:[#allocation5 + $0x30] sm:$0xf]
        %v4005 = vld [vmem:[#allocation5 + $0x34] sm:$0xf]
        %v4006 = vld [vmem:[#allocation5 + $0x38] sm:$0xf]
        %v4007 = vld [vmem:[#allocation5 + $0x3c] sm:$0xf]
        %v4008 = vld [vmem:[#allocation5 + $0x40] sm:$0xf]
        %v4009 = vld [vmem:[#allocation5 + $0x44] sm:$0xf]
        %v4010 = vld [vmem:[#allocation5 + $0x48] sm:$0xf]
        %v4011 = vld [vmem:[#allocation5 + $0x4c] sm:$0xf]
        %v4012 = vld [vmem:[#allocation5 + $0x50] sm:$0xf]
        %v4013 = vld [vmem:[#allocation5 + $0x54] sm:$0xf]
        %v4014 = vld [vmem:[#allocation5 + $0x58] sm:$0xf]
        %v4015 = vld [vmem:[#allocation5 + $0x5c] sm:$0xf]
        %v4016 = vld [vmem:[#allocation5 + $0x60] sm:$0xf]
        %v4017 = vld [vmem:[#allocation5 + $0x64] sm:$0xf]
        %v4018 = vld [vmem:[#allocation5 + $0x68] sm:$0xf]
        %v4019 = vld [vmem:[#allocation5 + $0x6c] sm:$0xf]
        %v4020 = vld [vmem:[#allocation5 + $0x70] sm:$0xf]
        %v4021 = vld [vmem:[#allocation5 + $0x74] sm:$0xf]
        %v4022 = vld [vmem:[#allocation5 + $0x78] sm:$0xf]
        %v4023 = vld [vmem:[#allocation5 + $0x7c] sm:$0xf]
        %v4028 = vunpack.c.l.b16 %v3988
        %v4029 = vunpack.c.l.b16 %v3989
        %v4030 = vunpack.c.l.b16 %v3990
        %v4031 = vunpack.c.l.b16 %v3991
        %v4032 = vpack.c.b16 %v4029, %v4028
        %v4033 = vpack.c.b16 %v4031, %v4030
        %v4052 = vunpack.c.l.b16 %v4008
        %v4053 = vunpack.c.l.b16 %v4009
        %v4054 = vunpack.c.l.b16 %v4010
        %v4055 = vunpack.c.l.b16 %v4011
        %v4056 = vunpack.c.l.b16 %v4012
        %v4057 = vunpack.c.l.b16 %v4013
        %v4058 = vunpack.c.l.b16 %v4014
        %v4059 = vunpack.c.l.b16 %v4015
        %v4060 = vunpack.c.l.b16 %v4016
        %v4061 = vunpack.c.l.b16 %v4017
        %v4062 = vunpack.c.l.b16 %v4018
        %v4063 = vunpack.c.l.b16 %v4019
        %v4064 = vunpack.c.l.b16 %v4020
        %v4065 = vunpack.c.l.b16 %v4021
        %v4066 = vunpack.c.l.b16 %v4022
        %v4067 = vunpack.c.l.b16 %v4023
        %v4068 = vpack.c.b16 %v4053, %v4052
        %v4069 = vpack.c.b16 %v4055, %v4054
        %v4070 = vpack.c.b16 %v4057, %v4056
        %v4071 = vpack.c.b16 %v4059, %v4058
        %v4072 = vpack.c.b16 %v4061, %v4060
        %v4073 = vpack.c.b16 %v4063, %v4062
        %v4074 = vpack.c.b16 %v4065, %v4064
        %v4075 = vpack.c.b16 %v4067, %v4066
        %4084 = vmatprep.subr.bf16.mxu0 0
        %4085 = vmatpush1.bf16.msra.mxu0 %v4068
        %4086 = vmatprep.subr.bf16.mxu0 0
        %4087 = vmatpush1.bf16.msra.mxu0 %v4069
        %4088 = vmatprep.subr.bf16.mxu0 0
        %4089 = vmatpush1.bf16.msra.mxu0 %v4070
        %4090 = vmatprep.subr.bf16.mxu0 0
        %4091 = vmatpush1.bf16.msra.mxu0 %v4071
        %4092 = vmatprep.subr.bf16.mxu0 0
        %4093 = vmatpush1.bf16.msra.mxu0 %v4072
        %4094 = vmatprep.subr.bf16.mxu0 0
        %4095 = vmatpush1.bf16.msra.mxu0 %v4073
        %4096 = vmatprep.subr.bf16.mxu0 0
        %4097 = vmatpush1.bf16.msra.mxu0 %v4074
        %4098 = vmatprep.subr.bf16.mxu0 0
        %4099 = vmatpush1.bf16.msra.mxu0 %v4075
        %4100 = vmatprep.subr.bf16.mxu0 0
        %4101 = vmatpush1.bf16.msra.mxu0 0
        %4102 = vmatprep.subr.bf16.mxu0 0
        %4103 = vmatpush1.bf16.msra.mxu0 0
        %4104 = vmatprep.subr.bf16.mxu0 0
        %4105 = vmatpush1.bf16.msra.mxu0 0
        %4106 = vmatprep.subr.bf16.mxu0 0
        %4107 = vmatpush1.bf16.msra.mxu0 0
        %4108 = vmatprep.subr.bf16.mxu0 0
        %4109 = vmatpush1.bf16.msra.mxu0 0
        %4110 = vmatprep.subr.bf16.mxu0 0
        %4111 = vmatpush1.bf16.msra.mxu0 0
        %4112 = vmatprep.subr.bf16.mxu0 0
        %4113 = vmatpush1.bf16.msra.mxu0 0
        %4114 = vmatprep.subr.bf16.mxu0 0
        %4115 = vmatpush1.bf16.msra.mxu0 0
        %4116 = vmatprep.mubr.bf16.mxu0 0
        %4117 = vmatmul.mubr.bf16.gmra.mrb[0].mxu0 %v4032
        %v4118 = vpop.f32.mrb[0].mxu0
        %v4119 = vadd.f32 0.0, %v4118
        %v4120 = vpop.f32.mrb[0].mxu0
        %v4121 = vpop.f32.mrb[0].mxu0
        %v4122 = vadd.f32 0.0, %v4121
        %v4123 = vpop.f32.mrb[0].mxu0
        %4124 = vmatprep.mubr.bf16.mxu0 0
        %4125 = vmatmul.mubr.bf16.gmra.mrb[0].mxu0 %v4033
        %v4126 = vpop.f32.mrb[0].mxu0
        %v4127 = vadd.f32 0.0, %v4126
        %v4128 = vpop.f32.mrb[0].mxu0
        %v4129 = vpop.f32.mrb[0].mxu0
        %v4130 = vadd.f32 0.0, %v4129
        %v4131 = vpop.f32.mrb[0].mxu0
        %4132 = vdwg.mxu0
        %v4136 = vunpack.c.l.b16 %v3985
        %v4137 = vunpack.c.l.b16 %v3986
        %v4138 = vunpack.c.l.b16 %v3987
        %v4139 = vpack.c.b16 %v4137, %v4136
        %v4140 = vpack.c.b16 %v4028, %v4138
        %v4159 = vunpack.c.l.b16 %v3992
        %v4160 = vunpack.c.l.b16 %v3993
        %v4161 = vunpack.c.l.b16 %v3994
        %v4162 = vunpack.c.l.b16 %v3995
        %v4163 = vunpack.c.l.b16 %v3996
        %v4164 = vunpack.c.l.b16 %v3997
        %v4165 = vunpack.c.l.b16 %v3998
        %v4166 = vunpack.c.l.b16 %v3999
        %v4167 = vunpack.c.l.b16 %v4000
        %v4168 = vunpack.c.l.b16 %v4001
        %v4169 = vunpack.c.l.b16 %v4002
        %v4170 = vunpack.c.l.b16 %v4003
        %v4171 = vunpack.c.l.b16 %v4004
        %v4172 = vunpack.c.l.b16 %v4005
        %v4173 = vunpack.c.l.b16 %v4006
        %v4174 = vunpack.c.l.b16 %v4007
        %v4175 = vpack.c.b16 %v4160, %v4159
        %v4176 = vpack.c.b16 %v4162, %v4161
        %v4177 = vpack.c.b16 %v4164, %v4163
        %v4178 = vpack.c.b16 %v4166, %v4165
        %v4179 = vpack.c.b16 %v4168, %v4167
        %v4180 = vpack.c.b16 %v4170, %v4169
        %v4181 = vpack.c.b16 %v4172, %v4171
        %v4182 = vpack.c.b16 %v4174, %v4173
        %4191 = vmatprep.subr.bf16.mxu0 0
        %4192 = vmatpush1.bf16.msra.mxu0 %v4175
        %4193 = vmatprep.subr.bf16.mxu0 0
        %4194 = vmatpush1.bf16.msra.mxu0 %v4176
        %4195 = vmatprep.subr.bf16.mxu0 0
        %4196 = vmatpush1.bf16.msra.mxu0 %v4177
        %4197 = vmatprep.subr.bf16.mxu0 0
        %4198 = vmatpush1.bf16.msra.mxu0 %v4178
        %4199 = vmatprep.subr.bf16.mxu0 0
        %4200 = vmatpush1.bf16.msra.mxu0 %v4179
        %4201 = vmatprep.subr.bf16.mxu0 0
        %4202 = vmatpush1.bf16.msra.mxu0 %v4180
        %4203 = vmatprep.subr.bf16.mxu0 0
        %4204 = vmatpush1.bf16.msra.mxu0 %v4181
        %4205 = vmatprep.subr.bf16.mxu0 0
        %4206 = vmatpush1.bf16.msra.mxu0 %v4182
        %4207 = vmatprep.subr.bf16.mxu0 0
        %4208 = vmatpush1.bf16.msra.mxu0 0
        %4209 = vmatprep.subr.bf16.mxu0 0
        %4210 = vmatpush1.bf16.msra.mxu0 0
        %4211 = vmatprep.subr.bf16.mxu0 0
        %4212 = vmatpush1.bf16.msra.mxu0 0
        %4213 = vmatprep.subr.bf16.mxu0 0
        %4214 = vmatpush1.bf16.msra.mxu0 0
        %4215 = vmatprep.subr.bf16.mxu0 0
        %4216 = vmatpush1.bf16.msra.mxu0 0
        %4217 = vmatprep.subr.bf16.mxu0 0
        %4218 = vmatpush1.bf16.msra.mxu0 0
        %4219 = vmatprep.subr.bf16.mxu0 0
        %4220 = vmatpush1.bf16.msra.mxu0 0
        %4221 = vmatprep.subr.bf16.mxu0 0
        %4222 = vmatpush1.bf16.msra.mxu0 0
        %4223 = vmatprep.mubr.bf16.mxu0 0
        %4224 = vmatmul.mubr.bf16.gmra.mrb[0].mxu0 %v4139
        %v4225 = vpop.f32.mrb[0].mxu0
        %v4226 = vadd.f32 %v4119, %v4225
        %v4227 = vpop.f32.mrb[0].mxu0
        %v4228 = vpop.f32.mrb[0].mxu0
        %v4229 = vadd.f32 %v4122, %v4228
        %v4230 = vpop.f32.mrb[0].mxu0
        %4231 = vmatprep.mubr.bf16.mxu0 0
        %4232 = vmatmul.mubr.bf16.gmra.mrb[0].mxu0 %v4140
        %v4233 = vpop.f32.mrb[0].mxu0
        %v4234 = vadd.f32 %v4127, %v4233
        %v4235 = vpop.f32.mrb[0].mxu0
        %v4236 = vpop.f32.mrb[0].mxu0
        %v4237 = vadd.f32 %v4130, %v4236
        %v4238 = vpop.f32.mrb[0].mxu0
        %4239 = vdwg.mxu0
        %v4240 = vld [vmem:[#allocation5 + $0x80] sm:$0xf]
        %v4241 = vld [vmem:[#allocation5 + $0x84] sm:$0xf]
        %v4242 = vld [vmem:[#allocation5 + $0x88] sm:$0xf]
        %v4243 = vld [vmem:[#allocation5 + $0x8c] sm:$0xf]
        %v4244 = vld [vmem:[#allocation5 + $0x90] sm:$0xf]
        %v4245 = vld [vmem:[#allocation5 + $0x94] sm:$0xf]
        %v4246 = vld [vmem:[#allocation5 + $0x98] sm:$0xf]
        %v4247 = vld [vmem:[#allocation5 + $0x9c] sm:$0xf]
        %v4248 = vld [vmem:[#allocation5 + $0xa0] sm:$0xf]
        %v4249 = vld [vmem:[#allocation5 + $0xa4] sm:$0xf]
        %v4250 = vld [vmem:[#allocation5 + $0xa8] sm:$0xf]
        %v4251 = vld [vmem:[#allocation5 + $0xac] sm:$0xf]
        %v4252 = vld [vmem:[#allocation5 + $0xb0] sm:$0xf]
        %v4253 = vld [vmem:[#allocation5 + $0xb4] sm:$0xf]
        %v4254 = vld [vmem:[#allocation5 + $0xb8] sm:$0xf]
        %v4255 = vld [vmem:[#allocation5 + $0xbc] sm:$0xf]
        %v4256 = vpack.c.b16 %v4029, %v4029
        %v4258 = vshrl.u32 %v4139, 16
        %v4260 = vshll.u32 %v4139, 16
        %v4262 = vrot.slane %v4260, 1
        %v4263 = vor.u32 %v4258, %v4262
        %v4265 = vshll.u32 %v4140, 16
        %v4267 = vrot.slane %v4265, 1
        %v4268 = vsel %vm490, %v4263, %v4267
        %v4269 = vshrl.u32 %v4140, 16
        %v4271 = vor.u32 %v4269, %v4267
        %v4273 = vshll.u32 %v4256, 16
        %v4275 = vrot.slane %v4273, 1
        %v4276 = vsel %vm490, %v4271, %v4275
        %v4295 = vunpack.c.l.b16 %v4240
        %v4296 = vunpack.c.l.b16 %v4241
        %v4297 = vunpack.c.l.b16 %v4242
        %v4298 = vunpack.c.l.b16 %v4243
        %v4299 = vunpack.c.l.b16 %v4244
        %v4300 = vunpack.c.l.b16 %v4245
        %v4301 = vunpack.c.l.b16 %v4246
        %v4302 = vunpack.c.l.b16 %v4247
        %v4303 = vunpack.c.l.b16 %v4248
        %v4304 = vunpack.c.l.b16 %v4249
        %v4305 = vunpack.c.l.b16 %v4250
        %v4306 = vunpack.c.l.b16 %v4251
        %v4307 = vunpack.c.l.b16 %v4252
        %v4308 = vunpack.c.l.b16 %v4253
        %v4309 = vunpack.c.l.b16 %v4254
        %v4310 = vunpack.c.l.b16 %v4255
        %v4311 = vpack.c.b16 %v4296, %v4295
        %v4312 = vpack.c.b16 %v4298, %v4297
        %v4313 = vpack.c.b16 %v4300, %v4299
        %v4314 = vpack.c.b16 %v4302, %v4301
        %v4315 = vpack.c.b16 %v4304, %v4303
        %v4316 = vpack.c.b16 %v4306, %v4305
        %v4317 = vpack.c.b16 %v4308, %v4307
        %v4318 = vpack.c.b16 %v4310, %v4309
        %4327 = vmatprep.subr.bf16.mxu0 0
        %4328 = vmatpush1.bf16.msra.mxu0 %v4311
        %4329 = vmatprep.subr.bf16.mxu0 0
        %4330 = vmatpush1.bf16.msra.mxu0 %v4312
        %4331 = vmatprep.subr.bf16.mxu0 0
        %4332 = vmatpush1.bf16.msra.mxu0 %v4313
        %4333 = vmatprep.subr.bf16.mxu0 0
        %4334 = vmatpush1.bf16.msra.mxu0 %v4314
        %4335 = vmatprep.subr.bf16.mxu0 0
        %4336 = vmatpush1.bf16.msra.mxu0 %v4315
        %4337 = vmatprep.subr.bf16.mxu0 0
        %4338 = vmatpush1.bf16.msra.mxu0 %v4316
        %4339 = vmatprep.subr.bf16.mxu0 0
        %4340 = vmatpush1.bf16.msra.mxu0 %v4317
        %4341 = vmatprep.subr.bf16.mxu0 0
        %4342 = vmatpush1.bf16.msra.mxu0 %v4318
        %4343 = vmatprep.subr.bf16.mxu0 0
        %4344 = vmatpush1.bf16.msra.mxu0 0
        %4345 = vmatprep.subr.bf16.mxu0 0
        %4346 = vmatpush1.bf16.msra.mxu0 0
        %4347 = vmatprep.subr.bf16.mxu0 0
        %4348 = vmatpush1.bf16.msra.mxu0 0
        %4349 = vmatprep.subr.bf16.mxu0 0
        %4350 = vmatpush1.bf16.msra.mxu0 0
        %4351 = vmatprep.subr.bf16.mxu0 0
        %4352 = vmatpush1.bf16.msra.mxu0 0
        %4353 = vmatprep.subr.bf16.mxu0 0
        %4354 = vmatpush1.bf16.msra.mxu0 0
        %4355 = vmatprep.subr.bf16.mxu0 0
        %4356 = vmatpush1.bf16.msra.mxu0 0
        %4357 = vmatprep.subr.bf16.mxu0 0
        %4358 = vmatpush1.bf16.msra.mxu0 0
        %4359 = vmatprep.mubr.bf16.mxu0 0
        %4360 = vmatmul.mubr.bf16.gmra.mrb[0].mxu0 %v4268
        %v4361 = vpop.f32.mrb[0].mxu0
        %v4362 = vadd.f32 0.0, %v4361
        %v4363 = vpop.f32.mrb[0].mxu0
        %v4364 = vpop.f32.mrb[0].mxu0
        %v4365 = vadd.f32 0.0, %v4364
        %v4366 = vpop.f32.mrb[0].mxu0
        %4367 = vmatprep.mubr.bf16.mxu0 0
        %4368 = vmatmul.mubr.bf16.gmra.mrb[0].mxu0 %v4276
        %v4369 = vpop.f32.mrb[0].mxu0
        %v4370 = vadd.f32 0.0, %v4369
        %v4371 = vpop.f32.mrb[0].mxu0
        %v4372 = vpop.f32.mrb[0].mxu0
        %v4373 = vadd.f32 0.0, %v4372
        %v4374 = vpop.f32.mrb[0].mxu0
        %4375 = vdwg.mxu0
        %v4376 = vadd.f32 %v4226, %v4362
        %v4377 = vadd.f32 %v4229, %v4365
        %v4378 = vadd.f32 %v4234, %v4370
        %v4379 = vadd.f32 %v4237, %v4373
        %s4380 = sadd.s32 %s3981, 1
        %s4381 = smul.u32 %s4380, 8
        %s4382 = smul.addr %s4381, 4
        %s4383 = scalar_lea.vmem [#allocation2], %s4382
        %v4384 = vld [vmem:[%s4383] sm:$0xf]
        %v4385 = vld [vmem:[%s4383 + $0x4] sm:$0xf]
        %v4386 = vld [vmem:[%s4383 + $0x8] sm:$0xf]
        %v4387 = vld [vmem:[%s4383 + $0xc] sm:$0xf]
        %v4388 = vld [vmem:[%s4383 + $0x10] sm:$0xf]
        %v4389 = vld [vmem:[%s4383 + $0x14] sm:$0xf]
        %v4390 = vld [vmem:[%s4383 + $0x18] sm:$0xf]
        %v4391 = vld [vmem:[#allocation5 + $0xc0] sm:$0xf]
        %v4392 = vld [vmem:[#allocation5 + $0xc4] sm:$0xf]
        %v4393 = vld [vmem:[#allocation5 + $0xc8] sm:$0xf]
        %v4394 = vld [vmem:[#allocation5 + $0xcc] sm:$0xf]
        %v4395 = vld [vmem:[#allocation5 + $0xd0] sm:$0xf]
        %v4396 = vld [vmem:[#allocation5 + $0xd4] sm:$0xf]
        %v4397 = vld [vmem:[#allocation5 + $0xd8] sm:$0xf]
        %v4398 = vld [vmem:[#allocation5 + $0xdc] sm:$0xf]
        %v4399 = vld [vmem:[#allocation5 + $0xe0] sm:$0xf]
        %v4400 = vld [vmem:[#allocation5 + $0xe4] sm:$0xf]
        %v4401 = vld [vmem:[#allocation5 + $0xe8] sm:$0xf]
        %v4402 = vld [vmem:[#allocation5 + $0xec] sm:$0xf]
        %v4403 = vld [vmem:[#allocation5 + $0xf0] sm:$0xf]
        %v4404 = vld [vmem:[#allocation5 + $0xf4] sm:$0xf]
        %v4405 = vld [vmem:[#allocation5 + $0xf8] sm:$0xf]
        %v4406 = vld [vmem:[#allocation5 + $0xfc] sm:$0xf]
        %v4411 = vunpack.c.l.b16 %v4384
        %v4412 = vunpack.c.l.b16 %v4385
        %v4413 = vunpack.c.l.b16 %v4386
        %v4414 = vunpack.c.l.b16 %v4387
        %v4415 = vpack.c.b16 %v4412, %v4411
        %v4416 = vpack.c.b16 %v4414, %v4413
        %v4435 = vunpack.c.l.b16 %v4391
        %v4436 = vunpack.c.l.b16 %v4392
        %v4437 = vunpack.c.l.b16 %v4393
        %v4438 = vunpack.c.l.b16 %v4394
        %v4439 = vunpack.c.l.b16 %v4395
        %v4440 = vunpack.c.l.b16 %v4396
        %v4441 = vunpack.c.l.b16 %v4397
        %v4442 = vunpack.c.l.b16 %v4398
        %v4443 = vunpack.c.l.b16 %v4399
        %v4444 = vunpack.c.l.b16 %v4400
        %v4445 = vunpack.c.l.b16 %v4401
        %v4446 = vunpack.c.l.b16 %v4402
        %v4447 = vunpack.c.l.b16 %v4403
        %v4448 = vunpack.c.l.b16 %v4404
        %v4449 = vunpack.c.l.b16 %v4405
        %v4450 = vunpack.c.l.b16 %v4406
        %v4451 = vpack.c.b16 %v4436, %v4435
        %v4452 = vpack.c.b16 %v4438, %v4437
        %v4453 = vpack.c.b16 %v4440, %v4439
        %v4454 = vpack.c.b16 %v4442, %v4441
        %v4455 = vpack.c.b16 %v4444, %v4443
        %v4456 = vpack.c.b16 %v4446, %v4445
        %v4457 = vpack.c.b16 %v4448, %v4447
        %v4458 = vpack.c.b16 %v4450, %v4449
        %4467 = vmatprep.subr.bf16.mxu0 0
        %4468 = vmatpush1.bf16.msra.mxu0 %v4451
        %4469 = vmatprep.subr.bf16.mxu0 0
        %4470 = vmatpush1.bf16.msra.mxu0 %v4452
        %4471 = vmatprep.subr.bf16.mxu0 0
        %4472 = vmatpush1.bf16.msra.mxu0 %v4453
        %4473 = vmatprep.subr.bf16.mxu0 0
        %4474 = vmatpush1.bf16.msra.mxu0 %v4454
        %4475 = vmatprep.subr.bf16.mxu0 0
        %4476 = vmatpush1.bf16.msra.mxu0 %v4455
        %4477 = vmatprep.subr.bf16.mxu0 0
        %4478 = vmatpush1.bf16.msra.mxu0 %v4456
        %4479 = vmatprep.subr.bf16.mxu0 0
        %4480 = vmatpush1.bf16.msra.mxu0 %v4457
        %4481 = vmatprep.subr.bf16.mxu0 0
        %4482 = vmatpush1.bf16.msra.mxu0 %v4458
        %4483 = vmatprep.subr.bf16.mxu0 0
        %4484 = vmatpush1.bf16.msra.mxu0 0
        %4485 = vmatprep.subr.bf16.mxu0 0
        %4486 = vmatpush1.bf16.msra.mxu0 0
        %4487 = vmatprep.subr.bf16.mxu0 0
        %4488 = vmatpush1.bf16.msra.mxu0 0
        %4489 = vmatprep.subr.bf16.mxu0 0
        %4490 = vmatpush1.bf16.msra.mxu0 0
        %4491 = vmatprep.subr.bf16.mxu0 0
        %4492 = vmatpush1.bf16.msra.mxu0 0
        %4493 = vmatprep.subr.bf16.mxu0 0
        %4494 = vmatpush1.bf16.msra.mxu0 0
        %4495 = vmatprep.subr.bf16.mxu0 0
        %4496 = vmatpush1.bf16.msra.mxu0 0
        %4497 = vmatprep.subr.bf16.mxu0 0
        %4498 = vmatpush1.bf16.msra.mxu0 0
        %4499 = vmatprep.mubr.bf16.mxu0 0
        %4500 = vmatmul.mubr.bf16.gmra.mrb[0].mxu0 %v4415
        %v4501 = vpop.f32.mrb[0].mxu0
        %v4502 = vadd.f32 0.0, %v4501
        %v4503 = vpop.f32.mrb[0].mxu0
        %v4504 = vpop.f32.mrb[0].mxu0
        %v4505 = vadd.f32 0.0, %v4504
        %v4506 = vpop.f32.mrb[0].mxu0
        %4507 = vmatprep.mubr.bf16.mxu0 0
        %4508 = vmatmul.mubr.bf16.gmra.mrb[0].mxu0 %v4416
        %v4509 = vpop.f32.mrb[0].mxu0
        %v4510 = vadd.f32 0.0, %v4509
        %v4511 = vpop.f32.mrb[0].mxu0
        %v4512 = vpop.f32.mrb[0].mxu0
        %v4513 = vadd.f32 0.0, %v4512
        %v4514 = vpop.f32.mrb[0].mxu0
        %4515 = vdwg.mxu0
        %v4516 = vadd.f32 %v4376, %v4502
        %v4517 = vadd.f32 %v4377, %v4505
        %v4518 = vadd.f32 %v4378, %v4510
        %v4519 = vadd.f32 %v4379, %v4513
        %v4520 = vld [vmem:[#allocation5 + $0x100] sm:$0xf]
        %v4521 = vld [vmem:[#allocation5 + $0x104] sm:$0xf]
        %v4522 = vld [vmem:[#allocation5 + $0x108] sm:$0xf]
        %v4523 = vld [vmem:[#allocation5 + $0x10c] sm:$0xf]
        %v4524 = vld [vmem:[#allocation5 + $0x110] sm:$0xf]
        %v4525 = vld [vmem:[#allocation5 + $0x114] sm:$0xf]
        %v4526 = vld [vmem:[#allocation5 + $0x118] sm:$0xf]
        %v4527 = vld [vmem:[#allocation5 + $0x11c] sm:$0xf]
        %v4528 = vld [vmem:[#allocation5 + $0x120] sm:$0xf]
        %v4529 = vld [vmem:[#allocation5 + $0x124] sm:$0xf]
        %v4530 = vld [vmem:[#allocation5 + $0x128] sm:$0xf]
        %v4531 = vld [vmem:[#allocation5 + $0x12c] sm:$0xf]
        %v4532 = vld [vmem:[#allocation5 + $0x130] sm:$0xf]
        %v4533 = vld [vmem:[#allocation5 + $0x134] sm:$0xf]
        %v4534 = vld [vmem:[#allocation5 + $0x138] sm:$0xf]
        %v4535 = vld [vmem:[#allocation5 + $0x13c] sm:$0xf]
        %v4539 = vunpack.c.l.b16 %v4388
        %v4540 = vunpack.c.l.b16 %v4389
        %v4541 = vunpack.c.l.b16 %v4390
        %v4542 = vpack.c.b16 %v4539, %v4414
        %v4543 = vpack.c.b16 %v4541, %v4540
        %v4562 = vunpack.c.l.b16 %v4520
        %v4563 = vunpack.c.l.b16 %v4521
        %v4564 = vunpack.c.l.b16 %v4522
        %v4565 = vunpack.c.l.b16 %v4523
        %v4566 = vunpack.c.l.b16 %v4524
        %v4567 = vunpack.c.l.b16 %v4525
        %v4568 = vunpack.c.l.b16 %v4526
        %v4569 = vunpack.c.l.b16 %v4527
        %v4570 = vunpack.c.l.b16 %v4528
        %v4571 = vunpack.c.l.b16 %v4529
        %v4572 = vunpack.c.l.b16 %v4530
        %v4573 = vunpack.c.l.b16 %v4531
        %v4574 = vunpack.c.l.b16 %v4532
        %v4575 = vunpack.c.l.b16 %v4533
        %v4576 = vunpack.c.l.b16 %v4534
        %v4577 = vunpack.c.l.b16 %v4535
        %v4578 = vpack.c.b16 %v4563, %v4562
        %v4579 = vpack.c.b16 %v4565, %v4564
        %v4580 = vpack.c.b16 %v4567, %v4566
        %v4581 = vpack.c.b16 %v4569, %v4568
        %v4582 = vpack.c.b16 %v4571, %v4570
        %v4583 = vpack.c.b16 %v4573, %v4572
        %v4584 = vpack.c.b16 %v4575, %v4574
        %v4585 = vpack.c.b16 %v4577, %v4576
        %4594 = vmatprep.subr.bf16.mxu0 0
        %4595 = vmatpush1.bf16.msra.mxu0 %v4578
        %4596 = vmatprep.subr.bf16.mxu0 0
        %4597 = vmatpush1.bf16.msra.mxu0 %v4579
        %4598 = vmatprep.subr.bf16.mxu0 0
        %4599 = vmatpush1.bf16.msra.mxu0 %v4580
        %4600 = vmatprep.subr.bf16.mxu0 0
        %4601 = vmatpush1.bf16.msra.mxu0 %v4581
        %4602 = vmatprep.subr.bf16.mxu0 0
        %4603 = vmatpush1.bf16.msra.mxu0 %v4582
        %4604 = vmatprep.subr.bf16.mxu0 0
        %4605 = vmatpush1.bf16.msra.mxu0 %v4583
        %4606 = vmatprep.subr.bf16.mxu0 0
        %4607 = vmatpush1.bf16.msra.mxu0 %v4584
        %4608 = vmatprep.subr.bf16.mxu0 0
        %4609 = vmatpush1.bf16.msra.mxu0 %v4585
        %4610 = vmatprep.subr.bf16.mxu0 0
        %4611 = vmatpush1.bf16.msra.mxu0 0
        %4612 = vmatprep.subr.bf16.mxu0 0
        %4613 = vmatpush1.bf16.msra.mxu0 0
        %4614 = vmatprep.subr.bf16.mxu0 0
        %4615 = vmatpush1.bf16.msra.mxu0 0
        %4616 = vmatprep.subr.bf16.mxu0 0
        %4617 = vmatpush1.bf16.msra.mxu0 0
        %4618 = vmatprep.subr.bf16.mxu0 0
        %4619 = vmatpush1.bf16.msra.mxu0 0
        %4620 = vmatprep.subr.bf16.mxu0 0
        %4621 = vmatpush1.bf16.msra.mxu0 0
        %4622 = vmatprep.subr.bf16.mxu0 0
        %4623 = vmatpush1.bf16.msra.mxu0 0
        %4624 = vmatprep.subr.bf16.mxu0 0
        %4625 = vmatpush1.bf16.msra.mxu0 0
        %4626 = vmatprep.mubr.bf16.mxu0 0
        %4627 = vmatmul.mubr.bf16.gmra.mrb[0].mxu0 %v4542
        %v4628 = vpop.f32.mrb[0].mxu0
        %v4629 = vadd.f32 0.0, %v4628
        %v4630 = vpop.f32.mrb[0].mxu0
        %v4631 = vpop.f32.mrb[0].mxu0
        %v4632 = vadd.f32 0.0, %v4631
        %v4633 = vpop.f32.mrb[0].mxu0
        %4634 = vmatprep.mubr.bf16.mxu0 0
        %4635 = vmatmul.mubr.bf16.gmra.mrb[0].mxu0 %v4543
        %v4636 = vpop.f32.mrb[0].mxu0
        %v4637 = vadd.f32 0.0, %v4636
        %v4638 = vpop.f32.mrb[0].mxu0
        %v4639 = vpop.f32.mrb[0].mxu0
        %v4640 = vadd.f32 0.0, %v4639
        %v4641 = vpop.f32.mrb[0].mxu0
        %4642 = vdwg.mxu0
        %v4643 = vadd.f32 %v4516, %v4629
        %v4644 = vadd.f32 %v4517, %v4632
        %v4645 = vadd.f32 %v4518, %v4637
        %v4646 = vadd.f32 %v4519, %v4640
        %v4647 = vld [vmem:[#allocation5 + $0x140] sm:$0xf]
        %v4648 = vld [vmem:[#allocation5 + $0x144] sm:$0xf]
        %v4649 = vld [vmem:[#allocation5 + $0x148] sm:$0xf]
        %v4650 = vld [vmem:[#allocation5 + $0x14c] sm:$0xf]
        %v4651 = vld [vmem:[#allocation5 + $0x150] sm:$0xf]
        %v4652 = vld [vmem:[#allocation5 + $0x154] sm:$0xf]
        %v4653 = vld [vmem:[#allocation5 + $0x158] sm:$0xf]
        %v4654 = vld [vmem:[#allocation5 + $0x15c] sm:$0xf]
        %v4655 = vld [vmem:[#allocation5 + $0x160] sm:$0xf]
        %v4656 = vld [vmem:[#allocation5 + $0x164] sm:$0xf]
        %v4657 = vld [vmem:[#allocation5 + $0x168] sm:$0xf]
        %v4658 = vld [vmem:[#allocation5 + $0x16c] sm:$0xf]
        %v4659 = vld [vmem:[#allocation5 + $0x170] sm:$0xf]
        %v4660 = vld [vmem:[#allocation5 + $0x174] sm:$0xf]
        %v4661 = vld [vmem:[#allocation5 + $0x178] sm:$0xf]
        %v4662 = vld [vmem:[#allocation5 + $0x17c] sm:$0xf]
        %v4663 = vpack.c.b16 %v4539, %v4539
        %v4665 = vshrl.u32 %v4415, 16
        %v4667 = vshll.u32 %v4415, 16
        %v4669 = vrot.slane %v4667, 1
        %v4670 = vor.u32 %v4665, %v4669
        %v4672 = vshll.u32 %v4416, 16
        %v4674 = vrot.slane %v4672, 1
        %v4675 = vsel %vm490, %v4670, %v4674
        %v4676 = vshrl.u32 %v4416, 16
        %v4678 = vor.u32 %v4676, %v4674
        %v4680 = vshll.u32 %v4663, 16
        %v4682 = vrot.slane %v4680, 1
        %v4683 = vsel %vm490, %v4678, %v4682
        %v4702 = vunpack.c.l.b16 %v4647
        %v4703 = vunpack.c.l.b16 %v4648
        %v4704 = vunpack.c.l.b16 %v4649
        %v4705 = vunpack.c.l.b16 %v4650
        %v4706 = vunpack.c.l.b16 %v4651
        %v4707 = vunpack.c.l.b16 %v4652
        %v4708 = vunpack.c.l.b16 %v4653
        %v4709 = vunpack.c.l.b16 %v4654
        %v4710 = vunpack.c.l.b16 %v4655
        %v4711 = vunpack.c.l.b16 %v4656
        %v4712 = vunpack.c.l.b16 %v4657
        %v4713 = vunpack.c.l.b16 %v4658
        %v4714 = vunpack.c.l.b16 %v4659
        %v4715 = vunpack.c.l.b16 %v4660
        %v4716 = vunpack.c.l.b16 %v4661
        %v4717 = vunpack.c.l.b16 %v4662
        %v4718 = vpack.c.b16 %v4703, %v4702
        %v4719 = vpack.c.b16 %v4705, %v4704
        %v4720 = vpack.c.b16 %v4707, %v4706
        %v4721 = vpack.c.b16 %v4709, %v4708
        %v4722 = vpack.c.b16 %v4711, %v4710
        %v4723 = vpack.c.b16 %v4713, %v4712
        %v4724 = vpack.c.b16 %v4715, %v4714
        %v4725 = vpack.c.b16 %v4717, %v4716
        %4734 = vmatprep.subr.bf16.mxu0 0
        %4735 = vmatpush1.bf16.msra.mxu0 %v4718
        %4736 = vmatprep.subr.bf16.mxu0 0
        %4737 = vmatpush1.bf16.msra.mxu0 %v4719
        %4738 = vmatprep.subr.bf16.mxu0 0
        %4739 = vmatpush1.bf16.msra.mxu0 %v4720
        %4740 = vmatprep.subr.bf16.mxu0 0
        %4741 = vmatpush1.bf16.msra.mxu0 %v4721
        %4742 = vmatprep.subr.bf16.mxu0 0
        %4743 = vmatpush1.bf16.msra.mxu0 %v4722
        %4744 = vmatprep.subr.bf16.mxu0 0
        %4745 = vmatpush1.bf16.msra.mxu0 %v4723
        %4746 = vmatprep.subr.bf16.mxu0 0
        %4747 = vmatpush1.bf16.msra.mxu0 %v4724
        %4748 = vmatprep.subr.bf16.mxu0 0
        %4749 = vmatpush1.bf16.msra.mxu0 %v4725
        %4750 = vmatprep.subr.bf16.mxu0 0
        %4751 = vmatpush1.bf16.msra.mxu0 0
        %4752 = vmatprep.subr.bf16.mxu0 0
        %4753 = vmatpush1.bf16.msra.mxu0 0
        %4754 = vmatprep.subr.bf16.mxu0 0
        %4755 = vmatpush1.bf16.msra.mxu0 0
        %4756 = vmatprep.subr.bf16.mxu0 0
        %4757 = vmatpush1.bf16.msra.mxu0 0
        %4758 = vmatprep.subr.bf16.mxu0 0
        %4759 = vmatpush1.bf16.msra.mxu0 0
        %4760 = vmatprep.subr.bf16.mxu0 0
        %4761 = vmatpush1.bf16.msra.mxu0 0
        %4762 = vmatprep.subr.bf16.mxu0 0
        %4763 = vmatpush1.bf16.msra.mxu0 0
        %4764 = vmatprep.subr.bf16.mxu0 0
        %4765 = vmatpush1.bf16.msra.mxu0 0
        %4766 = vmatprep.mubr.bf16.mxu0 0
        %4767 = vmatmul.mubr.bf16.gmra.mrb[0].mxu0 %v4675
        %v4768 = vpop.f32.mrb[0].mxu0
        %v4769 = vadd.f32 0.0, %v4768
        %v4770 = vpop.f32.mrb[0].mxu0
        %v4771 = vpop.f32.mrb[0].mxu0
        %v4772 = vadd.f32 0.0, %v4771
        %v4773 = vpop.f32.mrb[0].mxu0
        %4774 = vmatprep.mubr.bf16.mxu0 0
        %4775 = vmatmul.mubr.bf16.gmra.mrb[0].mxu0 %v4683
        %v4776 = vpop.f32.mrb[0].mxu0
        %v4777 = vadd.f32 0.0, %v4776
        %v4778 = vpop.f32.mrb[0].mxu0
        %v4779 = vpop.f32.mrb[0].mxu0
        %v4780 = vadd.f32 0.0, %v4779
        %v4781 = vpop.f32.mrb[0].mxu0
        %4782 = vdwg.mxu0
        %v4783 = vadd.f32 %v4643, %v4769
        %v4784 = vadd.f32 %v4644, %v4772
        %v4785 = vadd.f32 %v4645, %v4777
        %v4786 = vadd.f32 %v4646, %v4780
        %s4787 = sadd.s32 %s3981, 2
        %s4788 = smul.u32 %s4787, 8
        %s4789 = smul.addr %s4788, 4
        %s4790 = scalar_lea.vmem [#allocation2], %s4789
        %v4791 = vld [vmem:[%s4790] sm:$0xf]
        %v4792 = vld [vmem:[%s4790 + $0x4] sm:$0xf]
        %v4793 = vld [vmem:[%s4790 + $0x8] sm:$0xf]
        %v4794 = vld [vmem:[%s4790 + $0xc] sm:$0xf]
        %v4795 = vld [vmem:[%s4790 + $0x10] sm:$0xf]
        %v4796 = vld [vmem:[%s4790 + $0x14] sm:$0xf]
        %v4797 = vld [vmem:[%s4790 + $0x18] sm:$0xf]
        %v4798 = vld [vmem:[#allocation5 + $0x180] sm:$0xf]
        %v4799 = vld [vmem:[#allocation5 + $0x184] sm:$0xf]
        %v4800 = vld [vmem:[#allocation5 + $0x188] sm:$0xf]
        %v4801 = vld [vmem:[#allocation5 + $0x18c] sm:$0xf]
        %v4802 = vld [vmem:[#allocation5 + $0x190] sm:$0xf]
        %v4803 = vld [vmem:[#allocation5 + $0x194] sm:$0xf]
        %v4804 = vld [vmem:[#allocation5 + $0x198] sm:$0xf]
        %v4805 = vld [vmem:[#allocation5 + $0x19c] sm:$0xf]
        %v4806 = vld [vmem:[#allocation5 + $0x1a0] sm:$0xf]
        %v4807 = vld [vmem:[#allocation5 + $0x1a4] sm:$0xf]
        %v4808 = vld [vmem:[#allocation5 + $0x1a8] sm:$0xf]
        %v4809 = vld [vmem:[#allocation5 + $0x1ac] sm:$0xf]
        %v4810 = vld [vmem:[#allocation5 + $0x1b0] sm:$0xf]
        %v4811 = vld [vmem:[#allocation5 + $0x1b4] sm:$0xf]
        %v4812 = vld [vmem:[#allocation5 + $0x1b8] sm:$0xf]
        %v4813 = vld [vmem:[#allocation5 + $0x1bc] sm:$0xf]
        %v4818 = vunpack.c.l.b16 %v4791
        %v4819 = vunpack.c.l.b16 %v4792
        %v4820 = vunpack.c.l.b16 %v4793
        %v4821 = vunpack.c.l.b16 %v4794
        %v4822 = vpack.c.b16 %v4819, %v4818
        %v4823 = vpack.c.b16 %v4821, %v4820
        %v4842 = vunpack.c.l.b16 %v4798
        %v4843 = vunpack.c.l.b16 %v4799
        %v4844 = vunpack.c.l.b16 %v4800
        %v4845 = vunpack.c.l.b16 %v4801
        %v4846 = vunpack.c.l.b16 %v4802
        %v4847 = vunpack.c.l.b16 %v4803
        %v4848 = vunpack.c.l.b16 %v4804
        %v4849 = vunpack.c.l.b16 %v4805
        %v4850 = vunpack.c.l.b16 %v4806
        %v4851 = vunpack.c.l.b16 %v4807
        %v4852 = vunpack.c.l.b16 %v4808
        %v4853 = vunpack.c.l.b16 %v4809
        %v4854 = vunpack.c.l.b16 %v4810
        %v4855 = vunpack.c.l.b16 %v4811
        %v4856 = vunpack.c.l.b16 %v4812
        %v4857 = vunpack.c.l.b16 %v4813
        %v4858 = vpack.c.b16 %v4843, %v4842
        %v4859 = vpack.c.b16 %v4845, %v4844
        %v4860 = vpack.c.b16 %v4847, %v4846
        %v4861 = vpack.c.b16 %v4849, %v4848
        %v4862 = vpack.c.b16 %v4851, %v4850
        %v4863 = vpack.c.b16 %v4853, %v4852
        %v4864 = vpack.c.b16 %v4855, %v4854
        %v4865 = vpack.c.b16 %v4857, %v4856
        %4874 = vmatprep.subr.bf16.mxu0 0
        %4875 = vmatpush1.bf16.msra.mxu0 %v4858
        %4876 = vmatprep.subr.bf16.mxu0 0
        %4877 = vmatpush1.bf16.msra.mxu0 %v4859
        %4878 = vmatprep.subr.bf16.mxu0 0
        %4879 = vmatpush1.bf16.msra.mxu0 %v4860
        %4880 = vmatprep.subr.bf16.mxu0 0
        %4881 = vmatpush1.bf16.msra.mxu0 %v4861
        %4882 = vmatprep.subr.bf16.mxu0 0
        %4883 = vmatpush1.bf16.msra.mxu0 %v4862
        %4884 = vmatprep.subr.bf16.mxu0 0
        %4885 = vmatpush1.bf16.msra.mxu0 %v4863
        %4886 = vmatprep.subr.bf16.mxu0 0
        %4887 = vmatpush1.bf16.msra.mxu0 %v4864
        %4888 = vmatprep.subr.bf16.mxu0 0
        %4889 = vmatpush1.bf16.msra.mxu0 %v4865
        %4890 = vmatprep.subr.bf16.mxu0 0
        %4891 = vmatpush1.bf16.msra.mxu0 0
        %4892 = vmatprep.subr.bf16.mxu0 0
        %4893 = vmatpush1.bf16.msra.mxu0 0
        %4894 = vmatprep.subr.bf16.mxu0 0
        %4895 = vmatpush1.bf16.msra.mxu0 0
        %4896 = vmatprep.subr.bf16.mxu0 0
        %4897 = vmatpush1.bf16.msra.mxu0 0
        %4898 = vmatprep.subr.bf16.mxu0 0
        %4899 = vmatpush1.bf16.msra.mxu0 0
        %4900 = vmatprep.subr.bf16.mxu0 0
        %4901 = vmatpush1.bf16.msra.mxu0 0
        %4902 = vmatprep.subr.bf16.mxu0 0
        %4903 = vmatpush1.bf16.msra.mxu0 0
        %4904 = vmatprep.subr.bf16.mxu0 0
        %4905 = vmatpush1.bf16.msra.mxu0 0
        %4906 = vmatprep.mubr.bf16.mxu0 0
        %4907 = vmatmul.mubr.bf16.gmra.mrb[0].mxu0 %v4822
        %v4908 = vpop.f32.mrb[0].mxu0
        %v4909 = vadd.f32 0.0, %v4908
        %v4910 = vpop.f32.mrb[0].mxu0
        %v4911 = vpop.f32.mrb[0].mxu0
        %v4912 = vadd.f32 0.0, %v4911
        %v4913 = vpop.f32.mrb[0].mxu0
        %4914 = vmatprep.mubr.bf16.mxu0 0
        %4915 = vmatmul.mubr.bf16.gmra.mrb[0].mxu0 %v4823
        %v4916 = vpop.f32.mrb[0].mxu0
        %v4917 = vadd.f32 0.0, %v4916
        %v4918 = vpop.f32.mrb[0].mxu0
        %v4919 = vpop.f32.mrb[0].mxu0
        %v4920 = vadd.f32 0.0, %v4919
        %v4921 = vpop.f32.mrb[0].mxu0
        %4922 = vdwg.mxu0
        %v4923 = vadd.f32 %v4783, %v4909
        %v4924 = vadd.f32 %v4784, %v4912
        %v4925 = vadd.f32 %v4785, %v4917
        %v4926 = vadd.f32 %v4786, %v4920
        %v4927 = vld [vmem:[#allocation5 + $0x1c0] sm:$0xf]
        %v4928 = vld [vmem:[#allocation5 + $0x1c4] sm:$0xf]
        %v4929 = vld [vmem:[#allocation5 + $0x1c8] sm:$0xf]
        %v4930 = vld [vmem:[#allocation5 + $0x1cc] sm:$0xf]
        %v4931 = vld [vmem:[#allocation5 + $0x1d0] sm:$0xf]
        %v4932 = vld [vmem:[#allocation5 + $0x1d4] sm:$0xf]
        %v4933 = vld [vmem:[#allocation5 + $0x1d8] sm:$0xf]
        %v4934 = vld [vmem:[#allocation5 + $0x1dc] sm:$0xf]
        %v4935 = vld [vmem:[#allocation5 + $0x1e0] sm:$0xf]
        %v4936 = vld [vmem:[#allocation5 + $0x1e4] sm:$0xf]
        %v4937 = vld [vmem:[#allocation5 + $0x1e8] sm:$0xf]
        %v4938 = vld [vmem:[#allocation5 + $0x1ec] sm:$0xf]
        %v4939 = vld [vmem:[#allocation5 + $0x1f0] sm:$0xf]
        %v4940 = vld [vmem:[#allocation5 + $0x1f4] sm:$0xf]
        %v4941 = vld [vmem:[#allocation5 + $0x1f8] sm:$0xf]
        %v4942 = vld [vmem:[#allocation5 + $0x1fc] sm:$0xf]
        %v4946 = vunpack.c.l.b16 %v4795
        %v4947 = vunpack.c.l.b16 %v4796
        %v4948 = vunpack.c.l.b16 %v4797
        %v4949 = vpack.c.b16 %v4946, %v4821
        %v4950 = vpack.c.b16 %v4948, %v4947
        %v4969 = vunpack.c.l.b16 %v4927
        %v4970 = vunpack.c.l.b16 %v4928
        %v4971 = vunpack.c.l.b16 %v4929
        %v4972 = vunpack.c.l.b16 %v4930
        %v4973 = vunpack.c.l.b16 %v4931
        %v4974 = vunpack.c.l.b16 %v4932
        %v4975 = vunpack.c.l.b16 %v4933
        %v4976 = vunpack.c.l.b16 %v4934
        %v4977 = vunpack.c.l.b16 %v4935
        %v4978 = vunpack.c.l.b16 %v4936
        %v4979 = vunpack.c.l.b16 %v4937
        %v4980 = vunpack.c.l.b16 %v4938
        %v4981 = vunpack.c.l.b16 %v4939
        %v4982 = vunpack.c.l.b16 %v4940
        %v4983 = vunpack.c.l.b16 %v4941
        %v4984 = vunpack.c.l.b16 %v4942
        %v4985 = vpack.c.b16 %v4970, %v4969
        %v4986 = vpack.c.b16 %v4972, %v4971
        %v4987 = vpack.c.b16 %v4974, %v4973
        %v4988 = vpack.c.b16 %v4976, %v4975
        %v4989 = vpack.c.b16 %v4978, %v4977
        %v4990 = vpack.c.b16 %v4980, %v4979
        %v4991 = vpack.c.b16 %v4982, %v4981
        %v4992 = vpack.c.b16 %v4984, %v4983
        %5001 = vmatprep.subr.bf16.mxu0 0
        %5002 = vmatpush1.bf16.msra.mxu0 %v4985
        %5003 = vmatprep.subr.bf16.mxu0 0
        %5004 = vmatpush1.bf16.msra.mxu0 %v4986
        %5005 = vmatprep.subr.bf16.mxu0 0
        %5006 = vmatpush1.bf16.msra.mxu0 %v4987
        %5007 = vmatprep.subr.bf16.mxu0 0
        %5008 = vmatpush1.bf16.msra.mxu0 %v4988
        %5009 = vmatprep.subr.bf16.mxu0 0
        %5010 = vmatpush1.bf16.msra.mxu0 %v4989
        %5011 = vmatprep.subr.bf16.mxu0 0
        %5012 = vmatpush1.bf16.msra.mxu0 %v4990
        %5013 = vmatprep.subr.bf16.mxu0 0
        %5014 = vmatpush1.bf16.msra.mxu0 %v4991
        %5015 = vmatprep.subr.bf16.mxu0 0
        %5016 = vmatpush1.bf16.msra.mxu0 %v4992
        %5017 = vmatprep.subr.bf16.mxu0 0
        %5018 = vmatpush1.bf16.msra.mxu0 0
        %5019 = vmatprep.subr.bf16.mxu0 0
        %5020 = vmatpush1.bf16.msra.mxu0 0
        %5021 = vmatprep.subr.bf16.mxu0 0
        %5022 = vmatpush1.bf16.msra.mxu0 0
        %5023 = vmatprep.subr.bf16.mxu0 0
        %5024 = vmatpush1.bf16.msra.mxu0 0
        %5025 = vmatprep.subr.bf16.mxu0 0
        %5026 = vmatpush1.bf16.msra.mxu0 0
        %5027 = vmatprep.subr.bf16.mxu0 0
        %5028 = vmatpush1.bf16.msra.mxu0 0
        %5029 = vmatprep.subr.bf16.mxu0 0
        %5030 = vmatpush1.bf16.msra.mxu0 0
        %5031 = vmatprep.subr.bf16.mxu0 0
        %5032 = vmatpush1.bf16.msra.mxu0 0
        %5033 = vmatprep.mubr.bf16.mxu0 0
        %5034 = vmatmul.mubr.bf16.gmra.mrb[0].mxu0 %v4949
        %v5035 = vpop.f32.mrb[0].mxu0
        %v5036 = vadd.f32 0.0, %v5035
        %v5037 = vpop.f32.mrb[0].mxu0
        %v5038 = vpop.f32.mrb[0].mxu0
        %v5039 = vadd.f32 0.0, %v5038
        %v5040 = vpop.f32.mrb[0].mxu0
        %5041 = vmatprep.mubr.bf16.mxu0 0
        %5042 = vmatmul.mubr.bf16.gmra.mrb[0].mxu0 %v4950
        %v5043 = vpop.f32.mrb[0].mxu0
        %v5044 = vadd.f32 0.0, %v5043
        %v5045 = vpop.f32.mrb[0].mxu0
        %v5046 = vpop.f32.mrb[0].mxu0
        %v5047 = vadd.f32 0.0, %v5046
        %v5048 = vpop.f32.mrb[0].mxu0
        %5049 = vdwg.mxu0
        %v5050 = vadd.f32 %v4923, %v5036
        %v5051 = vadd.f32 %v4924, %v5039
        %v5052 = vadd.f32 %v4925, %v5044
        %v5053 = vadd.f32 %v4926, %v5047
        %v5054 = vld [vmem:[#allocation5 + $0x200] sm:$0xf]
        %v5055 = vld [vmem:[#allocation5 + $0x204] sm:$0xf]
        %v5056 = vld [vmem:[#allocation5 + $0x208] sm:$0xf]
        %v5057 = vld [vmem:[#allocation5 + $0x20c] sm:$0xf]
        %v5058 = vld [vmem:[#allocation5 + $0x210] sm:$0xf]
        %v5059 = vld [vmem:[#allocation5 + $0x214] sm:$0xf]
        %v5060 = vld [vmem:[#allocation5 + $0x218] sm:$0xf]
        %v5061 = vld [vmem:[#allocation5 + $0x21c] sm:$0xf]
        %v5062 = vld [vmem:[#allocation5 + $0x220] sm:$0xf]
        %v5063 = vld [vmem:[#allocation5 + $0x224] sm:$0xf]
        %v5064 = vld [vmem:[#allocation5 + $0x228] sm:$0xf]
        %v5065 = vld [vmem:[#allocation5 + $0x22c] sm:$0xf]
        %v5066 = vld [vmem:[#allocation5 + $0x230] sm:$0xf]
        %v5067 = vld [vmem:[#allocation5 + $0x234] sm:$0xf]
        %v5068 = vld [vmem:[#allocation5 + $0x238] sm:$0xf]
        %v5069 = vld [vmem:[#allocation5 + $0x23c] sm:$0xf]
        %v5070 = vpack.c.b16 %v4946, %v4946
        %v5072 = vshrl.u32 %v4822, 16
        %v5074 = vshll.u32 %v4822, 16
        %v5076 = vrot.slane %v5074, 1
        %v5077 = vor.u32 %v5072, %v5076
        %v5079 = vshll.u32 %v4823, 16
        %v5081 = vrot.slane %v5079, 1
        %v5082 = vsel %vm490, %v5077, %v5081
        %v5083 = vshrl.u32 %v4823, 16
        %v5085 = vor.u32 %v5083, %v5081
        %v5087 = vshll.u32 %v5070, 16
        %v5089 = vrot.slane %v5087, 1
        %v5090 = vsel %vm490, %v5085, %v5089
        %v5109 = vunpack.c.l.b16 %v5054
        %v5110 = vunpack.c.l.b16 %v5055
        %v5111 = vunpack.c.l.b16 %v5056
        %v5112 = vunpack.c.l.b16 %v5057
        %v5113 = vunpack.c.l.b16 %v5058
        %v5114 = vunpack.c.l.b16 %v5059
        %v5115 = vunpack.c.l.b16 %v5060
        %v5116 = vunpack.c.l.b16 %v5061
        %v5117 = vunpack.c.l.b16 %v5062
        %v5118 = vunpack.c.l.b16 %v5063
        %v5119 = vunpack.c.l.b16 %v5064
        %v5120 = vunpack.c.l.b16 %v5065
        %v5121 = vunpack.c.l.b16 %v5066
        %v5122 = vunpack.c.l.b16 %v5067
        %v5123 = vunpack.c.l.b16 %v5068
        %v5124 = vunpack.c.l.b16 %v5069
        %v5125 = vpack.c.b16 %v5110, %v5109
        %v5126 = vpack.c.b16 %v5112, %v5111
        %v5127 = vpack.c.b16 %v5114, %v5113
        %v5128 = vpack.c.b16 %v5116, %v5115
        %v5129 = vpack.c.b16 %v5118, %v5117
        %v5130 = vpack.c.b16 %v5120, %v5119
        %v5131 = vpack.c.b16 %v5122, %v5121
        %v5132 = vpack.c.b16 %v5124, %v5123
        %5141 = vmatprep.subr.bf16.mxu0 0
        %5142 = vmatpush1.bf16.msra.mxu0 %v5125
        %5143 = vmatprep.subr.bf16.mxu0 0
        %5144 = vmatpush1.bf16.msra.mxu0 %v5126
        %5145 = vmatprep.subr.bf16.mxu0 0
        %5146 = vmatpush1.bf16.msra.mxu0 %v5127
        %5147 = vmatprep.subr.bf16.mxu0 0
        %5148 = vmatpush1.bf16.msra.mxu0 %v5128
        %5149 = vmatprep.subr.bf16.mxu0 0
        %5150 = vmatpush1.bf16.msra.mxu0 %v5129
        %5151 = vmatprep.subr.bf16.mxu0 0
        %5152 = vmatpush1.bf16.msra.mxu0 %v5130
        %5153 = vmatprep.subr.bf16.mxu0 0
        %5154 = vmatpush1.bf16.msra.mxu0 %v5131
        %5155 = vmatprep.subr.bf16.mxu0 0
        %5156 = vmatpush1.bf16.msra.mxu0 %v5132
        %5157 = vmatprep.subr.bf16.mxu0 0
        %5158 = vmatpush1.bf16.msra.mxu0 0
        %5159 = vmatprep.subr.bf16.mxu0 0
        %5160 = vmatpush1.bf16.msra.mxu0 0
        %5161 = vmatprep.subr.bf16.mxu0 0
        %5162 = vmatpush1.bf16.msra.mxu0 0
        %5163 = vmatprep.subr.bf16.mxu0 0
        %5164 = vmatpush1.bf16.msra.mxu0 0
        %5165 = vmatprep.subr.bf16.mxu0 0
        %5166 = vmatpush1.bf16.msra.mxu0 0
        %5167 = vmatprep.subr.bf16.mxu0 0
        %5168 = vmatpush1.bf16.msra.mxu0 0
        %5169 = vmatprep.subr.bf16.mxu0 0
        %5170 = vmatpush1.bf16.msra.mxu0 0
        %5171 = vmatprep.subr.bf16.mxu0 0
        %5172 = vmatpush1.bf16.msra.mxu0 0
        %5173 = vmatprep.mubr.bf16.mxu0 0
        %5174 = vmatmul.mubr.bf16.gmra.mrb[0].mxu0 %v5082
        %v5175 = vpop.f32.mrb[0].mxu0
        %v5176 = vadd.f32 0.0, %v5175
        %v5177 = vpop.f32.mrb[0].mxu0
        %v5178 = vpop.f32.mrb[0].mxu0
        %v5179 = vadd.f32 0.0, %v5178
        %v5180 = vpop.f32.mrb[0].mxu0
        %5181 = vmatprep.mubr.bf16.mxu0 0
        %5182 = vmatmul.mubr.bf16.gmra.mrb[0].mxu0 %v5090
        %v5183 = vpop.f32.mrb[0].mxu0
        %v5184 = vadd.f32 0.0, %v5183
        %v5185 = vpop.f32.mrb[0].mxu0
        %v5186 = vpop.f32.mrb[0].mxu0
        %v5187 = vadd.f32 0.0, %v5186
        %v5188 = vpop.f32.mrb[0].mxu0
        %5189 = vdwg.mxu0
        %v5190 = vadd.f32 %v5050, %v5176
        %v5191 = vadd.f32 %v5051, %v5179
        %v5192 = vadd.f32 %v5052, %v5184
        %v5193 = vadd.f32 %v5053, %v5187
        %v5194 = vadd.f32 %v5190, %v1432
        %v5195 = vadd.f32 %v5191, %v1432
        %v5196 = vadd.f32 %v5192, %v1432
        %v5197 = vadd.f32 %v5193, %v1432
        %v5198 = vmax.f32 %v5194, 0.0
        %v5199 = vmax.f32 %v5195, 0.0
        %v5200 = vmax.f32 %v5196, 0.0
        %v5201 = vmax.f32 %v5197, 0.0
        %v5202 = vmul.f32 %v5198, %v1445
        %v5203 = vmul.f32 %v5199, %v1450
        %v5204 = vmul.f32 %v5200, %v1455
        %v5205 = vmul.f32 %v5201, %v1460
        %v5206 = vpack.c.bf16 %v5203, %v5202
        %v5207 = vpack.c.bf16 %v5205, %v5204
        %v5210 = vunpack.c.l.b16 %v5206
        %v5211 = vunpack.c.h.b16 %v5206
        %v5212 = vunpack.c.l.b16 %v5207
        %v5213 = vunpack.c.h.b16 %v5207
        %v5214 = vpack.c.b16 %v5210, %v5210
        %v5215 = vpack.c.b16 %v5211, %v5211
        %v5216 = vpack.c.b16 %v5212, %v5212
        %v5217 = vpack.c.b16 %v5213, %v5213
        %s5222 = scalar_lea.vmem %s205, 48 [#allocation7]
        %5223 = vst [vmem:[%s5222] sm:$0xf] %v5214
        %5224 = vst [vmem:[%s5222 + $0x4] sm:$0xf] %v5215
        %5225 = vst [vmem:[%s5222 + $0x8] sm:$0xf] %v5216
        %5226 = vst [vmem:[%s5222 + $0xc] sm:$0xf] %v5217
        %s5227 = sand.u32 %s112, 1
        %s5228 = scalar_lea.sflag [#allocation4], %s5227
        %s5229 = sand.u32 %s112, 1
        %s5230 = smul.addr %s5229, 64
        %s5231 = scalar_lea.vmem [#allocation7], %s5230
        // Predicated region
        $region45: #{tpu_custom_call.1} parent=35 // pred_check
          %p5232 = pneg %p122
        $region46: #{tpu_custom_call.1} parent=35 // pred_check_branch
          %5234 = sbr.rel (%p5232) target = $region48
        $region47: #{tpu_custom_call.1} parent=35 // pred_region
          %s5235 = smul.u32 4, %s20
          %s5237 = ssub.s32 1024, 1024
          %5238 = vsyncadd %s5228, %s5237
          %s5239 = smul.addr %s5235, 4
          %s5240 = smul.addr %s5239, 64
          %s5241 = scalar_lea.hbm %s4, %s5240
          %s5242 = sshll.u32 %s5231, 4
          %s5243 = int_to_ptr.vmem [resolvable:$true] %s5242
          %5248 = dma.vmem_to_hbm [thread:$0]  %s5243, 1024, %s5241, %s5228, 64, 64, 4
        $region48: #{tpu_custom_call.1} parent=35 // pred_fallthru
          _
      $region36: #{tpu_custom_call.1} parent=5 // pred_fallthru
        _
      %p5249 = scmp.le.s32.totalorder 2, %s15
      // Predicated region
      $region49: #{tpu_custom_call.1} parent=5 // pred_check
        %p5250 = pneg %p5249
      $region50: #{tpu_custom_call.1} parent=5 // pred_check_branch
        %5252 = sbr.rel (%p5250) target = $region52
      $region51: #{tpu_custom_call.1} parent=5 // pred_region
        %s5253 = ssub.s32 %s15, 2
        // Predicated region
        $region53: #{tpu_custom_call.1} parent=51 // pred_check
          %p5254 = pneg %p128
        $region54: #{tpu_custom_call.1} parent=51 // pred_check_branch
          %5256 = sbr.rel (%p5254) target = $region56
        $region55: #{tpu_custom_call.1} parent=51 // pred_region
          %s5257 = sand.u32 %s113, 1
          %s5258 = scalar_lea.sflag [#allocation4], %s5257
          %s5259 = sand.u32 %s113, 1
          %s5260 = smul.addr %s5259, 64
          %s5261 = scalar_lea.vmem [#allocation7], %s5260
          %5262 = dma.done %s5258, 1024
        $region56: #{tpu_custom_call.1} parent=51 // pred_fallthru
          _
      $region52: #{tpu_custom_call.1} parent=5 // pred_fallthru
        _
    $region6: #{tpu_custom_call.1} parent=1 // loop_footer
      %s19 = sadd.s32 1, %s15
    $region7: #{tpu_custom_call.1} parent=1 // loop_footer_branch
      %14 = sbr.rel target = $region3
    $region8: #{tpu_custom_call.1} parent=1 // loop_exit
      _
    %5263 = vsyncpa [#allocation3], 1
    %s5264 = scalar_lea.sflag [#allocation3], 1
    %5265 = vsyncpa %s5264, 1
    %5266 = vsyncpa [#allocation6], 1
    %5267 = vsyncpa [#allocation4], 1
    %s5268 = scalar_lea.sflag [#allocation4], 1
    %5269 = vsyncpa %s5268, 1

</llo_original>
